<compile_context>
chip_gen: v7x
topology: tpu7x:2x2x1
jax: 0.10.0
libtpu: 0.0.40
codegen_flags: <defaults>
</compile_context>

<pallas_src>
import math

import jax
import jax.numpy as jnp
from jax.experimental import pallas as pl
from jax.experimental.pallas import tpu as pltpu

# ---------------- model config (BERT scaled down to small synthetic shapes) ----------------
BATCH = 2
SEQ = 8
VOCAB = 50          # stands in for len(tokenizer) after resize_token_embeddings
HIDDEN = 32
NUM_HEADS = 4
NUM_LAYERS = 2
INTERMEDIATE = 64
NUM_LABELS = 5      # len(labels_to_ids)
MAX_POS = 16
LN_EPS = 1e-12
IGNORE_INDEX = -100
LP = 128            # classifier logits padded to one full 128-lane vreg


def _layer_norm(x, g, b, eps=LN_EPS):
    mu = jnp.mean(x, axis=-1, keepdims=True)
    var = jnp.mean(jnp.square(x - mu), axis=-1, keepdims=True)
    return (x - mu) * jax.lax.rsqrt(var + eps) * g + b


# ------------------------------ fused forward kernel ------------------------------
def fused_bert_kernel(x_ref, attb_ref, labels_ref, lmask_ref, msr_ref, exid_ref, cw_ref,
                      wq_ref, bq_ref, wk_ref, bk_ref, wv_ref, bv_ref, wo_ref, bo_ref,
                      g1_ref, b1_ref, wi_ref, bi_ref, wo2_ref, bo2_ref, g2_ref, b2_ref,
                      clsw_ref, clsb_ref,
                      logits_ref, stats_ref):
    f32 = jnp.float32
    bf16 = jnp.bfloat16

    x = x_ref[...]                        # (BS, H) f32, BS = B*S
    att_bias = attb_ref[...]              # (BS, BS) f32: 0 = attend, -1e9 = pad / other example
    BS, H = x.shape
    dh = H // NUM_HEADS
    scale = 1.0 / math.sqrt(dh)

    # small per-feature params (stacked over layers) loaded once
    bq_all = bq_ref[...]; bk_all = bk_ref[...]; bv_all = bv_ref[...]; bo_all = bo_ref[...]
    g1_all = g1_ref[...]; b1_all = b1_ref[...]; g2_all = g2_ref[...]; b2_all = b2_ref[...]
    bi_all = bi_ref[...]; bo2_all = bo2_ref[...]

    for l in range(NUM_LAYERS):                            # static layer loop, weights stay in VMEM
        wq = wq_ref[l]; wk = wk_ref[l]; wv = wv_ref[l]; wo = wo_ref[l]     # (H, H) bf16
        wi = wi_ref[l]; wo2 = wo2_ref[l]                                   # bf16
        bq = bq_all[l:l + 1, :]; bk = bk_all[l:l + 1, :]
        bv = bv_all[l:l + 1, :]; bo = bo_all[l:l + 1, :]
        g1 = g1_all[l:l + 1, :]; b1 = b1_all[l:l + 1, :]
        g2 = g2_all[l:l + 1, :]; b2 = b2_all[l:l + 1, :]
        bi = bi_all[l:l + 1, :]; bo2 = bo2_all[l:l + 1, :]

        xb = x.astype(bf16)
        q = jnp.dot(xb, wq, preferred_element_type=f32) + bq               # (BS, H) f32
        k = jnp.dot(xb, wk, preferred_element_type=f32) + bk
        v = jnp.dot(xb, wv, preferred_element_type=f32) + bv
        q = q * scale                                                      # fold 1/sqrt(dh) into q
        kt = k.T                                                           # one (H, BS) transpose / layer

        attn = jnp.zeros((BS, H), f32)
        for h in range(NUM_HEADS):                                         # static head loop, batch folded in
            sl = slice(h * dh, (h + 1) * dh)
            qh = q[:, sl].astype(bf16)                                     # (BS, dh)
            kh_t = kt[sl, :].astype(bf16)                                  # (dh, BS)
            vh = v[:, sl].astype(bf16)                                     # (BS, dh)
            scores = jnp.dot(qh, kh_t, preferred_element_type=f32) + att_bias   # (BS, BS)
            probs = jax.nn.softmax(scores, axis=-1)                        # f32 VPU/EUP math
            ctx = jnp.dot(probs.astype(bf16), vh, preferred_element_type=f32)   # (BS, dh)
            # output projection folded into the head loop -> no lane-axis concatenate
            attn = attn + jnp.dot(ctx.astype(bf16), wo[sl, :], preferred_element_type=f32)
        attn = attn + bo

        h1 = _layer_norm(x + attn, g1, b1)
        ff = jnp.dot(h1.astype(bf16), wi, preferred_element_type=f32) + bi
        # TODO(synk): HF BERT default is the exact erf GELU; tanh approximation used here.
        ff = jax.nn.gelu(ff, approximate=True)
        ff = jnp.dot(ff.astype(bf16), wo2, preferred_element_type=f32) + bo2
        x = _layer_norm(h1 + ff, g2, b2)

    # ---- token classification head (padded to LP=128 classes -> lane-dense stores) ----
    logits = jnp.dot(x.astype(bf16), clsw_ref[...], preferred_element_type=f32) + clsb_ref[...]
    logits_ref[...] = logits                                               # (BS, LP)

    # ---- weighted / masked cross entropy (token loss per example + CLS "msr" loss) ----
    cw = cw_ref[...]                                                       # (1, LP), zeros past NUM_LABELS
    lane = jax.lax.broadcasted_iota(jnp.int32, (BS, LP), 1)
    lgt = jnp.where(lane < NUM_LABELS, logits, -1e30)                      # mask padded classes
    mx = jnp.max(lgt, axis=-1, keepdims=True)
    lse = mx + jnp.log(jnp.sum(jnp.exp(lgt - mx), axis=-1, keepdims=True))
    logp = lgt - lse                                                       # (BS, LP)

    labels = labels_ref[...]                                               # (BS, 1) i32
    lmask = lmask_ref[...]                                                 # (BS, 1) i32
    onehot = (lane == labels).astype(f32)                                  # -100 never matches a lane
    nll = -jnp.sum(onehot * logp, axis=-1, keepdims=True)                  # (BS, 1)
    w = jnp.sum(onehot * cw, axis=-1, keepdims=True)                       # (BS, 1)
    valid = jnp.logical_and(lmask == 1, labels != IGNORE_INDEX).astype(f32)

    # per-example weighted mean (torch CrossEntropyLoss semantics), then summed over batch
    exid = exid_ref[...]                                                   # (BS, 1) example id
    token_loss = jnp.zeros((1, 1), f32)
    for b in range(BATCH):                                                 # static, tiny
        in_b = (exid == b).astype(f32)
        num_b = jnp.sum(in_b * valid * w * nll, axis=0, keepdims=True)
        den_b = jnp.sum(in_b * valid * w, axis=0, keepdims=True)
        token_loss = token_loss + jnp.where(den_b > 0, num_b / den_b, 0.0)  # guard empty example

    # CLS ("msr") loss: msr_ref holds the label on CLS rows, IGNORE_INDEX elsewhere
    msr = msr_ref[...]                                                     # (BS, 1) i32
    oh_m = (lane == msr).astype(f32)
    nll_m = -jnp.sum(oh_m * logp, axis=-1, keepdims=True)
    w_m = jnp.sum(oh_m * cw, axis=-1, keepdims=True)
    vm = (msr != IGNORE_INDEX).astype(f32)
    num_m = jnp.sum(vm * w_m * nll_m, axis=0, keepdims=True)
    den_m = jnp.sum(vm * w_m, axis=0, keepdims=True)
    msr_loss = jnp.where(den_m > 0, num_m / den_m, 0.0)

    # lane-dense (8, 128) stats block: row 0 = token loss, row 1 = msr loss
    rowi = jax.lax.broadcasted_iota(jnp.int32, (8, 128), 0)
    stats_ref[...] = jnp.where(rowi == 0, token_loss,
                               jnp.where(rowi == 1, msr_loss, 0.0))


def _vmem():
    return pl.BlockSpec(memory_space=pltpu.MemorySpace.VMEM)


def _prep_weights(params):
    bf16 = jnp.bfloat16
    clsw_p = jnp.zeros((HIDDEN, LP), jnp.float32).at[:, :NUM_LABELS].set(params["cls_w"])
    clsb_p = jnp.zeros((1, LP), jnp.float32).at[0, :NUM_LABELS].set(params["cls_b"])
    return (
        params["wq"].astype(bf16), params["bq"],
        params["wk"].astype(bf16), params["bk"],
        params["wv"].astype(bf16), params["bv"],
        params["wo"].astype(bf16), params["bo"],
        params["ln1_g"], params["ln1_b"],
        params["wi"].astype(bf16), params["bi"],
        params["wo2"].astype(bf16), params["bo2"],
        params["ln2_g"], params["ln2_b"],
        clsw_p.astype(bf16), clsb_p,
    )


# ------------------------------ parameters (deterministic) ------------------------------
def init_params(key):
    def normal(k, shape, scale=0.02):
        return scale * jax.random.normal(k, shape, dtype=jnp.float32)

    keys = iter(jax.random.split(key, 32))
    return {
        "word_emb": normal(next(keys), (VOCAB, HIDDEN)),
        "pos_emb": normal(next(keys), (MAX_POS, HIDDEN)),
        "type_emb": normal(next(keys), (2, HIDDEN)),
        "emb_ln_g": jnp.ones((HIDDEN,), jnp.float32),
        "emb_ln_b": jnp.zeros((HIDDEN,), jnp.float32),
        "cls_w": normal(next(keys), (HIDDEN, NUM_LABELS)),
        "cls_b": jnp.zeros((NUM_LABELS,), jnp.float32),
        # stacked per-layer encoder weights (leading dim = layer)
        "wq": normal(next(keys), (NUM_LAYERS, HIDDEN, HIDDEN)),
        "bq": jnp.zeros((NUM_LAYERS, HIDDEN), jnp.float32),
        "wk": normal(next(keys), (NUM_LAYERS, HIDDEN, HIDDEN)),
        "bk": jnp.zeros((NUM_LAYERS, HIDDEN), jnp.float32),
        "wv": normal(next(keys), (NUM_LAYERS, HIDDEN, HIDDEN)),
        "bv": jnp.zeros((NUM_LAYERS, HIDDEN), jnp.float32),
        "wo": normal(next(keys), (NUM_LAYERS, HIDDEN, HIDDEN)),
        "bo": jnp.zeros((NUM_LAYERS, HIDDEN), jnp.float32),
        "ln1_g": jnp.ones((NUM_LAYERS, HIDDEN), jnp.float32),
        "ln1_b": jnp.zeros((NUM_LAYERS, HIDDEN), jnp.float32),
        "wi": normal(next(keys), (NUM_LAYERS, HIDDEN, INTERMEDIATE)),
        "bi": jnp.zeros((NUM_LAYERS, INTERMEDIATE), jnp.float32),
        "wo2": normal(next(keys), (NUM_LAYERS, INTERMEDIATE, HIDDEN)),
        "bo2": jnp.zeros((NUM_LAYERS, HIDDEN), jnp.float32),
        "ln2_g": jnp.ones((NUM_LAYERS, HIDDEN), jnp.float32),
        "ln2_b": jnp.zeros((NUM_LAYERS, HIDDEN), jnp.float32),
    }


# ------------------------------ full forward (seq2SeqBERTMC.forward) ------------------------------
def seq2seq_bert_mc_forward(params, input_ids, attention_mask, loss_mask,
                            offset_mapping=None, trigger_span=None,
                            labels=None, msr_labels=None, file_name=None):
    # offset_mapping / trigger_span / file_name are unused in the reference forward.
    B, S = input_ids.shape
    BS = B * S

    # Embeddings (gather + LayerNorm) -- glue in plain JAX.
    x = (params["word_emb"][input_ids]
         + params["pos_emb"][:S][None, :, :]
         + params["type_emb"][0][None, None, :])
    x = _layer_norm(x, params["emb_ln_g"], params["emb_ln_b"])
    x2 = x.reshape(BS, HIDDEN).astype(jnp.float32)

    # Additive attention bias: 0 where (same example AND key not padded), else -1e9.
    keep = attention_mask.reshape(BS).astype(jnp.float32) > 0
    ex = jnp.repeat(jnp.arange(B, dtype=jnp.int32), S)
    att_bias = jnp.where((ex[:, None] == ex[None, :]) & keep[None, :],
                         0.0, -1e9).astype(jnp.float32)

    labels2 = (labels.reshape(BS, 1).astype(jnp.int32) if labels is not None
               else jnp.full((BS, 1), IGNORE_INDEX, jnp.int32))
    lmask2 = (loss_mask.reshape(BS, 1).astype(jnp.int32) if loss_mask is not None
              else jnp.zeros((BS, 1), jnp.int32))
    msr_full = jnp.full((B, S), IGNORE_INDEX, jnp.int32)
    if msr_labels is not None:
        msr_full = msr_full.at[:, 0].set(msr_labels.astype(jnp.int32))
    msr2 = msr_full.reshape(BS, 1)
    exid2 = ex.reshape(BS, 1)

    cw = params.get("class_weights", jnp.ones((NUM_LABELS,), jnp.float32))
    cw_p = jnp.zeros((1, LP), jnp.float32).at[0, :NUM_LABELS].set(cw)

    wts = _prep_weights(params)
    n_in = 7 + len(wts)

    # TODO(synk): dropout before the classifier head is identity at inference; omitted.
    logits_p, stats = pl.pallas_call(
        fused_bert_kernel,
        out_shape=(jax.ShapeDtypeStruct((BS, LP), jnp.float32),
                   jax.ShapeDtypeStruct((8, 128), jnp.float32)),
        in_specs=[_vmem()] * n_in,
        out_specs=(_vmem(), _vmem()),
    )(x2, att_bias, labels2, lmask2, msr2, exid2, cw_p, *wts)

    logits = logits_p[:, :NUM_LABELS].reshape(B, S, NUM_LABELS)
    cls_logits = logits[:, 0, :]

    loss = None
    if labels is not None:
        loss = stats[0, 0]
        if msr_labels is not None:
            loss = loss + stats[1, 0]
    return {"loss": loss, "logits": logits, "msr_logits": cls_logits}


if __name__ == "__main__":
    params = init_params(jax.random.PRNGKey(42))
    # pos_weights passed to CrossEntropyLoss in __init__ (deterministic, synthetic)
    params["class_weights"] = jnp.array([1.0, 2.0, 0.5, 1.5, 1.0], jnp.float32)

    key = jax.random.PRNGKey(0)
    k_ids, k_lab, k_msr = jax.random.split(key, 3)
    input_ids = jax.random.randint(k_ids, (BATCH, SEQ), 0, VOCAB, dtype=jnp.int32)
    attention_mask = jnp.ones((BATCH, SEQ), jnp.int32).at[1, SEQ - 1].set(0)
    loss_mask = (jnp.ones((BATCH, SEQ), jnp.int32)
                 .at[:, 0].set(0)            # CLS excluded from the token loss
                 .at[1, SEQ - 1].set(0))     # padded token excluded
    labels = jax.random.randint(k_lab, (BATCH, SEQ), 0, NUM_LABELS, dtype=jnp.int32)
    labels = labels.at[0, 3].set(IGNORE_INDEX)   # exercise ignore_index=-100 semantics
    msr_labels = jax.random.randint(k_msr, (BATCH,), 0, NUM_LABELS, dtype=jnp.int32)

    out = seq2seq_bert_mc_forward(params, input_ids, attention_mask, loss_mask,
                                  labels=labels, msr_labels=msr_labels)
    jax.block_until_ready((out["loss"], out["logits"], out["msr_logits"]))
    print("KERNEL_OK")
</pallas_src>

<mosaic_0001>
module attributes {stable_mosaic.version = 11 : i64} {
  func.func @fused_bert_kernel(%arg0: memref<16x32xf32, #tpu.memory_space<vmem>>, %arg1: memref<16x16xf32, #tpu.memory_space<vmem>>, %arg2: memref<16x1xi32, #tpu.memory_space<vmem>>, %arg3: memref<16x1xi32, #tpu.memory_space<vmem>>, %arg4: memref<16x1xi32, #tpu.memory_space<vmem>>, %arg5: memref<16x1xi32, #tpu.memory_space<vmem>>, %arg6: memref<1x128xf32, #tpu.memory_space<vmem>>, %arg7: memref<2x32x32xbf16, #tpu.memory_space<vmem>>, %arg8: memref<2x32xf32, #tpu.memory_space<vmem>>, %arg9: memref<2x32x32xbf16, #tpu.memory_space<vmem>>, %arg10: memref<2x32xf32, #tpu.memory_space<vmem>>, %arg11: memref<2x32x32xbf16, #tpu.memory_space<vmem>>, %arg12: memref<2x32xf32, #tpu.memory_space<vmem>>, %arg13: memref<2x32x32xbf16, #tpu.memory_space<vmem>>, %arg14: memref<2x32xf32, #tpu.memory_space<vmem>>, %arg15: memref<2x32xf32, #tpu.memory_space<vmem>>, %arg16: memref<2x32xf32, #tpu.memory_space<vmem>>, %arg17: memref<2x32x64xbf16, #tpu.memory_space<vmem>>, %arg18: memref<2x64xf32, #tpu.memory_space<vmem>>, %arg19: memref<2x64x32xbf16, #tpu.memory_space<vmem>>, %arg20: memref<2x32xf32, #tpu.memory_space<vmem>>, %arg21: memref<2x32xf32, #tpu.memory_space<vmem>>, %arg22: memref<2x32xf32, #tpu.memory_space<vmem>>, %arg23: memref<32x128xbf16, #tpu.memory_space<vmem>>, %arg24: memref<1x128xf32, #tpu.memory_space<vmem>>, %arg25: memref<16x128xf32, #tpu.memory_space<vmem>>, %arg26: memref<8x128xf32, #tpu.memory_space<vmem>>) attributes {dimension_semantics = [], scalar_prefetch = 0 : i64, scratch_operands = 0 : i64, tpu.core_type = #tpu.core_type<tc>} {
    %c0 = arith.constant 0 : index
    %c0_0 = arith.constant 0 : index
    %0 = vector.load %arg0[%c0, %c0_0] : memref<16x32xf32, #tpu.memory_space<vmem>>, vector<16x32xf32>
    %c0_1 = arith.constant 0 : index
    %c0_2 = arith.constant 0 : index
    %1 = vector.load %arg1[%c0_1, %c0_2] : memref<16x16xf32, #tpu.memory_space<vmem>>, vector<16x16xf32>
    %c0_3 = arith.constant 0 : index
    %c0_4 = arith.constant 0 : index
    %2 = vector.load %arg8[%c0_3, %c0_4] : memref<2x32xf32, #tpu.memory_space<vmem>>, vector<2x32xf32>
    %c0_5 = arith.constant 0 : index
    %c0_6 = arith.constant 0 : index
    %3 = vector.load %arg10[%c0_5, %c0_6] : memref<2x32xf32, #tpu.memory_space<vmem>>, vector<2x32xf32>
    %c0_7 = arith.constant 0 : index
    %c0_8 = arith.constant 0 : index
    %4 = vector.load %arg12[%c0_7, %c0_8] : memref<2x32xf32, #tpu.memory_space<vmem>>, vector<2x32xf32>
    %c0_9 = arith.constant 0 : index
    %c0_10 = arith.constant 0 : index
    %5 = vector.load %arg14[%c0_9, %c0_10] : memref<2x32xf32, #tpu.memory_space<vmem>>, vector<2x32xf32>
    %c0_11 = arith.constant 0 : index
    %c0_12 = arith.constant 0 : index
    %6 = vector.load %arg15[%c0_11, %c0_12] : memref<2x32xf32, #tpu.memory_space<vmem>>, vector<2x32xf32>
    %c0_13 = arith.constant 0 : index
    %c0_14 = arith.constant 0 : index
    %7 = vector.load %arg16[%c0_13, %c0_14] : memref<2x32xf32, #tpu.memory_space<vmem>>, vector<2x32xf32>
    %c0_15 = arith.constant 0 : index
    %c0_16 = arith.constant 0 : index
    %8 = vector.load %arg21[%c0_15, %c0_16] : memref<2x32xf32, #tpu.memory_space<vmem>>, vector<2x32xf32>
    %c0_17 = arith.constant 0 : index
    %c0_18 = arith.constant 0 : index
    %9 = vector.load %arg22[%c0_17, %c0_18] : memref<2x32xf32, #tpu.memory_space<vmem>>, vector<2x32xf32>
    %c0_19 = arith.constant 0 : index
    %c0_20 = arith.constant 0 : index
    %10 = vector.load %arg18[%c0_19, %c0_20] : memref<2x64xf32, #tpu.memory_space<vmem>>, vector<2x64xf32>
    %c0_21 = arith.constant 0 : index
    %c0_22 = arith.constant 0 : index
    %11 = vector.load %arg20[%c0_21, %c0_22] : memref<2x32xf32, #tpu.memory_space<vmem>>, vector<2x32xf32>
    %c0_23 = arith.constant 0 : index
    %c0_24 = arith.constant 0 : index
    %c0_25 = arith.constant 0 : index
    %12 = vector.load %arg7[%c0_23, %c0_24, %c0_25] : memref<2x32x32xbf16, #tpu.memory_space<vmem>>, vector<1x32x32xbf16>
    %13 = vector.shape_cast %12 : vector<1x32x32xbf16> to vector<32x32xbf16>
    %c0_26 = arith.constant 0 : index
    %c0_27 = arith.constant 0 : index
    %c0_28 = arith.constant 0 : index
    %14 = vector.load %arg9[%c0_26, %c0_27, %c0_28] : memref<2x32x32xbf16, #tpu.memory_space<vmem>>, vector<1x32x32xbf16>
    %15 = vector.shape_cast %14 : vector<1x32x32xbf16> to vector<32x32xbf16>
    %c0_29 = arith.constant 0 : index
    %c0_30 = arith.constant 0 : index
    %c0_31 = arith.constant 0 : index
    %16 = vector.load %arg11[%c0_29, %c0_30, %c0_31] : memref<2x32x32xbf16, #tpu.memory_space<vmem>>, vector<1x32x32xbf16>
    %17 = vector.shape_cast %16 : vector<1x32x32xbf16> to vector<32x32xbf16>
    %c0_32 = arith.constant 0 : index
    %c0_33 = arith.constant 0 : index
    %c0_34 = arith.constant 0 : index
    %18 = vector.load %arg13[%c0_32, %c0_33, %c0_34] : memref<2x32x32xbf16, #tpu.memory_space<vmem>>, vector<1x32x32xbf16>
    %19 = vector.shape_cast %18 : vector<1x32x32xbf16> to vector<32x32xbf16>
    %c0_35 = arith.constant 0 : index
    %c0_36 = arith.constant 0 : index
    %c0_37 = arith.constant 0 : index
    %20 = vector.load %arg17[%c0_35, %c0_36, %c0_37] : memref<2x32x64xbf16, #tpu.memory_space<vmem>>, vector<1x32x64xbf16>
    %21 = vector.shape_cast %20 : vector<1x32x64xbf16> to vector<32x64xbf16>
    %c0_38 = arith.constant 0 : index
    %c0_39 = arith.constant 0 : index
    %c0_40 = arith.constant 0 : index
    %22 = vector.load %arg19[%c0_38, %c0_39, %c0_40] : memref<2x64x32xbf16, #tpu.memory_space<vmem>>, vector<1x64x32xbf16>
    %23 = vector.shape_cast %22 : vector<1x64x32xbf16> to vector<64x32xbf16>
    %24 = vector.extract_strided_slice %2 {offsets = [0, 0], sizes = [1, 32], strides = [1, 1]} : vector<2x32xf32> to vector<1x32xf32>
    %25 = vector.extract_strided_slice %3 {offsets = [0, 0], sizes = [1, 32], strides = [1, 1]} : vector<2x32xf32> to vector<1x32xf32>
    %26 = vector.extract_strided_slice %4 {offsets = [0, 0], sizes = [1, 32], strides = [1, 1]} : vector<2x32xf32> to vector<1x32xf32>
    %27 = vector.extract_strided_slice %5 {offsets = [0, 0], sizes = [1, 32], strides = [1, 1]} : vector<2x32xf32> to vector<1x32xf32>
    %28 = vector.extract_strided_slice %6 {offsets = [0, 0], sizes = [1, 32], strides = [1, 1]} : vector<2x32xf32> to vector<1x32xf32>
    %29 = vector.extract_strided_slice %7 {offsets = [0, 0], sizes = [1, 32], strides = [1, 1]} : vector<2x32xf32> to vector<1x32xf32>
    %30 = vector.extract_strided_slice %8 {offsets = [0, 0], sizes = [1, 32], strides = [1, 1]} : vector<2x32xf32> to vector<1x32xf32>
    %31 = vector.extract_strided_slice %9 {offsets = [0, 0], sizes = [1, 32], strides = [1, 1]} : vector<2x32xf32> to vector<1x32xf32>
    %32 = vector.extract_strided_slice %10 {offsets = [0, 0], sizes = [1, 64], strides = [1, 1]} : vector<2x64xf32> to vector<1x64xf32>
    %33 = vector.extract_strided_slice %11 {offsets = [0, 0], sizes = [1, 32], strides = [1, 1]} : vector<2x32xf32> to vector<1x32xf32>
    %34 = arith.truncf %0 : vector<16x32xf32> to vector<16x32xbf16>
    %cst = arith.constant dense<0.000000e+00> : vector<16x32xf32>
    %35 = tpu.matmul %34, %13, %cst {dimension_numbers = #tpu.dot_dimension_numbers<[1], [0], [0], [1], [0, 0, 1, 1], [], []>} : vector<16x32xbf16>, vector<32x32xbf16>, vector<16x32xf32> -> vector<16x32xf32>
    %36 = vector.broadcast %24 : vector<1x32xf32> to vector<16x32xf32>
    %37 = arith.addf %35, %36 : vector<16x32xf32>
    %cst_41 = arith.constant dense<0.000000e+00> : vector<16x32xf32>
    %38 = tpu.matmul %34, %15, %cst_41 {dimension_numbers = #tpu.dot_dimension_numbers<[1], [0], [0], [1], [0, 0, 1, 1], [], []>} : vector<16x32xbf16>, vector<32x32xbf16>, vector<16x32xf32> -> vector<16x32xf32>
    %39 = vector.broadcast %25 : vector<1x32xf32> to vector<16x32xf32>
    %40 = arith.addf %38, %39 : vector<16x32xf32>
    %cst_42 = arith.constant dense<0.000000e+00> : vector<16x32xf32>
    %41 = tpu.matmul %34, %17, %cst_42 {dimension_numbers = #tpu.dot_dimension_numbers<[1], [0], [0], [1], [0, 0, 1, 1], [], []>} : vector<16x32xbf16>, vector<32x32xbf16>, vector<16x32xf32> -> vector<16x32xf32>
    %42 = vector.broadcast %26 : vector<1x32xf32> to vector<16x32xf32>
    %43 = arith.addf %41, %42 : vector<16x32xf32>
    %cst_43 = arith.constant 0.353553385 : f32
    %44 = vector.broadcast %cst_43 : f32 to vector<16x32xf32>
    %45 = arith.mulf %37, %44 : vector<16x32xf32>
    %46 = tpu.transpose %40, [1, 0] : vector<16x32xf32> -> vector<32x16xf32>
    %cst_44 = arith.constant 0.000000e+00 : f32
    %47 = vector.broadcast %cst_44 : f32 to vector<16x32xf32>
    %48 = vector.extract_strided_slice %45 {offsets = [0, 0], sizes = [16, 8], strides = [1, 1]} : vector<16x32xf32> to vector<16x8xf32>
    %49 = arith.truncf %48 : vector<16x8xf32> to vector<16x8xbf16>
    %50 = vector.extract_strided_slice %46 {offsets = [0, 0], sizes = [8, 16], strides = [1, 1]} : vector<32x16xf32> to vector<8x16xf32>
    %51 = arith.truncf %50 : vector<8x16xf32> to vector<8x16xbf16>
    %52 = vector.extract_strided_slice %43 {offsets = [0, 0], sizes = [16, 8], strides = [1, 1]} : vector<16x32xf32> to vector<16x8xf32>
    %53 = arith.truncf %52 : vector<16x8xf32> to vector<16x8xbf16>
    %cst_45 = arith.constant dense<0.000000e+00> : vector<16x16xf32>
    %54 = tpu.matmul %49, %51, %cst_45 {dimension_numbers = #tpu.dot_dimension_numbers<[1], [0], [0], [1], [0, 0, 1, 1], [], []>} : vector<16x8xbf16>, vector<8x16xbf16>, vector<16x16xf32> -> vector<16x16xf32>
    %55 = arith.addf %54, %1 : vector<16x16xf32>
    %cst_46 = arith.constant dense<0xFF800000> : vector<16xf32>
    %56 = vector.multi_reduction <maximumf>, %55, %cst_46 [1] : vector<16x16xf32> to vector<16xf32>
    %cst_47 = arith.constant 0xFF800000 : f32
    %57 = vector.broadcast %cst_47 : f32 to vector<16xf32>
    %58 = arith.maximumf %57, %56 : vector<16xf32>
    %59 = vector.shape_cast %58 : vector<16xf32> to vector<16x1xf32>
    %60 = vector.broadcast %59 : vector<16x1xf32> to vector<16x16xf32>
    %61 = arith.subf %55, %60 : vector<16x16xf32>
    %62 = math.exp %61 : vector<16x16xf32>
    %cst_48 = arith.constant dense<0.000000e+00> : vector<16xf32>
    %63 = vector.multi_reduction <add>, %62, %cst_48 [1] : vector<16x16xf32> to vector<16xf32>
    %64 = vector.shape_cast %63 : vector<16xf32> to vector<16x1xf32>
    %65 = vector.broadcast %64 : vector<16x1xf32> to vector<16x16xf32>
    %66 = arith.divf %62, %65 : vector<16x16xf32>
    %67 = arith.truncf %66 : vector<16x16xf32> to vector<16x16xbf16>
    %cst_49 = arith.constant dense<0.000000e+00> : vector<16x8xf32>
    %68 = tpu.matmul %67, %53, %cst_49 {dimension_numbers = #tpu.dot_dimension_numbers<[1], [0], [0], [1], [0, 0, 1, 1], [], []>} : vector<16x16xbf16>, vector<16x8xbf16>, vector<16x8xf32> -> vector<16x8xf32>
    %69 = arith.truncf %68 : vector<16x8xf32> to vector<16x8xbf16>
    %70 = vector.extract_strided_slice %19 {offsets = [0, 0], sizes = [8, 32], strides = [1, 1]} : vector<32x32xbf16> to vector<8x32xbf16>
    %cst_50 = arith.constant dense<0.000000e+00> : vector<16x32xf32>
    %71 = tpu.matmul %69, %70, %cst_50 {dimension_numbers = #tpu.dot_dimension_numbers<[1], [0], [0], [1], [0, 0, 1, 1], [], []>} : vector<16x8xbf16>, vector<8x32xbf16>, vector<16x32xf32> -> vector<16x32xf32>
    %72 = arith.addf %47, %71 : vector<16x32xf32>
    %73 = vector.extract_strided_slice %45 {offsets = [0, 8], sizes = [16, 8], strides = [1, 1]} : vector<16x32xf32> to vector<16x8xf32>
    %74 = arith.truncf %73 : vector<16x8xf32> to vector<16x8xbf16>
    %75 = vector.extract_strided_slice %46 {offsets = [8, 0], sizes = [8, 16], strides = [1, 1]} : vector<32x16xf32> to vector<8x16xf32>
    %76 = arith.truncf %75 : vector<8x16xf32> to vector<8x16xbf16>
    %77 = vector.extract_strided_slice %43 {offsets = [0, 8], sizes = [16, 8], strides = [1, 1]} : vector<16x32xf32> to vector<16x8xf32>
    %78 = arith.truncf %77 : vector<16x8xf32> to vector<16x8xbf16>
    %cst_51 = arith.constant dense<0.000000e+00> : vector<16x16xf32>
    %79 = tpu.matmul %74, %76, %cst_51 {dimension_numbers = #tpu.dot_dimension_numbers<[1], [0], [0], [1], [0, 0, 1, 1], [], []>} : vector<16x8xbf16>, vector<8x16xbf16>, vector<16x16xf32> -> vector<16x16xf32>
    %80 = arith.addf %79, %1 : vector<16x16xf32>
    %cst_52 = arith.constant dense<0xFF800000> : vector<16xf32>
    %81 = vector.multi_reduction <maximumf>, %80, %cst_52 [1] : vector<16x16xf32> to vector<16xf32>
    %cst_53 = arith.constant 0xFF800000 : f32
    %82 = vector.broadcast %cst_53 : f32 to vector<16xf32>
    %83 = arith.maximumf %82, %81 : vector<16xf32>
    %84 = vector.shape_cast %83 : vector<16xf32> to vector<16x1xf32>
    %85 = vector.broadcast %84 : vector<16x1xf32> to vector<16x16xf32>
    %86 = arith.subf %80, %85 : vector<16x16xf32>
    %87 = math.exp %86 : vector<16x16xf32>
    %cst_54 = arith.constant dense<0.000000e+00> : vector<16xf32>
    %88 = vector.multi_reduction <add>, %87, %cst_54 [1] : vector<16x16xf32> to vector<16xf32>
    %89 = vector.shape_cast %88 : vector<16xf32> to vector<16x1xf32>
    %90 = vector.broadcast %89 : vector<16x1xf32> to vector<16x16xf32>
    %91 = arith.divf %87, %90 : vector<16x16xf32>
    %92 = arith.truncf %91 : vector<16x16xf32> to vector<16x16xbf16>
    %cst_55 = arith.constant dense<0.000000e+00> : vector<16x8xf32>
    %93 = tpu.matmul %92, %78, %cst_55 {dimension_numbers = #tpu.dot_dimension_numbers<[1], [0], [0], [1], [0, 0, 1, 1], [], []>} : vector<16x16xbf16>, vector<16x8xbf16>, vector<16x8xf32> -> vector<16x8xf32>
    %94 = arith.truncf %93 : vector<16x8xf32> to vector<16x8xbf16>
    %95 = vector.extract_strided_slice %19 {offsets = [8, 0], sizes = [8, 32], strides = [1, 1]} : vector<32x32xbf16> to vector<8x32xbf16>
    %cst_56 = arith.constant dense<0.000000e+00> : vector<16x32xf32>
    %96 = tpu.matmul %94, %95, %cst_56 {dimension_numbers = #tpu.dot_dimension_numbers<[1], [0], [0], [1], [0, 0, 1, 1], [], []>} : vector<16x8xbf16>, vector<8x32xbf16>, vector<16x32xf32> -> vector<16x32xf32>
    %97 = arith.addf %72, %96 : vector<16x32xf32>
    %98 = vector.extract_strided_slice %45 {offsets = [0, 16], sizes = [16, 8], strides = [1, 1]} : vector<16x32xf32> to vector<16x8xf32>
    %99 = arith.truncf %98 : vector<16x8xf32> to vector<16x8xbf16>
    %100 = vector.extract_strided_slice %46 {offsets = [16, 0], sizes = [8, 16], strides = [1, 1]} : vector<32x16xf32> to vector<8x16xf32>
    %101 = arith.truncf %100 : vector<8x16xf32> to vector<8x16xbf16>
    %102 = vector.extract_strided_slice %43 {offsets = [0, 16], sizes = [16, 8], strides = [1, 1]} : vector<16x32xf32> to vector<16x8xf32>
    %103 = arith.truncf %102 : vector<16x8xf32> to vector<16x8xbf16>
    %cst_57 = arith.constant dense<0.000000e+00> : vector<16x16xf32>
    %104 = tpu.matmul %99, %101, %cst_57 {dimension_numbers = #tpu.dot_dimension_numbers<[1], [0], [0], [1], [0, 0, 1, 1], [], []>} : vector<16x8xbf16>, vector<8x16xbf16>, vector<16x16xf32> -> vector<16x16xf32>
    %105 = arith.addf %104, %1 : vector<16x16xf32>
    %cst_58 = arith.constant dense<0xFF800000> : vector<16xf32>
    %106 = vector.multi_reduction <maximumf>, %105, %cst_58 [1] : vector<16x16xf32> to vector<16xf32>
    %cst_59 = arith.constant 0xFF800000 : f32
    %107 = vector.broadcast %cst_59 : f32 to vector<16xf32>
    %108 = arith.maximumf %107, %106 : vector<16xf32>
    %109 = vector.shape_cast %108 : vector<16xf32> to vector<16x1xf32>
    %110 = vector.broadcast %109 : vector<16x1xf32> to vector<16x16xf32>
    %111 = arith.subf %105, %110 : vector<16x16xf32>
    %112 = math.exp %111 : vector<16x16xf32>
    %cst_60 = arith.constant dense<0.000000e+00> : vector<16xf32>
    %113 = vector.multi_reduction <add>, %112, %cst_60 [1] : vector<16x16xf32> to vector<16xf32>
    %114 = vector.shape_cast %113 : vector<16xf32> to vector<16x1xf32>
    %115 = vector.broadcast %114 : vector<16x1xf32> to vector<16x16xf32>
    %116 = arith.divf %112, %115 : vector<16x16xf32>
    %117 = arith.truncf %116 : vector<16x16xf32> to vector<16x16xbf16>
    %cst_61 = arith.constant dense<0.000000e+00> : vector<16x8xf32>
    %118 = tpu.matmul %117, %103, %cst_61 {dimension_numbers = #tpu.dot_dimension_numbers<[1], [0], [0], [1], [0, 0, 1, 1], [], []>} : vector<16x16xbf16>, vector<16x8xbf16>, vector<16x8xf32> -> vector<16x8xf32>
    %119 = arith.truncf %118 : vector<16x8xf32> to vector<16x8xbf16>
    %120 = vector.extract_strided_slice %19 {offsets = [16, 0], sizes = [8, 32], strides = [1, 1]} : vector<32x32xbf16> to vector<8x32xbf16>
    %cst_62 = arith.constant dense<0.000000e+00> : vector<16x32xf32>
    %121 = tpu.matmul %119, %120, %cst_62 {dimension_numbers = #tpu.dot_dimension_numbers<[1], [0], [0], [1], [0, 0, 1, 1], [], []>} : vector<16x8xbf16>, vector<8x32xbf16>, vector<16x32xf32> -> vector<16x32xf32>
    %122 = arith.addf %97, %121 : vector<16x32xf32>
    %123 = vector.extract_strided_slice %45 {offsets = [0, 24], sizes = [16, 8], strides = [1, 1]} : vector<16x32xf32> to vector<16x8xf32>
    %124 = arith.truncf %123 : vector<16x8xf32> to vector<16x8xbf16>
    %125 = vector.extract_strided_slice %46 {offsets = [24, 0], sizes = [8, 16], strides = [1, 1]} : vector<32x16xf32> to vector<8x16xf32>
    %126 = arith.truncf %125 : vector<8x16xf32> to vector<8x16xbf16>
    %127 = vector.extract_strided_slice %43 {offsets = [0, 24], sizes = [16, 8], strides = [1, 1]} : vector<16x32xf32> to vector<16x8xf32>
    %128 = arith.truncf %127 : vector<16x8xf32> to vector<16x8xbf16>
    %cst_63 = arith.constant dense<0.000000e+00> : vector<16x16xf32>
    %129 = tpu.matmul %124, %126, %cst_63 {dimension_numbers = #tpu.dot_dimension_numbers<[1], [0], [0], [1], [0, 0, 1, 1], [], []>} : vector<16x8xbf16>, vector<8x16xbf16>, vector<16x16xf32> -> vector<16x16xf32>
    %130 = arith.addf %129, %1 : vector<16x16xf32>
    %cst_64 = arith.constant dense<0xFF800000> : vector<16xf32>
    %131 = vector.multi_reduction <maximumf>, %130, %cst_64 [1] : vector<16x16xf32> to vector<16xf32>
    %cst_65 = arith.constant 0xFF800000 : f32
    %132 = vector.broadcast %cst_65 : f32 to vector<16xf32>
    %133 = arith.maximumf %132, %131 : vector<16xf32>
    %134 = vector.shape_cast %133 : vector<16xf32> to vector<16x1xf32>
    %135 = vector.broadcast %134 : vector<16x1xf32> to vector<16x16xf32>
    %136 = arith.subf %130, %135 : vector<16x16xf32>
    %137 = math.exp %136 : vector<16x16xf32>
    %cst_66 = arith.constant dense<0.000000e+00> : vector<16xf32>
    %138 = vector.multi_reduction <add>, %137, %cst_66 [1] : vector<16x16xf32> to vector<16xf32>
    %139 = vector.shape_cast %138 : vector<16xf32> to vector<16x1xf32>
    %140 = vector.broadcast %139 : vector<16x1xf32> to vector<16x16xf32>
    %141 = arith.divf %137, %140 : vector<16x16xf32>
    %142 = arith.truncf %141 : vector<16x16xf32> to vector<16x16xbf16>
    %cst_67 = arith.constant dense<0.000000e+00> : vector<16x8xf32>
    %143 = tpu.matmul %142, %128, %cst_67 {dimension_numbers = #tpu.dot_dimension_numbers<[1], [0], [0], [1], [0, 0, 1, 1], [], []>} : vector<16x16xbf16>, vector<16x8xbf16>, vector<16x8xf32> -> vector<16x8xf32>
    %144 = arith.truncf %143 : vector<16x8xf32> to vector<16x8xbf16>
    %145 = vector.extract_strided_slice %19 {offsets = [24, 0], sizes = [8, 32], strides = [1, 1]} : vector<32x32xbf16> to vector<8x32xbf16>
    %cst_68 = arith.constant dense<0.000000e+00> : vector<16x32xf32>
    %146 = tpu.matmul %144, %145, %cst_68 {dimension_numbers = #tpu.dot_dimension_numbers<[1], [0], [0], [1], [0, 0, 1, 1], [], []>} : vector<16x8xbf16>, vector<8x32xbf16>, vector<16x32xf32> -> vector<16x32xf32>
    %147 = arith.addf %122, %146 : vector<16x32xf32>
    %148 = vector.broadcast %27 : vector<1x32xf32> to vector<16x32xf32>
    %149 = arith.addf %147, %148 : vector<16x32xf32>
    %150 = arith.addf %0, %149 : vector<16x32xf32>
    %cst_69 = arith.constant dense<0.000000e+00> : vector<16xf32>
    %151 = vector.multi_reduction <add>, %150, %cst_69 [1] : vector<16x32xf32> to vector<16xf32>
    %152 = vector.shape_cast %151 : vector<16xf32> to vector<16x1xf32>
    %cst_70 = arith.constant 3.200000e+01 : f32
    %153 = vector.broadcast %cst_70 : f32 to vector<16x1xf32>
    %154 = arith.divf %152, %153 : vector<16x1xf32>
    %155 = vector.broadcast %154 : vector<16x1xf32> to vector<16x32xf32>
    %156 = arith.subf %150, %155 : vector<16x32xf32>
    %157 = arith.mulf %156, %156 : vector<16x32xf32>
    %cst_71 = arith.constant dense<0.000000e+00> : vector<16xf32>
    %158 = vector.multi_reduction <add>, %157, %cst_71 [1] : vector<16x32xf32> to vector<16xf32>
    %159 = vector.shape_cast %158 : vector<16xf32> to vector<16x1xf32>
    %cst_72 = arith.constant 3.200000e+01 : f32
    %160 = vector.broadcast %cst_72 : f32 to vector<16x1xf32>
    %161 = arith.divf %159, %160 : vector<16x1xf32>
    %162 = vector.broadcast %154 : vector<16x1xf32> to vector<16x32xf32>
    %163 = arith.subf %150, %162 : vector<16x32xf32>
    %cst_73 = arith.constant 9.99999996E-13 : f32
    %164 = vector.broadcast %cst_73 : f32 to vector<16x1xf32>
    %165 = arith.addf %161, %164 : vector<16x1xf32>
    %166 = math.rsqrt %165 : vector<16x1xf32>
    %167 = vector.broadcast %166 : vector<16x1xf32> to vector<16x32xf32>
    %168 = arith.mulf %163, %167 : vector<16x32xf32>
    %169 = vector.broadcast %28 : vector<1x32xf32> to vector<16x32xf32>
    %170 = arith.mulf %168, %169 : vector<16x32xf32>
    %171 = vector.broadcast %29 : vector<1x32xf32> to vector<16x32xf32>
    %172 = arith.addf %170, %171 : vector<16x32xf32>
    %173 = arith.truncf %172 : vector<16x32xf32> to vector<16x32xbf16>
    %cst_74 = arith.constant dense<0.000000e+00> : vector<16x64xf32>
    %174 = tpu.matmul %173, %21, %cst_74 {dimension_numbers = #tpu.dot_dimension_numbers<[1], [0], [0], [1], [0, 0, 1, 1], [], []>} : vector<16x32xbf16>, vector<32x64xbf16>, vector<16x64xf32> -> vector<16x64xf32>
    %175 = vector.broadcast %32 : vector<1x64xf32> to vector<16x64xf32>
    %176 = arith.addf %174, %175 : vector<16x64xf32>
    %177 = arith.mulf %176, %176 : vector<16x64xf32>
    %178 = arith.mulf %176, %177 : vector<16x64xf32>
    %cst_75 = arith.constant 4.471500e-02 : f32
    %179 = vector.broadcast %cst_75 : f32 to vector<16x64xf32>
    %180 = arith.mulf %179, %178 : vector<16x64xf32>
    %181 = arith.addf %176, %180 : vector<16x64xf32>
    %cst_76 = arith.constant 0.797884583 : f32
    %182 = vector.broadcast %cst_76 : f32 to vector<16x64xf32>
    %183 = arith.mulf %182, %181 : vector<16x64xf32>
    %184 = math.tanh %183 : vector<16x64xf32>
    %cst_77 = arith.constant 1.000000e+00 : f32
    %185 = vector.broadcast %cst_77 : f32 to vector<16x64xf32>
    %186 = arith.addf %185, %184 : vector<16x64xf32>
    %cst_78 = arith.constant 5.000000e-01 : f32
    %187 = vector.broadcast %cst_78 : f32 to vector<16x64xf32>
    %188 = arith.mulf %187, %186 : vector<16x64xf32>
    %189 = arith.mulf %176, %188 : vector<16x64xf32>
    %190 = arith.truncf %189 : vector<16x64xf32> to vector<16x64xbf16>
    %cst_79 = arith.constant dense<0.000000e+00> : vector<16x32xf32>
    %191 = tpu.matmul %190, %23, %cst_79 {dimension_numbers = #tpu.dot_dimension_numbers<[1], [0], [0], [1], [0, 0, 1, 1], [], []>} : vector<16x64xbf16>, vector<64x32xbf16>, vector<16x32xf32> -> vector<16x32xf32>
    %192 = vector.broadcast %33 : vector<1x32xf32> to vector<16x32xf32>
    %193 = arith.addf %191, %192 : vector<16x32xf32>
    %194 = arith.addf %172, %193 : vector<16x32xf32>
    %cst_80 = arith.constant dense<0.000000e+00> : vector<16xf32>
    %195 = vector.multi_reduction <add>, %194, %cst_80 [1] : vector<16x32xf32> to vector<16xf32>
    %196 = vector.shape_cast %195 : vector<16xf32> to vector<16x1xf32>
    %cst_81 = arith.constant 3.200000e+01 : f32
    %197 = vector.broadcast %cst_81 : f32 to vector<16x1xf32>
    %198 = arith.divf %196, %197 : vector<16x1xf32>
    %199 = vector.broadcast %198 : vector<16x1xf32> to vector<16x32xf32>
    %200 = arith.subf %194, %199 : vector<16x32xf32>
    %201 = arith.mulf %200, %200 : vector<16x32xf32>
    %cst_82 = arith.constant dense<0.000000e+00> : vector<16xf32>
    %202 = vector.multi_reduction <add>, %201, %cst_82 [1] : vector<16x32xf32> to vector<16xf32>
    %203 = vector.shape_cast %202 : vector<16xf32> to vector<16x1xf32>
    %cst_83 = arith.constant 3.200000e+01 : f32
    %204 = vector.broadcast %cst_83 : f32 to vector<16x1xf32>
    %205 = arith.divf %203, %204 : vector<16x1xf32>
    %206 = vector.broadcast %198 : vector<16x1xf32> to vector<16x32xf32>
    %207 = arith.subf %194, %206 : vector<16x32xf32>
    %cst_84 = arith.constant 9.99999996E-13 : f32
    %208 = vector.broadcast %cst_84 : f32 to vector<16x1xf32>
    %209 = arith.addf %205, %208 : vector<16x1xf32>
    %210 = math.rsqrt %209 : vector<16x1xf32>
    %211 = vector.broadcast %210 : vector<16x1xf32> to vector<16x32xf32>
    %212 = arith.mulf %207, %211 : vector<16x32xf32>
    %213 = vector.broadcast %30 : vector<1x32xf32> to vector<16x32xf32>
    %214 = arith.mulf %212, %213 : vector<16x32xf32>
    %215 = vector.broadcast %31 : vector<1x32xf32> to vector<16x32xf32>
    %216 = arith.addf %214, %215 : vector<16x32xf32>
    %c1 = arith.constant 1 : index
    %c0_85 = arith.constant 0 : index
    %c0_86 = arith.constant 0 : index
    %217 = vector.load %arg7[%c1, %c0_85, %c0_86] : memref<2x32x32xbf16, #tpu.memory_space<vmem>>, vector<1x32x32xbf16>
    %218 = vector.shape_cast %217 : vector<1x32x32xbf16> to vector<32x32xbf16>
    %c1_87 = arith.constant 1 : index
    %c0_88 = arith.constant 0 : index
    %c0_89 = arith.constant 0 : index
    %219 = vector.load %arg9[%c1_87, %c0_88, %c0_89] : memref<2x32x32xbf16, #tpu.memory_space<vmem>>, vector<1x32x32xbf16>
    %220 = vector.shape_cast %219 : vector<1x32x32xbf16> to vector<32x32xbf16>
    %c1_90 = arith.constant 1 : index
    %c0_91 = arith.constant 0 : index
    %c0_92 = arith.constant 0 : index
    %221 = vector.load %arg11[%c1_90, %c0_91, %c0_92] : memref<2x32x32xbf16, #tpu.memory_space<vmem>>, vector<1x32x32xbf16>
    %222 = vector.shape_cast %221 : vector<1x32x32xbf16> to vector<32x32xbf16>
    %c1_93 = arith.constant 1 : index
    %c0_94 = arith.constant 0 : index
    %c0_95 = arith.constant 0 : index
    %223 = vector.load %arg13[%c1_93, %c0_94, %c0_95] : memref<2x32x32xbf16, #tpu.memory_space<vmem>>, vector<1x32x32xbf16>
    %224 = vector.shape_cast %223 : vector<1x32x32xbf16> to vector<32x32xbf16>
    %c1_96 = arith.constant 1 : index
    %c0_97 = arith.constant 0 : index
    %c0_98 = arith.constant 0 : index
    %225 = vector.load %arg17[%c1_96, %c0_97, %c0_98] : memref<2x32x64xbf16, #tpu.memory_space<vmem>>, vector<1x32x64xbf16>
    %226 = vector.shape_cast %225 : vector<1x32x64xbf16> to vector<32x64xbf16>
    %c1_99 = arith.constant 1 : index
    %c0_100 = arith.constant 0 : index
    %c0_101 = arith.constant 0 : index
    %227 = vector.load %arg19[%c1_99, %c0_100, %c0_101] : memref<2x64x32xbf16, #tpu.memory_space<vmem>>, vector<1x64x32xbf16>
    %228 = vector.shape_cast %227 : vector<1x64x32xbf16> to vector<64x32xbf16>
    %229 = vector.extract_strided_slice %2 {offsets = [1, 0], sizes = [1, 32], strides = [1, 1]} : vector<2x32xf32> to vector<1x32xf32>
    %230 = vector.extract_strided_slice %3 {offsets = [1, 0], sizes = [1, 32], strides = [1, 1]} : vector<2x32xf32> to vector<1x32xf32>
    %231 = vector.extract_strided_slice %4 {offsets = [1, 0], sizes = [1, 32], strides = [1, 1]} : vector<2x32xf32> to vector<1x32xf32>
    %232 = vector.extract_strided_slice %5 {offsets = [1, 0], sizes = [1, 32], strides = [1, 1]} : vector<2x32xf32> to vector<1x32xf32>
    %233 = vector.extract_strided_slice %6 {offsets = [1, 0], sizes = [1, 32], strides = [1, 1]} : vector<2x32xf32> to vector<1x32xf32>
    %234 = vector.extract_strided_slice %7 {offsets = [1, 0], sizes = [1, 32], strides = [1, 1]} : vector<2x32xf32> to vector<1x32xf32>
    %235 = vector.extract_strided_slice %8 {offsets = [1, 0], sizes = [1, 32], strides = [1, 1]} : vector<2x32xf32> to vector<1x32xf32>
    %236 = vector.extract_strided_slice %9 {offsets = [1, 0], sizes = [1, 32], strides = [1, 1]} : vector<2x32xf32> to vector<1x32xf32>
    %237 = vector.extract_strided_slice %10 {offsets = [1, 0], sizes = [1, 64], strides = [1, 1]} : vector<2x64xf32> to vector<1x64xf32>
    %238 = vector.extract_strided_slice %11 {offsets = [1, 0], sizes = [1, 32], strides = [1, 1]} : vector<2x32xf32> to vector<1x32xf32>
    %239 = arith.truncf %216 : vector<16x32xf32> to vector<16x32xbf16>
    %cst_102 = arith.constant dense<0.000000e+00> : vector<16x32xf32>
    %240 = tpu.matmul %239, %218, %cst_102 {dimension_numbers = #tpu.dot_dimension_numbers<[1], [0], [0], [1], [0, 0, 1, 1], [], []>} : vector<16x32xbf16>, vector<32x32xbf16>, vector<16x32xf32> -> vector<16x32xf32>
    %241 = vector.broadcast %229 : vector<1x32xf32> to vector<16x32xf32>
    %242 = arith.addf %240, %241 : vector<16x32xf32>
    %cst_103 = arith.constant dense<0.000000e+00> : vector<16x32xf32>
    %243 = tpu.matmul %239, %220, %cst_103 {dimension_numbers = #tpu.dot_dimension_numbers<[1], [0], [0], [1], [0, 0, 1, 1], [], []>} : vector<16x32xbf16>, vector<32x32xbf16>, vector<16x32xf32> -> vector<16x32xf32>
    %244 = vector.broadcast %230 : vector<1x32xf32> to vector<16x32xf32>
    %245 = arith.addf %243, %244 : vector<16x32xf32>
    %cst_104 = arith.constant dense<0.000000e+00> : vector<16x32xf32>
    %246 = tpu.matmul %239, %222, %cst_104 {dimension_numbers = #tpu.dot_dimension_numbers<[1], [0], [0], [1], [0, 0, 1, 1], [], []>} : vector<16x32xbf16>, vector<32x32xbf16>, vector<16x32xf32> -> vector<16x32xf32>
    %247 = vector.broadcast %231 : vector<1x32xf32> to vector<16x32xf32>
    %248 = arith.addf %246, %247 : vector<16x32xf32>
    %cst_105 = arith.constant 0.353553385 : f32
    %249 = vector.broadcast %cst_105 : f32 to vector<16x32xf32>
    %250 = arith.mulf %242, %249 : vector<16x32xf32>
    %251 = tpu.transpose %245, [1, 0] : vector<16x32xf32> -> vector<32x16xf32>
    %cst_106 = arith.constant 0.000000e+00 : f32
    %252 = vector.broadcast %cst_106 : f32 to vector<16x32xf32>
    %253 = vector.extract_strided_slice %250 {offsets = [0, 0], sizes = [16, 8], strides = [1, 1]} : vector<16x32xf32> to vector<16x8xf32>
    %254 = arith.truncf %253 : vector<16x8xf32> to vector<16x8xbf16>
    %255 = vector.extract_strided_slice %251 {offsets = [0, 0], sizes = [8, 16], strides = [1, 1]} : vector<32x16xf32> to vector<8x16xf32>
    %256 = arith.truncf %255 : vector<8x16xf32> to vector<8x16xbf16>
    %257 = vector.extract_strided_slice %248 {offsets = [0, 0], sizes = [16, 8], strides = [1, 1]} : vector<16x32xf32> to vector<16x8xf32>
    %258 = arith.truncf %257 : vector<16x8xf32> to vector<16x8xbf16>
    %cst_107 = arith.constant dense<0.000000e+00> : vector<16x16xf32>
    %259 = tpu.matmul %254, %256, %cst_107 {dimension_numbers = #tpu.dot_dimension_numbers<[1], [0], [0], [1], [0, 0, 1, 1], [], []>} : vector<16x8xbf16>, vector<8x16xbf16>, vector<16x16xf32> -> vector<16x16xf32>
    %260 = arith.addf %259, %1 : vector<16x16xf32>
    %cst_108 = arith.constant dense<0xFF800000> : vector<16xf32>
    %261 = vector.multi_reduction <maximumf>, %260, %cst_108 [1] : vector<16x16xf32> to vector<16xf32>
    %cst_109 = arith.constant 0xFF800000 : f32
    %262 = vector.broadcast %cst_109 : f32 to vector<16xf32>
    %263 = arith.maximumf %262, %261 : vector<16xf32>
    %264 = vector.shape_cast %263 : vector<16xf32> to vector<16x1xf32>
    %265 = vector.broadcast %264 : vector<16x1xf32> to vector<16x16xf32>
    %266 = arith.subf %260, %265 : vector<16x16xf32>
    %267 = math.exp %266 : vector<16x16xf32>
    %cst_110 = arith.constant dense<0.000000e+00> : vector<16xf32>
    %268 = vector.multi_reduction <add>, %267, %cst_110 [1] : vector<16x16xf32> to vector<16xf32>
    %269 = vector.shape_cast %268 : vector<16xf32> to vector<16x1xf32>
    %270 = vector.broadcast %269 : vector<16x1xf32> to vector<16x16xf32>
    %271 = arith.divf %267, %270 : vector<16x16xf32>
    %272 = arith.truncf %271 : vector<16x16xf32> to vector<16x16xbf16>
    %cst_111 = arith.constant dense<0.000000e+00> : vector<16x8xf32>
    %273 = tpu.matmul %272, %258, %cst_111 {dimension_numbers = #tpu.dot_dimension_numbers<[1], [0], [0], [1], [0, 0, 1, 1], [], []>} : vector<16x16xbf16>, vector<16x8xbf16>, vector<16x8xf32> -> vector<16x8xf32>
    %274 = arith.truncf %273 : vector<16x8xf32> to vector<16x8xbf16>
    %275 = vector.extract_strided_slice %224 {offsets = [0, 0], sizes = [8, 32], strides = [1, 1]} : vector<32x32xbf16> to vector<8x32xbf16>
    %cst_112 = arith.constant dense<0.000000e+00> : vector<16x32xf32>
    %276 = tpu.matmul %274, %275, %cst_112 {dimension_numbers = #tpu.dot_dimension_numbers<[1], [0], [0], [1], [0, 0, 1, 1], [], []>} : vector<16x8xbf16>, vector<8x32xbf16>, vector<16x32xf32> -> vector<16x32xf32>
    %277 = arith.addf %252, %276 : vector<16x32xf32>
    %278 = vector.extract_strided_slice %250 {offsets = [0, 8], sizes = [16, 8], strides = [1, 1]} : vector<16x32xf32> to vector<16x8xf32>
    %279 = arith.truncf %278 : vector<16x8xf32> to vector<16x8xbf16>
    %280 = vector.extract_strided_slice %251 {offsets = [8, 0], sizes = [8, 16], strides = [1, 1]} : vector<32x16xf32> to vector<8x16xf32>
    %281 = arith.truncf %280 : vector<8x16xf32> to vector<8x16xbf16>
    %282 = vector.extract_strided_slice %248 {offsets = [0, 8], sizes = [16, 8], strides = [1, 1]} : vector<16x32xf32> to vector<16x8xf32>
    %283 = arith.truncf %282 : vector<16x8xf32> to vector<16x8xbf16>
    %cst_113 = arith.constant dense<0.000000e+00> : vector<16x16xf32>
    %284 = tpu.matmul %279, %281, %cst_113 {dimension_numbers = #tpu.dot_dimension_numbers<[1], [0], [0], [1], [0, 0, 1, 1], [], []>} : vector<16x8xbf16>, vector<8x16xbf16>, vector<16x16xf32> -> vector<16x16xf32>
    %285 = arith.addf %284, %1 : vector<16x16xf32>
    %cst_114 = arith.constant dense<0xFF800000> : vector<16xf32>
    %286 = vector.multi_reduction <maximumf>, %285, %cst_114 [1] : vector<16x16xf32> to vector<16xf32>
    %cst_115 = arith.constant 0xFF800000 : f32
    %287 = vector.broadcast %cst_115 : f32 to vector<16xf32>
    %288 = arith.maximumf %287, %286 : vector<16xf32>
    %289 = vector.shape_cast %288 : vector<16xf32> to vector<16x1xf32>
    %290 = vector.broadcast %289 : vector<16x1xf32> to vector<16x16xf32>
    %291 = arith.subf %285, %290 : vector<16x16xf32>
    %292 = math.exp %291 : vector<16x16xf32>
    %cst_116 = arith.constant dense<0.000000e+00> : vector<16xf32>
    %293 = vector.multi_reduction <add>, %292, %cst_116 [1] : vector<16x16xf32> to vector<16xf32>
    %294 = vector.shape_cast %293 : vector<16xf32> to vector<16x1xf32>
    %295 = vector.broadcast %294 : vector<16x1xf32> to vector<16x16xf32>
    %296 = arith.divf %292, %295 : vector<16x16xf32>
    %297 = arith.truncf %296 : vector<16x16xf32> to vector<16x16xbf16>
    %cst_117 = arith.constant dense<0.000000e+00> : vector<16x8xf32>
    %298 = tpu.matmul %297, %283, %cst_117 {dimension_numbers = #tpu.dot_dimension_numbers<[1], [0], [0], [1], [0, 0, 1, 1], [], []>} : vector<16x16xbf16>, vector<16x8xbf16>, vector<16x8xf32> -> vector<16x8xf32>
    %299 = arith.truncf %298 : vector<16x8xf32> to vector<16x8xbf16>
    %300 = vector.extract_strided_slice %224 {offsets = [8, 0], sizes = [8, 32], strides = [1, 1]} : vector<32x32xbf16> to vector<8x32xbf16>
    %cst_118 = arith.constant dense<0.000000e+00> : vector<16x32xf32>
    %301 = tpu.matmul %299, %300, %cst_118 {dimension_numbers = #tpu.dot_dimension_numbers<[1], [0], [0], [1], [0, 0, 1, 1], [], []>} : vector<16x8xbf16>, vector<8x32xbf16>, vector<16x32xf32> -> vector<16x32xf32>
    %302 = arith.addf %277, %301 : vector<16x32xf32>
    %303 = vector.extract_strided_slice %250 {offsets = [0, 16], sizes = [16, 8], strides = [1, 1]} : vector<16x32xf32> to vector<16x8xf32>
    %304 = arith.truncf %303 : vector<16x8xf32> to vector<16x8xbf16>
    %305 = vector.extract_strided_slice %251 {offsets = [16, 0], sizes = [8, 16], strides = [1, 1]} : vector<32x16xf32> to vector<8x16xf32>
    %306 = arith.truncf %305 : vector<8x16xf32> to vector<8x16xbf16>
    %307 = vector.extract_strided_slice %248 {offsets = [0, 16], sizes = [16, 8], strides = [1, 1]} : vector<16x32xf32> to vector<16x8xf32>
    %308 = arith.truncf %307 : vector<16x8xf32> to vector<16x8xbf16>
    %cst_119 = arith.constant dense<0.000000e+00> : vector<16x16xf32>
    %309 = tpu.matmul %304, %306, %cst_119 {dimension_numbers = #tpu.dot_dimension_numbers<[1], [0], [0], [1], [0, 0, 1, 1], [], []>} : vector<16x8xbf16>, vector<8x16xbf16>, vector<16x16xf32> -> vector<16x16xf32>
    %310 = arith.addf %309, %1 : vector<16x16xf32>
    %cst_120 = arith.constant dense<0xFF800000> : vector<16xf32>
    %311 = vector.multi_reduction <maximumf>, %310, %cst_120 [1] : vector<16x16xf32> to vector<16xf32>
    %cst_121 = arith.constant 0xFF800000 : f32
    %312 = vector.broadcast %cst_121 : f32 to vector<16xf32>
    %313 = arith.maximumf %312, %311 : vector<16xf32>
    %314 = vector.shape_cast %313 : vector<16xf32> to vector<16x1xf32>
    %315 = vector.broadcast %314 : vector<16x1xf32> to vector<16x16xf32>
    %316 = arith.subf %310, %315 : vector<16x16xf32>
    %317 = math.exp %316 : vector<16x16xf32>
    %cst_122 = arith.constant dense<0.000000e+00> : vector<16xf32>
    %318 = vector.multi_reduction <add>, %317, %cst_122 [1] : vector<16x16xf32> to vector<16xf32>
    %319 = vector.shape_cast %318 : vector<16xf32> to vector<16x1xf32>
    %320 = vector.broadcast %319 : vector<16x1xf32> to vector<16x16xf32>
    %321 = arith.divf %317, %320 : vector<16x16xf32>
    %322 = arith.truncf %321 : vector<16x16xf32> to vector<16x16xbf16>
    %cst_123 = arith.constant dense<0.000000e+00> : vector<16x8xf32>
    %323 = tpu.matmul %322, %308, %cst_123 {dimension_numbers = #tpu.dot_dimension_numbers<[1], [0], [0], [1], [0, 0, 1, 1], [], []>} : vector<16x16xbf16>, vector<16x8xbf16>, vector<16x8xf32> -> vector<16x8xf32>
    %324 = arith.truncf %323 : vector<16x8xf32> to vector<16x8xbf16>
    %325 = vector.extract_strided_slice %224 {offsets = [16, 0], sizes = [8, 32], strides = [1, 1]} : vector<32x32xbf16> to vector<8x32xbf16>
    %cst_124 = arith.constant dense<0.000000e+00> : vector<16x32xf32>
    %326 = tpu.matmul %324, %325, %cst_124 {dimension_numbers = #tpu.dot_dimension_numbers<[1], [0], [0], [1], [0, 0, 1, 1], [], []>} : vector<16x8xbf16>, vector<8x32xbf16>, vector<16x32xf32> -> vector<16x32xf32>
    %327 = arith.addf %302, %326 : vector<16x32xf32>
    %328 = vector.extract_strided_slice %250 {offsets = [0, 24], sizes = [16, 8], strides = [1, 1]} : vector<16x32xf32> to vector<16x8xf32>
    %329 = arith.truncf %328 : vector<16x8xf32> to vector<16x8xbf16>
    %330 = vector.extract_strided_slice %251 {offsets = [24, 0], sizes = [8, 16], strides = [1, 1]} : vector<32x16xf32> to vector<8x16xf32>
    %331 = arith.truncf %330 : vector<8x16xf32> to vector<8x16xbf16>
    %332 = vector.extract_strided_slice %248 {offsets = [0, 24], sizes = [16, 8], strides = [1, 1]} : vector<16x32xf32> to vector<16x8xf32>
    %333 = arith.truncf %332 : vector<16x8xf32> to vector<16x8xbf16>
    %cst_125 = arith.constant dense<0.000000e+00> : vector<16x16xf32>
    %334 = tpu.matmul %329, %331, %cst_125 {dimension_numbers = #tpu.dot_dimension_numbers<[1], [0], [0], [1], [0, 0, 1, 1], [], []>} : vector<16x8xbf16>, vector<8x16xbf16>, vector<16x16xf32> -> vector<16x16xf32>
    %335 = arith.addf %334, %1 : vector<16x16xf32>
    %cst_126 = arith.constant dense<0xFF800000> : vector<16xf32>
    %336 = vector.multi_reduction <maximumf>, %335, %cst_126 [1] : vector<16x16xf32> to vector<16xf32>
    %cst_127 = arith.constant 0xFF800000 : f32
    %337 = vector.broadcast %cst_127 : f32 to vector<16xf32>
    %338 = arith.maximumf %337, %336 : vector<16xf32>
    %339 = vector.shape_cast %338 : vector<16xf32> to vector<16x1xf32>
    %340 = vector.broadcast %339 : vector<16x1xf32> to vector<16x16xf32>
    %341 = arith.subf %335, %340 : vector<16x16xf32>
    %342 = math.exp %341 : vector<16x16xf32>
    %cst_128 = arith.constant dense<0.000000e+00> : vector<16xf32>
    %343 = vector.multi_reduction <add>, %342, %cst_128 [1] : vector<16x16xf32> to vector<16xf32>
    %344 = vector.shape_cast %343 : vector<16xf32> to vector<16x1xf32>
    %345 = vector.broadcast %344 : vector<16x1xf32> to vector<16x16xf32>
    %346 = arith.divf %342, %345 : vector<16x16xf32>
    %347 = arith.truncf %346 : vector<16x16xf32> to vector<16x16xbf16>
    %cst_129 = arith.constant dense<0.000000e+00> : vector<16x8xf32>
    %348 = tpu.matmul %347, %333, %cst_129 {dimension_numbers = #tpu.dot_dimension_numbers<[1], [0], [0], [1], [0, 0, 1, 1], [], []>} : vector<16x16xbf16>, vector<16x8xbf16>, vector<16x8xf32> -> vector<16x8xf32>
    %349 = arith.truncf %348 : vector<16x8xf32> to vector<16x8xbf16>
    %350 = vector.extract_strided_slice %224 {offsets = [24, 0], sizes = [8, 32], strides = [1, 1]} : vector<32x32xbf16> to vector<8x32xbf16>
    %cst_130 = arith.constant dense<0.000000e+00> : vector<16x32xf32>
    %351 = tpu.matmul %349, %350, %cst_130 {dimension_numbers = #tpu.dot_dimension_numbers<[1], [0], [0], [1], [0, 0, 1, 1], [], []>} : vector<16x8xbf16>, vector<8x32xbf16>, vector<16x32xf32> -> vector<16x32xf32>
    %352 = arith.addf %327, %351 : vector<16x32xf32>
    %353 = vector.broadcast %232 : vector<1x32xf32> to vector<16x32xf32>
    %354 = arith.addf %352, %353 : vector<16x32xf32>
    %355 = arith.addf %216, %354 : vector<16x32xf32>
    %cst_131 = arith.constant dense<0.000000e+00> : vector<16xf32>
    %356 = vector.multi_reduction <add>, %355, %cst_131 [1] : vector<16x32xf32> to vector<16xf32>
    %357 = vector.shape_cast %356 : vector<16xf32> to vector<16x1xf32>
    %cst_132 = arith.constant 3.200000e+01 : f32
    %358 = vector.broadcast %cst_132 : f32 to vector<16x1xf32>
    %359 = arith.divf %357, %358 : vector<16x1xf32>
    %360 = vector.broadcast %359 : vector<16x1xf32> to vector<16x32xf32>
    %361 = arith.subf %355, %360 : vector<16x32xf32>
    %362 = arith.mulf %361, %361 : vector<16x32xf32>
    %cst_133 = arith.constant dense<0.000000e+00> : vector<16xf32>
    %363 = vector.multi_reduction <add>, %362, %cst_133 [1] : vector<16x32xf32> to vector<16xf32>
    %364 = vector.shape_cast %363 : vector<16xf32> to vector<16x1xf32>
    %cst_134 = arith.constant 3.200000e+01 : f32
    %365 = vector.broadcast %cst_134 : f32 to vector<16x1xf32>
    %366 = arith.divf %364, %365 : vector<16x1xf32>
    %367 = vector.broadcast %359 : vector<16x1xf32> to vector<16x32xf32>
    %368 = arith.subf %355, %367 : vector<16x32xf32>
    %cst_135 = arith.constant 9.99999996E-13 : f32
    %369 = vector.broadcast %cst_135 : f32 to vector<16x1xf32>
    %370 = arith.addf %366, %369 : vector<16x1xf32>
    %371 = math.rsqrt %370 : vector<16x1xf32>
    %372 = vector.broadcast %371 : vector<16x1xf32> to vector<16x32xf32>
    %373 = arith.mulf %368, %372 : vector<16x32xf32>
    %374 = vector.broadcast %233 : vector<1x32xf32> to vector<16x32xf32>
    %375 = arith.mulf %373, %374 : vector<16x32xf32>
    %376 = vector.broadcast %234 : vector<1x32xf32> to vector<16x32xf32>
    %377 = arith.addf %375, %376 : vector<16x32xf32>
    %378 = arith.truncf %377 : vector<16x32xf32> to vector<16x32xbf16>
    %cst_136 = arith.constant dense<0.000000e+00> : vector<16x64xf32>
    %379 = tpu.matmul %378, %226, %cst_136 {dimension_numbers = #tpu.dot_dimension_numbers<[1], [0], [0], [1], [0, 0, 1, 1], [], []>} : vector<16x32xbf16>, vector<32x64xbf16>, vector<16x64xf32> -> vector<16x64xf32>
    %380 = vector.broadcast %237 : vector<1x64xf32> to vector<16x64xf32>
    %381 = arith.addf %379, %380 : vector<16x64xf32>
    %382 = arith.mulf %381, %381 : vector<16x64xf32>
    %383 = arith.mulf %381, %382 : vector<16x64xf32>
    %cst_137 = arith.constant 4.471500e-02 : f32
    %384 = vector.broadcast %cst_137 : f32 to vector<16x64xf32>
    %385 = arith.mulf %384, %383 : vector<16x64xf32>
    %386 = arith.addf %381, %385 : vector<16x64xf32>
    %cst_138 = arith.constant 0.797884583 : f32
    %387 = vector.broadcast %cst_138 : f32 to vector<16x64xf32>
    %388 = arith.mulf %387, %386 : vector<16x64xf32>
    %389 = math.tanh %388 : vector<16x64xf32>
    %cst_139 = arith.constant 1.000000e+00 : f32
    %390 = vector.broadcast %cst_139 : f32 to vector<16x64xf32>
    %391 = arith.addf %390, %389 : vector<16x64xf32>
    %cst_140 = arith.constant 5.000000e-01 : f32
    %392 = vector.broadcast %cst_140 : f32 to vector<16x64xf32>
    %393 = arith.mulf %392, %391 : vector<16x64xf32>
    %394 = arith.mulf %381, %393 : vector<16x64xf32>
    %395 = arith.truncf %394 : vector<16x64xf32> to vector<16x64xbf16>
    %cst_141 = arith.constant dense<0.000000e+00> : vector<16x32xf32>
    %396 = tpu.matmul %395, %228, %cst_141 {dimension_numbers = #tpu.dot_dimension_numbers<[1], [0], [0], [1], [0, 0, 1, 1], [], []>} : vector<16x64xbf16>, vector<64x32xbf16>, vector<16x32xf32> -> vector<16x32xf32>
    %397 = vector.broadcast %238 : vector<1x32xf32> to vector<16x32xf32>
    %398 = arith.addf %396, %397 : vector<16x32xf32>
    %399 = arith.addf %377, %398 : vector<16x32xf32>
    %cst_142 = arith.constant dense<0.000000e+00> : vector<16xf32>
    %400 = vector.multi_reduction <add>, %399, %cst_142 [1] : vector<16x32xf32> to vector<16xf32>
    %401 = vector.shape_cast %400 : vector<16xf32> to vector<16x1xf32>
    %cst_143 = arith.constant 3.200000e+01 : f32
    %402 = vector.broadcast %cst_143 : f32 to vector<16x1xf32>
    %403 = arith.divf %401, %402 : vector<16x1xf32>
    %404 = vector.broadcast %403 : vector<16x1xf32> to vector<16x32xf32>
    %405 = arith.subf %399, %404 : vector<16x32xf32>
    %406 = arith.mulf %405, %405 : vector<16x32xf32>
    %cst_144 = arith.constant dense<0.000000e+00> : vector<16xf32>
    %407 = vector.multi_reduction <add>, %406, %cst_144 [1] : vector<16x32xf32> to vector<16xf32>
    %408 = vector.shape_cast %407 : vector<16xf32> to vector<16x1xf32>
    %cst_145 = arith.constant 3.200000e+01 : f32
    %409 = vector.broadcast %cst_145 : f32 to vector<16x1xf32>
    %410 = arith.divf %408, %409 : vector<16x1xf32>
    %411 = vector.broadcast %403 : vector<16x1xf32> to vector<16x32xf32>
    %412 = arith.subf %399, %411 : vector<16x32xf32>
    %cst_146 = arith.constant 9.99999996E-13 : f32
    %413 = vector.broadcast %cst_146 : f32 to vector<16x1xf32>
    %414 = arith.addf %410, %413 : vector<16x1xf32>
    %415 = math.rsqrt %414 : vector<16x1xf32>
    %416 = vector.broadcast %415 : vector<16x1xf32> to vector<16x32xf32>
    %417 = arith.mulf %412, %416 : vector<16x32xf32>
    %418 = vector.broadcast %235 : vector<1x32xf32> to vector<16x32xf32>
    %419 = arith.mulf %417, %418 : vector<16x32xf32>
    %420 = vector.broadcast %236 : vector<1x32xf32> to vector<16x32xf32>
    %421 = arith.addf %419, %420 : vector<16x32xf32>
    %422 = arith.truncf %421 : vector<16x32xf32> to vector<16x32xbf16>
    %c0_147 = arith.constant 0 : index
    %c0_148 = arith.constant 0 : index
    %423 = vector.load %arg23[%c0_147, %c0_148] : memref<32x128xbf16, #tpu.memory_space<vmem>>, vector<32x128xbf16>
    %cst_149 = arith.constant dense<0.000000e+00> : vector<16x128xf32>
    %424 = tpu.matmul %422, %423, %cst_149 {dimension_numbers = #tpu.dot_dimension_numbers<[1], [0], [0], [1], [0, 0, 1, 1], [], []>} : vector<16x32xbf16>, vector<32x128xbf16>, vector<16x128xf32> -> vector<16x128xf32>
    %c0_150 = arith.constant 0 : index
    %c0_151 = arith.constant 0 : index
    %425 = vector.load %arg24[%c0_150, %c0_151] : memref<1x128xf32, #tpu.memory_space<vmem>>, vector<1x128xf32>
    %426 = vector.broadcast %425 : vector<1x128xf32> to vector<16x128xf32>
    %427 = arith.addf %424, %426 : vector<16x128xf32>
    %c0_152 = arith.constant 0 : index
    %c0_153 = arith.constant 0 : index
    %428 = vector.load %arg25[%c0_152, %c0_153] : memref<16x128xf32, #tpu.memory_space<vmem>>, vector<16x128xf32>
    tpu.vector_store %arg25[%c0_152, %c0_153], %427 {strides = array<i32>} : memref<16x128xf32, #tpu.memory_space<vmem>>, vector<16x128xf32>,
    %c0_154 = arith.constant 0 : index
    %c0_155 = arith.constant 0 : index
    %429 = vector.load %arg6[%c0_154, %c0_155] : memref<1x128xf32, #tpu.memory_space<vmem>>, vector<1x128xf32>
    %430 = tpu.iota {dimensions = array<i32: 1>} : vector<16x128xi32>
    %c5_i32 = arith.constant 5 : i32
    %431 = vector.broadcast %c5_i32 : i32 to vector<16x128xi32>
    %432 = arith.cmpi slt, %430, %431 : vector<16x128xi32>
    %cst_156 = arith.constant -1.000000e+30 : f32
    %433 = vector.broadcast %cst_156 : f32 to vector<16x128xf32>
    %434 = arith.select %432, %427, %433 : vector<16x128xi1>, vector<16x128xf32>
    %cst_157 = arith.constant dense<0xFF800000> : vector<16xf32>
    %435 = vector.multi_reduction <maximumf>, %434, %cst_157 [1] : vector<16x128xf32> to vector<16xf32>
    %436 = vector.shape_cast %435 : vector<16xf32> to vector<16x1xf32>
    %437 = vector.broadcast %436 : vector<16x1xf32> to vector<16x128xf32>
    %438 = arith.subf %434, %437 : vector<16x128xf32>
    %439 = math.exp %438 : vector<16x128xf32>
    %cst_158 = arith.constant dense<0.000000e+00> : vector<16xf32>
    %440 = vector.multi_reduction <add>, %439, %cst_158 [1] : vector<16x128xf32> to vector<16xf32>
    %441 = vector.shape_cast %440 : vector<16xf32> to vector<16x1xf32>
    %442 = math.log %441 : vector<16x1xf32>
    %443 = arith.addf %436, %442 : vector<16x1xf32>
    %444 = vector.broadcast %443 : vector<16x1xf32> to vector<16x128xf32>
    %445 = arith.subf %434, %444 : vector<16x128xf32>
    %c0_159 = arith.constant 0 : index
    %c0_160 = arith.constant 0 : index
    %446 = vector.load %arg2[%c0_159, %c0_160] : memref<16x1xi32, #tpu.memory_space<vmem>>, vector<16x1xi32>
    %c0_161 = arith.constant 0 : index
    %c0_162 = arith.constant 0 : index
    %447 = vector.load %arg3[%c0_161, %c0_162] : memref<16x1xi32, #tpu.memory_space<vmem>>, vector<16x1xi32>
    %448 = vector.broadcast %446 : vector<16x1xi32> to vector<16x128xi32>
    %449 = arith.cmpi eq, %430, %448 : vector<16x128xi32>
    %450 = arith.extui %449 : vector<16x128xi1> to vector<16x128xi32>
    %451 = arith.sitofp %450 : vector<16x128xi32> to vector<16x128xf32>
    %452 = arith.mulf %451, %445 : vector<16x128xf32>
    %cst_163 = arith.constant dense<0.000000e+00> : vector<16xf32>
    %453 = vector.multi_reduction <add>, %452, %cst_163 [1] : vector<16x128xf32> to vector<16xf32>
    %454 = vector.shape_cast %453 : vector<16xf32> to vector<16x1xf32>
    %cst_164 = arith.constant 0.000000e+00 : f32
    %455 = vector.broadcast %cst_164 : f32 to vector<16x1xf32>
    %456 = arith.subf %455, %454 : vector<16x1xf32>
    %457 = vector.broadcast %429 : vector<1x128xf32> to vector<16x128xf32>
    %458 = arith.mulf %451, %457 : vector<16x128xf32>
    %cst_165 = arith.constant dense<0.000000e+00> : vector<16xf32>
    %459 = vector.multi_reduction <add>, %458, %cst_165 [1] : vector<16x128xf32> to vector<16xf32>
    %460 = vector.shape_cast %459 : vector<16xf32> to vector<16x1xf32>
    %c1_i32 = arith.constant 1 : i32
    %461 = vector.broadcast %c1_i32 : i32 to vector<16x1xi32>
    %462 = arith.cmpi eq, %447, %461 : vector<16x1xi32>
    %c-100_i32 = arith.constant -100 : i32
    %463 = vector.broadcast %c-100_i32 : i32 to vector<16x1xi32>
    %464 = arith.cmpi ne, %446, %463 : vector<16x1xi32>
    %465 = arith.andi %462, %464 : vector<16x1xi1>
    %466 = arith.extui %465 : vector<16x1xi1> to vector<16x1xi32>
    %467 = arith.sitofp %466 : vector<16x1xi32> to vector<16x1xf32>
    %c0_166 = arith.constant 0 : index
    %c0_167 = arith.constant 0 : index
    %468 = vector.load %arg5[%c0_166, %c0_167] : memref<16x1xi32, #tpu.memory_space<vmem>>, vector<16x1xi32>
    %cst_168 = arith.constant 0.000000e+00 : f32
    %469 = vector.broadcast %cst_168 : f32 to vector<1x1xf32>
    %c0_i32 = arith.constant 0 : i32
    %470 = vector.broadcast %c0_i32 : i32 to vector<16x1xi32>
    %471 = arith.cmpi eq, %468, %470 : vector<16x1xi32>
    %472 = arith.extui %471 : vector<16x1xi1> to vector<16x1xi32>
    %473 = arith.sitofp %472 : vector<16x1xi32> to vector<16x1xf32>
    %474 = arith.mulf %473, %467 : vector<16x1xf32>
    %475 = arith.mulf %474, %460 : vector<16x1xf32>
    %476 = arith.mulf %475, %456 : vector<16x1xf32>
    %cst_169 = arith.constant dense<0.000000e+00> : vector<1xf32>
    %477 = vector.multi_reduction <add>, %476, %cst_169 [0] : vector<16x1xf32> to vector<1xf32>
    %478 = vector.shape_cast %477 : vector<1xf32> to vector<1x1xf32>
    %479 = arith.mulf %473, %467 : vector<16x1xf32>
    %480 = arith.mulf %479, %460 : vector<16x1xf32>
    %cst_170 = arith.constant dense<0.000000e+00> : vector<1xf32>
    %481 = vector.multi_reduction <add>, %480, %cst_170 [0] : vector<16x1xf32> to vector<1xf32>
    %482 = vector.shape_cast %481 : vector<1xf32> to vector<1x1xf32>
    %cst_171 = arith.constant 0.000000e+00 : f32
    %483 = vector.broadcast %cst_171 : f32 to vector<1x1xf32>
    %484 = arith.cmpf ogt, %482, %483 : vector<1x1xf32>
    %485 = arith.divf %478, %482 : vector<1x1xf32>
    %cst_172 = arith.constant 0.000000e+00 : f32
    %486 = vector.broadcast %cst_172 : f32 to vector<1x1xf32>
    %487 = arith.select %484, %485, %486 : vector<1x1xi1>, vector<1x1xf32>
    %488 = arith.addf %469, %487 : vector<1x1xf32>
    %c1_i32_173 = arith.constant 1 : i32
    %489 = vector.broadcast %c1_i32_173 : i32 to vector<16x1xi32>
    %490 = arith.cmpi eq, %468, %489 : vector<16x1xi32>
    %491 = arith.extui %490 : vector<16x1xi1> to vector<16x1xi32>
    %492 = arith.sitofp %491 : vector<16x1xi32> to vector<16x1xf32>
    %493 = arith.mulf %492, %467 : vector<16x1xf32>
    %494 = arith.mulf %493, %460 : vector<16x1xf32>
    %495 = arith.mulf %494, %456 : vector<16x1xf32>
    %cst_174 = arith.constant dense<0.000000e+00> : vector<1xf32>
    %496 = vector.multi_reduction <add>, %495, %cst_174 [0] : vector<16x1xf32> to vector<1xf32>
    %497 = vector.shape_cast %496 : vector<1xf32> to vector<1x1xf32>
    %498 = arith.mulf %492, %467 : vector<16x1xf32>
    %499 = arith.mulf %498, %460 : vector<16x1xf32>
    %cst_175 = arith.constant dense<0.000000e+00> : vector<1xf32>
    %500 = vector.multi_reduction <add>, %499, %cst_175 [0] : vector<16x1xf32> to vector<1xf32>
    %501 = vector.shape_cast %500 : vector<1xf32> to vector<1x1xf32>
    %cst_176 = arith.constant 0.000000e+00 : f32
    %502 = vector.broadcast %cst_176 : f32 to vector<1x1xf32>
    %503 = arith.cmpf ogt, %501, %502 : vector<1x1xf32>
    %504 = arith.divf %497, %501 : vector<1x1xf32>
    %cst_177 = arith.constant 0.000000e+00 : f32
    %505 = vector.broadcast %cst_177 : f32 to vector<1x1xf32>
    %506 = arith.select %503, %504, %505 : vector<1x1xi1>, vector<1x1xf32>
    %507 = arith.addf %488, %506 : vector<1x1xf32>
    %c0_178 = arith.constant 0 : index
    %c0_179 = arith.constant 0 : index
    %508 = vector.load %arg4[%c0_178, %c0_179] : memref<16x1xi32, #tpu.memory_space<vmem>>, vector<16x1xi32>
    %509 = vector.broadcast %508 : vector<16x1xi32> to vector<16x128xi32>
    %510 = arith.cmpi eq, %430, %509 : vector<16x128xi32>
    %511 = arith.extui %510 : vector<16x128xi1> to vector<16x128xi32>
    %512 = arith.sitofp %511 : vector<16x128xi32> to vector<16x128xf32>
    %513 = arith.mulf %512, %445 : vector<16x128xf32>
    %cst_180 = arith.constant dense<0.000000e+00> : vector<16xf32>
    %514 = vector.multi_reduction <add>, %513, %cst_180 [1] : vector<16x128xf32> to vector<16xf32>
    %515 = vector.shape_cast %514 : vector<16xf32> to vector<16x1xf32>
    %cst_181 = arith.constant 0.000000e+00 : f32
    %516 = vector.broadcast %cst_181 : f32 to vector<16x1xf32>
    %517 = arith.subf %516, %515 : vector<16x1xf32>
    %518 = vector.broadcast %429 : vector<1x128xf32> to vector<16x128xf32>
    %519 = arith.mulf %512, %518 : vector<16x128xf32>
    %cst_182 = arith.constant dense<0.000000e+00> : vector<16xf32>
    %520 = vector.multi_reduction <add>, %519, %cst_182 [1] : vector<16x128xf32> to vector<16xf32>
    %521 = vector.shape_cast %520 : vector<16xf32> to vector<16x1xf32>
    %c-100_i32_183 = arith.constant -100 : i32
    %522 = vector.broadcast %c-100_i32_183 : i32 to vector<16x1xi32>
    %523 = arith.cmpi ne, %508, %522 : vector<16x1xi32>
    %524 = arith.extui %523 : vector<16x1xi1> to vector<16x1xi32>
    %525 = arith.sitofp %524 : vector<16x1xi32> to vector<16x1xf32>
    %526 = arith.mulf %525, %521 : vector<16x1xf32>
    %527 = arith.mulf %526, %517 : vector<16x1xf32>
    %cst_184 = arith.constant dense<0.000000e+00> : vector<1xf32>
    %528 = vector.multi_reduction <add>, %527, %cst_184 [0] : vector<16x1xf32> to vector<1xf32>
    %529 = vector.shape_cast %528 : vector<1xf32> to vector<1x1xf32>
    %530 = arith.mulf %525, %521 : vector<16x1xf32>
    %cst_185 = arith.constant dense<0.000000e+00> : vector<1xf32>
    %531 = vector.multi_reduction <add>, %530, %cst_185 [0] : vector<16x1xf32> to vector<1xf32>
    %532 = vector.shape_cast %531 : vector<1xf32> to vector<1x1xf32>
    %cst_186 = arith.constant 0.000000e+00 : f32
    %533 = vector.broadcast %cst_186 : f32 to vector<1x1xf32>
    %534 = arith.cmpf ogt, %532, %533 : vector<1x1xf32>
    %535 = arith.divf %529, %532 : vector<1x1xf32>
    %cst_187 = arith.constant 0.000000e+00 : f32
    %536 = vector.broadcast %cst_187 : f32 to vector<1x1xf32>
    %537 = arith.select %534, %535, %536 : vector<1x1xi1>, vector<1x1xf32>
    %538 = tpu.iota {dimensions = array<i32: 0>} : vector<8x128xi32>
    %c0_i32_188 = arith.constant 0 : i32
    %539 = vector.broadcast %c0_i32_188 : i32 to vector<8x128xi32>
    %540 = arith.cmpi eq, %538, %539 : vector<8x128xi32>
    %c1_i32_189 = arith.constant 1 : i32
    %541 = vector.broadcast %c1_i32_189 : i32 to vector<8x128xi32>
    %542 = arith.cmpi eq, %538, %541 : vector<8x128xi32>
    %cst_190 = arith.constant 0.000000e+00 : f32
    %543 = vector.shape_cast %537 : vector<1x1xf32> to vector<1x1xf32>
    %544 = vector.broadcast %543 : vector<1x1xf32> to vector<8x128xf32>
    %545 = vector.broadcast %cst_190 : f32 to vector<8x128xf32>
    %546 = arith.select %542, %544, %545 : vector<8x128xi1>, vector<8x128xf32>
    %547 = vector.shape_cast %507 : vector<1x1xf32> to vector<1x1xf32>
    %548 = vector.broadcast %547 : vector<1x1xf32> to vector<8x128xf32>
    %549 = arith.select %540, %548, %546 : vector<8x128xi1>, vector<8x128xf32>
    %c0_191 = arith.constant 0 : index
    %c0_192 = arith.constant 0 : index
    %550 = vector.load %arg26[%c0_191, %c0_192] : memref<8x128xf32, #tpu.memory_space<vmem>>, vector<8x128xf32>
    tpu.vector_store %arg26[%c0_191, %c0_192], %549 {strides = array<i32>} : memref<8x128xf32, #tpu.memory_space<vmem>>, vector<8x128xf32>,
    return
  }
}

</mosaic_0001>

<llo_original>
// kernel: tpu_custom_call.1
$region0: #{tpu_custom_call.1}
  #allocation0 [shape = 'u32[]', space=smem, size = 0x4, offset = 0x4, fixed_abs, tag = 'smem constant byte address 0x4 - core index']
  #allocation1 [shape = 'u32[144,128]{1,0:T(1,128)}', space=vmem, size = 0x12000, scoped, tag = 'internal scratch']
  %s0 = inlined_call_operand.hbm [shape: f32[16,32], index: 0, kind: input, shape index: {}]
  %s1 = inlined_call_operand.hbm [shape: f32[16,16], index: 1, kind: input, shape index: {}]
  %s2 = inlined_call_operand.vmem [shape: s32[16,1], index: 2, kind: input, shape index: {}]
  %s3 = inlined_call_operand.vmem [shape: s32[16,1], index: 3, kind: input, shape index: {}]
  %s4 = inlined_call_operand.vmem [shape: s32[16,1], index: 4, kind: input, shape index: {}]
  %s5 = inlined_call_operand.vmem [shape: s32[16,1], index: 5, kind: input, shape index: {}]
  %s6 = inlined_call_operand.hbm [shape: f32[1,128], index: 6, kind: input, shape index: {}]
  %s7 = inlined_call_operand.vmem [shape: bf16[2,32,32], index: 7, kind: input, shape index: {}]
  %s8 = inlined_call_operand.hbm [shape: f32[2,32], index: 8, kind: input, shape index: {}]
  %s9 = inlined_call_operand.vmem [shape: bf16[2,32,32], index: 9, kind: input, shape index: {}]
  %s10 = inlined_call_operand.hbm [shape: f32[2,32], index: 10, kind: input, shape index: {}]
  %s11 = inlined_call_operand.vmem [shape: bf16[2,32,32], index: 11, kind: input, shape index: {}]
  %s12 = inlined_call_operand.hbm [shape: f32[2,32], index: 12, kind: input, shape index: {}]
  %s13 = inlined_call_operand.vmem [shape: bf16[2,32,32], index: 13, kind: input, shape index: {}]
  %s14 = inlined_call_operand.vmem [shape: f32[2,32], index: 14, kind: input, shape index: {}]
  %s15 = inlined_call_operand.vmem [shape: f32[2,32], index: 15, kind: input, shape index: {}]
  %s16 = inlined_call_operand.vmem [shape: f32[2,32], index: 16, kind: input, shape index: {}]
  %s17 = inlined_call_operand.vmem [shape: bf16[2,32,64], index: 17, kind: input, shape index: {}]
  %s18 = inlined_call_operand.vmem [shape: f32[2,64], index: 18, kind: input, shape index: {}]
  %s19 = inlined_call_operand.vmem [shape: bf16[2,64,32], index: 19, kind: input, shape index: {}]
  %s20 = inlined_call_operand.vmem [shape: f32[2,32], index: 20, kind: input, shape index: {}]
  %s21 = inlined_call_operand.vmem [shape: f32[2,32], index: 21, kind: input, shape index: {}]
  %s22 = inlined_call_operand.vmem [shape: f32[2,32], index: 22, kind: input, shape index: {}]
  %s23 = inlined_call_operand.vmem [shape: bf16[32,128], index: 23, kind: input, shape index: {}]
  %s24 = inlined_call_operand.vmem [shape: f32[1,128], index: 24, kind: input, shape index: {}]
  %s25 = inlined_call_operand.hbm [shape: f32[16,128], index: 25, kind: output, shape index: {0}]
  %s26 = inlined_call_operand.hbm [shape: f32[8,128], index: 26, kind: output, shape index: {1}]
  %27 = xla_tuple %s25, %s26
  %s28 = sld [smem:[#allocation0]]
  $region142: #{tpu_custom_call.1} parent=0
    _
  %s30 = ssub.s32 1, %s28
  %s31 = scalar_select 0, %s30, %s28
  $region1: #{tpu_custom_call.1} parent=0
    #allocation2 [shape = 'u8[8192]{0}', space=vmem, size = 0x2000, scoped, tag = 'input window, operand 0, single buffered']
    #allocation3 [shape = 's32[1]{0}', space=sflag, size = 0x4, scoped, tag = 'scoped memory for tpu_custom_call.1']
    #allocation4 [shape = 's32[1]{0}', space=sflag, size = 0x4, scoped, tag = 'scoped memory for tpu_custom_call.1']
    #allocation5 [shape = 'u8[8192]{0}', space=vmem, size = 0x2000, scoped, tag = 'input window, operand 1, single buffered']
    #allocation6 [shape = 's32[1]{0}', space=sflag, size = 0x4, scoped, tag = 'scoped memory for tpu_custom_call.1']
    #allocation7 [shape = 'u8[512]{0}', space=vmem, size = 0x400, scoped, tag = 'input window, operand 6, single buffered']
    #allocation8 [shape = 'u8[1024]{0}', space=vmem, size = 0x400, scoped, tag = 'input window, operand 8, single buffered']
    #allocation9 [shape = 's32[1]{0}', space=sflag, size = 0x4, scoped, tag = 'scoped memory for tpu_custom_call.1']
    #allocation10 [shape = 'u8[1024]{0}', space=vmem, size = 0x400, scoped, tag = 'input window, operand 10, single buffered']
    #allocation11 [shape = 'u8[1024]{0}', space=vmem, size = 0x400, scoped, tag = 'input window, operand 12, single buffered']
    #allocation12 [shape = 's32[1]{0}', space=sflag, size = 0x4, scoped, tag = 'scoped memory for tpu_custom_call.1']
    #allocation13 [shape = 'u8[8192]{0}', space=vmem, size = 0x2000, scoped, tag = 'output window, operand 0, single buffered']
    #allocation14 [shape = 'u8[4096]{0}', space=vmem, size = 0x1000, scoped, tag = 'output window, operand 1, single buffered']
    #allocation15 [shape = 's32[1]{0}', space=sflag, size = 0x4, scoped, tag = 'scoped memory for tpu_custom_call.1']
    %32 = vsyncpa [#allocation3], 0
    %33 = vsyncpa [#allocation6], 0
    %34 = vsyncpa [#allocation9], 0
    %35 = vsyncpa [#allocation12], 0
    %36 = vsyncpa [#allocation4], 0
    %37 = vsyncpa [#allocation15], 0
    // Predicated region
    $region2: #{tpu_custom_call.1} parent=1 // pred_check
      _
    $region3: #{tpu_custom_call.1} parent=1 // pred_check_branch
      %39 = sbr.rel (0) target = $region5
    $region4: #{tpu_custom_call.1} parent=1 // pred_region
      %s41 = ssub.s32 256, 256
      %42 = vsyncadd [#allocation3], %s41
      %s43 = sshll.u32 [#allocation2], 4
      %s44 = int_to_ptr.vmem [resolvable:$true] %s43
      %49 = dma.hbm_to_vmem [thread:$0]  %s0, 256, %s44, [#allocation3], 128, 128, 8
    $region5: #{tpu_custom_call.1} parent=1 // pred_fallthru
      _
    // Predicated region
    $region6: #{tpu_custom_call.1} parent=1 // pred_check
      _
    $region7: #{tpu_custom_call.1} parent=1 // pred_check_branch
      %51 = sbr.rel (0) target = $region9
    $region8: #{tpu_custom_call.1} parent=1 // pred_region
      %s53 = ssub.s32 256, 256
      %54 = vsyncadd [#allocation6], %s53
      %s55 = sshll.u32 [#allocation5], 4
      %s56 = int_to_ptr.vmem [resolvable:$true] %s55
      %61 = dma.hbm_to_vmem [thread:$0]  %s1, 256, %s56, [#allocation6], 128, 128, 8
    $region9: #{tpu_custom_call.1} parent=1 // pred_fallthru
      _
    // Predicated region
    $region10: #{tpu_custom_call.1} parent=1 // pred_check
      _
    $region11: #{tpu_custom_call.1} parent=1 // pred_check_branch
      %63 = sbr.rel (0) target = $region13
    $region12: #{tpu_custom_call.1} parent=1 // pred_region
      _
    $region13: #{tpu_custom_call.1} parent=1 // pred_fallthru
      _
    // Predicated region
    $region14: #{tpu_custom_call.1} parent=1 // pred_check
      _
    $region15: #{tpu_custom_call.1} parent=1 // pred_check_branch
      %65 = sbr.rel (0) target = $region17
    $region16: #{tpu_custom_call.1} parent=1 // pred_region
      _
    $region17: #{tpu_custom_call.1} parent=1 // pred_fallthru
      _
    // Predicated region
    $region18: #{tpu_custom_call.1} parent=1 // pred_check
      _
    $region19: #{tpu_custom_call.1} parent=1 // pred_check_branch
      %67 = sbr.rel (0) target = $region21
    $region20: #{tpu_custom_call.1} parent=1 // pred_region
      _
    $region21: #{tpu_custom_call.1} parent=1 // pred_fallthru
      _
    // Predicated region
    $region22: #{tpu_custom_call.1} parent=1 // pred_check
      _
    $region23: #{tpu_custom_call.1} parent=1 // pred_check_branch
      %69 = sbr.rel (0) target = $region25
    $region24: #{tpu_custom_call.1} parent=1 // pred_region
      _
    $region25: #{tpu_custom_call.1} parent=1 // pred_fallthru
      _
    // Predicated region
    $region26: #{tpu_custom_call.1} parent=1 // pred_check
      _
    $region27: #{tpu_custom_call.1} parent=1 // pred_check_branch
      %71 = sbr.rel (0) target = $region29
    $region28: #{tpu_custom_call.1} parent=1 // pred_region
      %s73 = ssub.s32 16, 16
      %74 = vsyncadd [#allocation6], %s73
      %s76 = sshll.u32 [#allocation7], 4
      %s77 = int_to_ptr.vmem [resolvable:$true] %s76
      %79 = dma.hbm_to_vmem [thread:$0]  %s6, 16, %s77, [#allocation6]
    $region29: #{tpu_custom_call.1} parent=1 // pred_fallthru
      _
    // Predicated region
    $region30: #{tpu_custom_call.1} parent=1 // pred_check
      _
    $region31: #{tpu_custom_call.1} parent=1 // pred_check_branch
      %81 = sbr.rel (0) target = $region33
    $region32: #{tpu_custom_call.1} parent=1 // pred_region
      _
    $region33: #{tpu_custom_call.1} parent=1 // pred_fallthru
      _
    // Predicated region
    $region34: #{tpu_custom_call.1} parent=1 // pred_check
      _
    $region35: #{tpu_custom_call.1} parent=1 // pred_check_branch
      %83 = sbr.rel (0) target = $region37
    $region36: #{tpu_custom_call.1} parent=1 // pred_region
      %s85 = ssub.s32 32, 32
      %86 = vsyncadd [#allocation9], %s85
      %s88 = sshll.u32 [#allocation8], 4
      %s89 = int_to_ptr.vmem [resolvable:$true] %s88
      %91 = dma.hbm_to_vmem [thread:$0]  %s8, 32, %s89, [#allocation9]
    $region37: #{tpu_custom_call.1} parent=1 // pred_fallthru
      _
    // Predicated region
    $region38: #{tpu_custom_call.1} parent=1 // pred_check
      _
    $region39: #{tpu_custom_call.1} parent=1 // pred_check_branch
      %93 = sbr.rel (0) target = $region41
    $region40: #{tpu_custom_call.1} parent=1 // pred_region
      _
    $region41: #{tpu_custom_call.1} parent=1 // pred_fallthru
      _
    // Predicated region
    $region42: #{tpu_custom_call.1} parent=1 // pred_check
      _
    $region43: #{tpu_custom_call.1} parent=1 // pred_check_branch
      %95 = sbr.rel (0) target = $region45
    $region44: #{tpu_custom_call.1} parent=1 // pred_region
      %s97 = ssub.s32 32, 32
      %98 = vsyncadd [#allocation9], %s97
      %s100 = sshll.u32 [#allocation10], 4
      %s101 = int_to_ptr.vmem [resolvable:$true] %s100
      %103 = dma.hbm_to_vmem [thread:$0]  %s10, 32, %s101, [#allocation9]
    $region45: #{tpu_custom_call.1} parent=1 // pred_fallthru
      _
    // Predicated region
    $region46: #{tpu_custom_call.1} parent=1 // pred_check
      _
    $region47: #{tpu_custom_call.1} parent=1 // pred_check_branch
      %105 = sbr.rel (0) target = $region49
    $region48: #{tpu_custom_call.1} parent=1 // pred_region
      _
    $region49: #{tpu_custom_call.1} parent=1 // pred_fallthru
      _
    // Predicated region
    $region50: #{tpu_custom_call.1} parent=1 // pred_check
      _
    $region51: #{tpu_custom_call.1} parent=1 // pred_check_branch
      %107 = sbr.rel (0) target = $region53
    $region52: #{tpu_custom_call.1} parent=1 // pred_region
      %s109 = ssub.s32 32, 32
      %110 = vsyncadd [#allocation12], %s109
      %s112 = sshll.u32 [#allocation11], 4
      %s113 = int_to_ptr.vmem [resolvable:$true] %s112
      %115 = dma.hbm_to_vmem [thread:$0]  %s12, 32, %s113, [#allocation12]
    $region53: #{tpu_custom_call.1} parent=1 // pred_fallthru
      _
    // Predicated region
    $region54: #{tpu_custom_call.1} parent=1 // pred_check
      _
    $region55: #{tpu_custom_call.1} parent=1 // pred_check_branch
      %117 = sbr.rel (0) target = $region57
    $region56: #{tpu_custom_call.1} parent=1 // pred_region
      _
    $region57: #{tpu_custom_call.1} parent=1 // pred_fallthru
      _
    // Predicated region
    $region58: #{tpu_custom_call.1} parent=1 // pred_check
      _
    $region59: #{tpu_custom_call.1} parent=1 // pred_check_branch
      %119 = sbr.rel (0) target = $region61
    $region60: #{tpu_custom_call.1} parent=1 // pred_region
      _
    $region61: #{tpu_custom_call.1} parent=1 // pred_fallthru
      _
    // Predicated region
    $region62: #{tpu_custom_call.1} parent=1 // pred_check
      _
    $region63: #{tpu_custom_call.1} parent=1 // pred_check_branch
      %121 = sbr.rel (0) target = $region65
    $region64: #{tpu_custom_call.1} parent=1 // pred_region
      _
    $region65: #{tpu_custom_call.1} parent=1 // pred_fallthru
      _
    // Predicated region
    $region66: #{tpu_custom_call.1} parent=1 // pred_check
      _
    $region67: #{tpu_custom_call.1} parent=1 // pred_check_branch
      %123 = sbr.rel (0) target = $region69
    $region68: #{tpu_custom_call.1} parent=1 // pred_region
      _
    $region69: #{tpu_custom_call.1} parent=1 // pred_fallthru
      _
    // Predicated region
    $region70: #{tpu_custom_call.1} parent=1 // pred_check
      _
    $region71: #{tpu_custom_call.1} parent=1 // pred_check_branch
      %125 = sbr.rel (0) target = $region73
    $region72: #{tpu_custom_call.1} parent=1 // pred_region
      _
    $region73: #{tpu_custom_call.1} parent=1 // pred_fallthru
      _
    // Predicated region
    $region74: #{tpu_custom_call.1} parent=1 // pred_check
      _
    $region75: #{tpu_custom_call.1} parent=1 // pred_check_branch
      %127 = sbr.rel (0) target = $region77
    $region76: #{tpu_custom_call.1} parent=1 // pred_region
      _
    $region77: #{tpu_custom_call.1} parent=1 // pred_fallthru
      _
    // Predicated region
    $region78: #{tpu_custom_call.1} parent=1 // pred_check
      _
    $region79: #{tpu_custom_call.1} parent=1 // pred_check_branch
      %129 = sbr.rel (0) target = $region81
    $region80: #{tpu_custom_call.1} parent=1 // pred_region
      _
    $region81: #{tpu_custom_call.1} parent=1 // pred_fallthru
      _
    // Predicated region
    $region82: #{tpu_custom_call.1} parent=1 // pred_check
      _
    $region83: #{tpu_custom_call.1} parent=1 // pred_check_branch
      %131 = sbr.rel (0) target = $region85
    $region84: #{tpu_custom_call.1} parent=1 // pred_region
      _
    $region85: #{tpu_custom_call.1} parent=1 // pred_fallthru
      _
    // Predicated region
    $region86: #{tpu_custom_call.1} parent=1 // pred_check
      _
    $region87: #{tpu_custom_call.1} parent=1 // pred_check_branch
      %133 = sbr.rel (0) target = $region89
    $region88: #{tpu_custom_call.1} parent=1 // pred_region
      _
    $region89: #{tpu_custom_call.1} parent=1 // pred_fallthru
      _
    // Predicated region
    $region90: #{tpu_custom_call.1} parent=1 // pred_check
      _
    $region91: #{tpu_custom_call.1} parent=1 // pred_check_branch
      %135 = sbr.rel (0) target = $region93
    $region92: #{tpu_custom_call.1} parent=1 // pred_region
      _
    $region93: #{tpu_custom_call.1} parent=1 // pred_fallthru
      _
    // Predicated region
    $region94: #{tpu_custom_call.1} parent=1 // pred_check
      _
    $region95: #{tpu_custom_call.1} parent=1 // pred_check_branch
      %137 = sbr.rel (0) target = $region97
    $region96: #{tpu_custom_call.1} parent=1 // pred_region
      _
    $region97: #{tpu_custom_call.1} parent=1 // pred_fallthru
      _
    // Predicated region
    $region98: #{tpu_custom_call.1} parent=1 // pred_check
      _
    $region99: #{tpu_custom_call.1} parent=1 // pred_check_branch
      %139 = sbr.rel (0) target = $region101
    $region100: #{tpu_custom_call.1} parent=1 // pred_region
      _
    $region101: #{tpu_custom_call.1} parent=1 // pred_fallthru
      _
    // Predicated region
    $region102: #{tpu_custom_call.1} parent=1 // pred_check
      _
    $region103: #{tpu_custom_call.1} parent=1 // pred_check_branch
      %141 = sbr.rel (0) target = $region105
    $region104: #{tpu_custom_call.1} parent=1 // pred_region
      %142 = dma.done [#allocation3], 256
    $region105: #{tpu_custom_call.1} parent=1 // pred_fallthru
      _
    // Predicated region
    $region106: #{tpu_custom_call.1} parent=1 // pred_check
      _
    $region107: #{tpu_custom_call.1} parent=1 // pred_check_branch
      %144 = sbr.rel (0) target = $region109
    $region108: #{tpu_custom_call.1} parent=1 // pred_region
      %145 = dma.done [#allocation6], 256
    $region109: #{tpu_custom_call.1} parent=1 // pred_fallthru
      _
    // Predicated region
    $region110: #{tpu_custom_call.1} parent=1 // pred_check
      _
    $region111: #{tpu_custom_call.1} parent=1 // pred_check_branch
      %147 = sbr.rel (0) target = $region113
    $region112: #{tpu_custom_call.1} parent=1 // pred_region
      %148 = dma.done [#allocation6], 16
    $region113: #{tpu_custom_call.1} parent=1 // pred_fallthru
      _
    // Predicated region
    $region114: #{tpu_custom_call.1} parent=1 // pred_check
      _
    $region115: #{tpu_custom_call.1} parent=1 // pred_check_branch
      %150 = sbr.rel (0) target = $region117
    $region116: #{tpu_custom_call.1} parent=1 // pred_region
      %151 = dma.done [#allocation9], 32
    $region117: #{tpu_custom_call.1} parent=1 // pred_fallthru
      _
    // Predicated region
    $region118: #{tpu_custom_call.1} parent=1 // pred_check
      _
    $region119: #{tpu_custom_call.1} parent=1 // pred_check_branch
      %153 = sbr.rel (0) target = $region121
    $region120: #{tpu_custom_call.1} parent=1 // pred_region
      %154 = dma.done [#allocation9], 32
    $region121: #{tpu_custom_call.1} parent=1 // pred_fallthru
      _
    // Predicated region
    $region122: #{tpu_custom_call.1} parent=1 // pred_check
      _
    $region123: #{tpu_custom_call.1} parent=1 // pred_check_branch
      %156 = sbr.rel (0) target = $region125
    $region124: #{tpu_custom_call.1} parent=1 // pred_region
      %157 = dma.done [#allocation12], 32
    $region125: #{tpu_custom_call.1} parent=1 // pred_fallthru
      _
    %v159 = vld [vmem:[#allocation2] sm:$0xff]
    %v160 = vld [vmem:[#allocation2 + $0x8] sm:$0xff]
    %v161 = vld [vmem:[#allocation5] sm:$0xff]
    %v162 = vld [vmem:[#allocation5 + $0x8] sm:$0xff]
    %v163 = vld [vmem:[#allocation8] sm:$0x3]
    %v164 = vld [vmem:[#allocation10] sm:$0x3]
    %v165 = vld [vmem:[#allocation11] sm:$0x3]
    %v166 = vld [vmem:[%s14] sm:$0x3]
    %v167 = vld [vmem:[%s15] sm:$0x3]
    %v168 = vld [vmem:[%s16] sm:$0x3]
    %v169 = vld [vmem:[%s21] sm:$0x3]
    %v170 = vld [vmem:[%s22] sm:$0x3]
    %v171 = vld [vmem:[%s18] sm:$0x3]
    %v172 = vld [vmem:[%s20] sm:$0x3]
    %v173 = vld [vmem:[%s7] sm:$0xf]
    %v174 = vld [vmem:[%s7 + $0x4] sm:$0xf]
    %v175 = vld [vmem:[%s7 + $0x8] sm:$0xf]
    %v176 = vld [vmem:[%s7 + $0xc] sm:$0xf]
    %v177 = vld [vmem:[%s9] sm:$0xf]
    %v178 = vld [vmem:[%s9 + $0x4] sm:$0xf]
    %v179 = vld [vmem:[%s9 + $0x8] sm:$0xf]
    %v180 = vld [vmem:[%s9 + $0xc] sm:$0xf]
    %v181 = vld [vmem:[%s11] sm:$0xf]
    %v182 = vld [vmem:[%s11 + $0x4] sm:$0xf]
    %v183 = vld [vmem:[%s11 + $0x8] sm:$0xf]
    %v184 = vld [vmem:[%s11 + $0xc] sm:$0xf]
    %v185 = vld [vmem:[%s13] sm:$0xf]
    %v186 = vld [vmem:[%s13 + $0x4] sm:$0xf]
    %v187 = vld [vmem:[%s13 + $0x8] sm:$0xf]
    %v188 = vld [vmem:[%s13 + $0xc] sm:$0xf]
    %v189 = vld [vmem:[%s17] sm:$0xf]
    %v190 = vld [vmem:[%s17 + $0x4] sm:$0xf]
    %v191 = vld [vmem:[%s17 + $0x8] sm:$0xf]
    %v192 = vld [vmem:[%s17 + $0xc] sm:$0xf]
    %v193 = vld [vmem:[%s19] sm:$0xf]
    %v194 = vld [vmem:[%s19 + $0x4] sm:$0xf]
    %v195 = vld [vmem:[%s19 + $0x8] sm:$0xf]
    %v196 = vld [vmem:[%s19 + $0xc] sm:$0xf]
    %v197 = vld [vmem:[%s19 + $0x10] sm:$0xf]
    %v198 = vld [vmem:[%s19 + $0x14] sm:$0xf]
    %v199 = vld [vmem:[%s19 + $0x18] sm:$0xf]
    %v200 = vld [vmem:[%s19 + $0x1c] sm:$0xf]
    %v201 = vpack.c.bf16 %v160, %v159
    %v202 = vlaneseq
    %v203 = vshrl.u32 %v202, 7
    %v204 = vsub.s32 0, %v203
    %v205 = vrot.slane %v163, %v204
    %v210 = vunpack.c.l.b16 %v173
    %v211 = vunpack.c.l.b16 %v174
    %v212 = vunpack.c.l.b16 %v175
    %v213 = vunpack.c.l.b16 %v176
    %v214 = vpack.c.b16 %v211, %v210
    %v215 = vpack.c.b16 %v213, %v212
    %vm218 = vcmask 261120
    %v220 = vsel %vm218, %v201, 0
    %222 = vmatprep.subr.bf16.mxu0 0
    %223 = vmatpush1.bf16.msra.mxu0 %v214
    %224 = vmatprep.subr.bf16.mxu0 0
    %225 = vmatpush1.bf16.msra.mxu0 %v215
    %226 = vmatprep.subr.bf16.mxu0 0
    %227 = vmatpush1.bf16.msra.mxu0 0
    %228 = vmatprep.subr.bf16.mxu0 0
    %229 = vmatpush1.bf16.msra.mxu0 0
    %230 = vmatprep.subr.bf16.mxu0 0
    %231 = vmatpush1.bf16.msra.mxu0 0
    %232 = vmatprep.subr.bf16.mxu0 0
    %233 = vmatpush1.bf16.msra.mxu0 0
    %234 = vmatprep.subr.bf16.mxu0 0
    %235 = vmatpush1.bf16.msra.mxu0 0
    %236 = vmatprep.subr.bf16.mxu0 0
    %237 = vmatpush1.bf16.msra.mxu0 0
    %238 = vmatprep.subr.bf16.mxu0 0
    %239 = vmatpush1.bf16.msra.mxu0 0
    %240 = vmatprep.subr.bf16.mxu0 0
    %241 = vmatpush1.bf16.msra.mxu0 0
    %242 = vmatprep.subr.bf16.mxu0 0
    %243 = vmatpush1.bf16.msra.mxu0 0
    %244 = vmatprep.subr.bf16.mxu0 0
    %245 = vmatpush1.bf16.msra.mxu0 0
    %246 = vmatprep.subr.bf16.mxu0 0
    %247 = vmatpush1.bf16.msra.mxu0 0
    %248 = vmatprep.subr.bf16.mxu0 0
    %249 = vmatpush1.bf16.msra.mxu0 0
    %250 = vmatprep.subr.bf16.mxu0 0
    %251 = vmatpush1.bf16.msra.mxu0 0
    %252 = vmatprep.subr.bf16.mxu0 0
    %253 = vmatpush1.bf16.msra.mxu0 0
    %254 = vmatprep.mubr.bf16.mxu0 0
    %255 = vmatmul.mubr.bf16.gmra.mrb[0].mxu0 %v220
    %v256 = vpop.f32.mrb[0].mxu0
    %v257 = vadd.f32 %v205, %v256
    %v258 = vpop.f32.mrb[0].mxu0
    %v259 = vpop.f32.mrb[0].mxu0
    %v260 = vadd.f32 %v205, %v259
    %v261 = vpop.f32.mrb[0].mxu0
    %262 = vdwg.mxu0
    %v263 = vlaneseq
    %v264 = vshrl.u32 %v263, 7
    %v265 = vsub.s32 0, %v264
    %v266 = vrot.slane %v164, %v265
    %v271 = vunpack.c.l.b16 %v177
    %v272 = vunpack.c.l.b16 %v178
    %v273 = vunpack.c.l.b16 %v179
    %v274 = vunpack.c.l.b16 %v180
    %v275 = vpack.c.b16 %v272, %v271
    %v276 = vpack.c.b16 %v274, %v273
    %279 = vmatprep.subr.bf16.mxu0 0
    %280 = vmatpush1.bf16.msra.mxu0 %v275
    %281 = vmatprep.subr.bf16.mxu0 0
    %282 = vmatpush1.bf16.msra.mxu0 %v276
    %283 = vmatprep.subr.bf16.mxu0 0
    %284 = vmatpush1.bf16.msra.mxu0 0
    %285 = vmatprep.subr.bf16.mxu0 0
    %286 = vmatpush1.bf16.msra.mxu0 0
    %287 = vmatprep.subr.bf16.mxu0 0
    %288 = vmatpush1.bf16.msra.mxu0 0
    %289 = vmatprep.subr.bf16.mxu0 0
    %290 = vmatpush1.bf16.msra.mxu0 0
    %291 = vmatprep.subr.bf16.mxu0 0
    %292 = vmatpush1.bf16.msra.mxu0 0
    %293 = vmatprep.subr.bf16.mxu0 0
    %294 = vmatpush1.bf16.msra.mxu0 0
    %295 = vmatprep.subr.bf16.mxu0 0
    %296 = vmatpush1.bf16.msra.mxu0 0
    %297 = vmatprep.subr.bf16.mxu0 0
    %298 = vmatpush1.bf16.msra.mxu0 0
    %299 = vmatprep.subr.bf16.mxu0 0
    %300 = vmatpush1.bf16.msra.mxu0 0
    %301 = vmatprep.subr.bf16.mxu0 0
    %302 = vmatpush1.bf16.msra.mxu0 0
    %303 = vmatprep.subr.bf16.mxu0 0
    %304 = vmatpush1.bf16.msra.mxu0 0
    %305 = vmatprep.subr.bf16.mxu0 0
    %306 = vmatpush1.bf16.msra.mxu0 0
    %307 = vmatprep.subr.bf16.mxu0 0
    %308 = vmatpush1.bf16.msra.mxu0 0
    %309 = vmatprep.subr.bf16.mxu0 0
    %310 = vmatpush1.bf16.msra.mxu0 0
    %311 = vmatprep.mubr.bf16.mxu0 0
    %312 = vmatmul.mubr.bf16.gmra.mrb[0].mxu0 %v220
    %v313 = vpop.f32.mrb[0].mxu0
    %v314 = vadd.f32 %v266, %v313
    %v315 = vpop.f32.mrb[0].mxu0
    %v316 = vpop.f32.mrb[0].mxu0
    %v317 = vadd.f32 %v266, %v316
    %v318 = vpop.f32.mrb[0].mxu0
    %319 = vdwg.mxu0
    %v320 = vlaneseq
    %v321 = vshrl.u32 %v320, 7
    %v322 = vsub.s32 0, %v321
    %v323 = vrot.slane %v165, %v322
    %v328 = vunpack.c.l.b16 %v181
    %v329 = vunpack.c.l.b16 %v182
    %v330 = vunpack.c.l.b16 %v183
    %v331 = vunpack.c.l.b16 %v184
    %v332 = vpack.c.b16 %v329, %v328
    %v333 = vpack.c.b16 %v331, %v330
    %336 = vmatprep.subr.bf16.mxu0 0
    %337 = vmatpush1.bf16.msra.mxu0 %v332
    %338 = vmatprep.subr.bf16.mxu0 0
    %339 = vmatpush1.bf16.msra.mxu0 %v333
    %340 = vmatprep.subr.bf16.mxu0 0
    %341 = vmatpush1.bf16.msra.mxu0 0
    %342 = vmatprep.subr.bf16.mxu0 0
    %343 = vmatpush1.bf16.msra.mxu0 0
    %344 = vmatprep.subr.bf16.mxu0 0
    %345 = vmatpush1.bf16.msra.mxu0 0
    %346 = vmatprep.subr.bf16.mxu0 0
    %347 = vmatpush1.bf16.msra.mxu0 0
    %348 = vmatprep.subr.bf16.mxu0 0
    %349 = vmatpush1.bf16.msra.mxu0 0
    %350 = vmatprep.subr.bf16.mxu0 0
    %351 = vmatpush1.bf16.msra.mxu0 0
    %352 = vmatprep.subr.bf16.mxu0 0
    %353 = vmatpush1.bf16.msra.mxu0 0
    %354 = vmatprep.subr.bf16.mxu0 0
    %355 = vmatpush1.bf16.msra.mxu0 0
    %356 = vmatprep.subr.bf16.mxu0 0
    %357 = vmatpush1.bf16.msra.mxu0 0
    %358 = vmatprep.subr.bf16.mxu0 0
    %359 = vmatpush1.bf16.msra.mxu0 0
    %360 = vmatprep.subr.bf16.mxu0 0
    %361 = vmatpush1.bf16.msra.mxu0 0
    %362 = vmatprep.subr.bf16.mxu0 0
    %363 = vmatpush1.bf16.msra.mxu0 0
    %364 = vmatprep.subr.bf16.mxu0 0
    %365 = vmatpush1.bf16.msra.mxu0 0
    %366 = vmatprep.subr.bf16.mxu0 0
    %367 = vmatpush1.bf16.msra.mxu0 0
    %368 = vmatprep.mubr.bf16.mxu0 0
    %369 = vmatmul.mubr.bf16.gmra.mrb[0].mxu0 %v220
    %v370 = vpop.f32.mrb[0].mxu0
    %v371 = vadd.f32 %v323, %v370
    %v372 = vpop.f32.mrb[0].mxu0
    %v373 = vpop.f32.mrb[0].mxu0
    %v374 = vadd.f32 %v323, %v373
    %v375 = vpop.f32.mrb[0].mxu0
    %376 = vdwg.mxu0
    %v377 = vmul.f32 %v257, 0.35355338
    %v378 = vmul.f32 %v260, 0.35355338
    %379 = vxpose.xlu0.b32.start [1/16] %v314, 128
    %380 = vxpose.xlu0.b32.cont [2/16] %v317, 128
    %381 = vxpose.xlu0.b32.cont [3/16] 0.0, 128
    %382 = vxpose.xlu0.b32.cont [4/16] 0.0, 128
    %383 = vxpose.xlu0.b32.cont [5/16] 0.0, 128
    %384 = vxpose.xlu0.b32.cont [6/16] 0.0, 128
    %385 = vxpose.xlu0.b32.cont [7/16] 0.0, 128
    %386 = vxpose.xlu0.b32.cont [8/16] 0.0, 128
    %387 = vxpose.xlu0.b32.cont [9/16] 0.0, 128
    %388 = vxpose.xlu0.b32.cont [10/16] 0.0, 128
    %389 = vxpose.xlu0.b32.cont [11/16] 0.0, 128
    %390 = vxpose.xlu0.b32.cont [12/16] 0.0, 128
    %391 = vxpose.xlu0.b32.cont [13/16] 0.0, 128
    %392 = vxpose.xlu0.b32.cont [14/16] 0.0, 128
    %393 = vxpose.xlu0.b32.cont [15/16] 0.0, 128
    %394 = vxpose.xlu0.b32.end [16/16] 0.0, 128
    %v395 = vpop.trf.xlu0
    %v396 = vpop.trf.xlu0
    %v397 = vpop.trf.xlu0
    %v398 = vpop.trf.xlu0
    %v399 = vpop.trf.xlu0
    %v400 = vpop.trf.xlu0
    %v401 = vpop.trf.xlu0
    %v402 = vpop.trf.xlu0
    %v403 = vpop.trf.xlu0
    %v404 = vpop.trf.xlu0
    %v405 = vpop.trf.xlu0
    %v406 = vpop.trf.xlu0
    %v407 = vpop.trf.xlu0
    %v408 = vpop.trf.xlu0
    %v409 = vpop.trf.xlu0
    %v410 = vpop.trf.xlu0
    %v411 = vpack.c.bf16 %v378, %v377
    %v412 = vpack.c.bf16 %v395, %v395
    %v413 = vpack.c.bf16 %v374, %v371
    %vm414 = vcmask 64512
    %v416 = vsel %vm414, %v411, 0
    %vm418 = vcmask 1043456
    %v420 = vsel %vm418, %v412, 0
    %422 = vmatprep.subr.bf16.mxu0 0
    %423 = vmatpush1.bf16.msra.mxu0 %v420
    %424 = vmatprep.subr.bf16.mxu0 0
    %425 = vmatpush1.bf16.msra.mxu0 0
    %426 = vmatprep.subr.bf16.mxu0 0
    %427 = vmatpush1.bf16.msra.mxu0 0
    %428 = vmatprep.subr.bf16.mxu0 0
    %429 = vmatpush1.bf16.msra.mxu0 0
    %430 = vmatprep.subr.bf16.mxu0 0
    %431 = vmatpush1.bf16.msra.mxu0 0
    %432 = vmatprep.subr.bf16.mxu0 0
    %433 = vmatpush1.bf16.msra.mxu0 0
    %434 = vmatprep.subr.bf16.mxu0 0
    %435 = vmatpush1.bf16.msra.mxu0 0
    %436 = vmatprep.subr.bf16.mxu0 0
    %437 = vmatpush1.bf16.msra.mxu0 0
    %438 = vmatprep.subr.bf16.mxu0 0
    %439 = vmatpush1.bf16.msra.mxu0 0
    %440 = vmatprep.subr.bf16.mxu0 0
    %441 = vmatpush1.bf16.msra.mxu0 0
    %442 = vmatprep.subr.bf16.mxu0 0
    %443 = vmatpush1.bf16.msra.mxu0 0
    %444 = vmatprep.subr.bf16.mxu0 0
    %445 = vmatpush1.bf16.msra.mxu0 0
    %446 = vmatprep.subr.bf16.mxu0 0
    %447 = vmatpush1.bf16.msra.mxu0 0
    %448 = vmatprep.subr.bf16.mxu0 0
    %449 = vmatpush1.bf16.msra.mxu0 0
    %450 = vmatprep.subr.bf16.mxu0 0
    %451 = vmatpush1.bf16.msra.mxu0 0
    %452 = vmatprep.subr.bf16.mxu0 0
    %453 = vmatpush1.bf16.msra.mxu0 0
    %454 = vmatprep.mubr.bf16.mxu0 0
    %455 = vmatmul.mubr.bf16.gmra.mrb[0].mxu0 %v416
    %v456 = vpop.f32.mrb[0].mxu0
    %v457 = vadd.f32 %v161, %v456
    %v458 = vpop.f32.mrb[0].mxu0
    %v459 = vpop.f32.mrb[0].mxu0
    %v460 = vadd.f32 %v162, %v459
    %v461 = vpop.f32.mrb[0].mxu0
    %462 = vdwg.mxu0
    %vm463 = vcmask 130048
    %v464 = vsel %vm463, %v457, -inf
    %465 = vmax.xlane.f32.xlu0 %v464
    %v466 = vpop.xlane.xlu0 %465
    %v467 = vsel %vm463, %v460, -inf
    %468 = vmax.xlane.f32.xlu0 %v467
    %v469 = vpop.xlane.xlu0 %468
    %v470 = vsub.f32 %v457, %v466
    %v471 = vsub.f32 %v460, %v469
    %v472 = vmul.f32 %v470, 1.442695
    %v473 = vpow.pop %v472
    %v474 = vmul.f32 %v471, 1.442695
    %v475 = vpow.pop %v474
    %v476 = vsel %vm463, %v473, 0.0
    %477 = vadd.xlane.f32.xlu0 %v476
    %v478 = vpop.xlane.xlu0 %477
    %v479 = vsel %vm463, %v475, 0.0
    %480 = vadd.xlane.f32.xlu0 %v479
    %v481 = vpop.xlane.xlu0 %480
    %v482 = vrcp.pop %v478
    %v483 = vmul.f32 %v473, %v482
    %v484 = vrcp.pop %v481
    %v485 = vmul.f32 %v475, %v484
    %v486 = vpack.c.bf16 %v485, %v483
    %v488 = vsel %vm463, %v486, 0
    %490 = vmatprep.subr.bf16.mxu0 0
    %491 = vmatpush1.bf16.msra.mxu0 %v413
    %492 = vmatprep.subr.bf16.mxu0 0
    %493 = vmatpush1.bf16.msra.mxu0 0
    %494 = vmatprep.subr.bf16.mxu0 0
    %495 = vmatpush1.bf16.msra.mxu0 0
    %496 = vmatprep.subr.bf16.mxu0 0
    %497 = vmatpush1.bf16.msra.mxu0 0
    %498 = vmatprep.subr.bf16.mxu0 0
    %499 = vmatpush1.bf16.msra.mxu0 0
    %500 = vmatprep.subr.bf16.mxu0 0
    %501 = vmatpush1.bf16.msra.mxu0 0
    %502 = vmatprep.subr.bf16.mxu0 0
    %503 = vmatpush1.bf16.msra.mxu0 0
    %504 = vmatprep.subr.bf16.mxu0 0
    %505 = vmatpush1.bf16.msra.mxu0 0
    %506 = vmatprep.subr.bf16.mxu0 0
    %507 = vmatpush1.bf16.msra.mxu0 0
    %508 = vmatprep.subr.bf16.mxu0 0
    %509 = vmatpush1.bf16.msra.mxu0 0
    %510 = vmatprep.subr.bf16.mxu0 0
    %511 = vmatpush1.bf16.msra.mxu0 0
    %512 = vmatprep.subr.bf16.mxu0 0
    %513 = vmatpush1.bf16.msra.mxu0 0
    %514 = vmatprep.subr.bf16.mxu0 0
    %515 = vmatpush1.bf16.msra.mxu0 0
    %516 = vmatprep.subr.bf16.mxu0 0
    %517 = vmatpush1.bf16.msra.mxu0 0
    %518 = vmatprep.subr.bf16.mxu0 0
    %519 = vmatpush1.bf16.msra.mxu0 0
    %520 = vmatprep.subr.bf16.mxu0 0
    %521 = vmatpush1.bf16.msra.mxu0 0
    %522 = vmatprep.mubr.bf16.mxu0 0
    %523 = vmatmul.mubr.bf16.gmra.mrb[0].mxu0 %v488
    %v524 = vpop.f32.mrb[0].mxu0
    %v525 = vadd.f32 0.0, %v524
    %v526 = vpop.f32.mrb[0].mxu0
    %v527 = vpop.f32.mrb[0].mxu0
    %v528 = vadd.f32 0.0, %v527
    %v529 = vpop.f32.mrb[0].mxu0
    %530 = vdwg.mxu0
    %v531 = vpack.c.bf16 %v528, %v525
    %v532 = vpack.c.bf16 %v396, %v396
    %534 = vrot.lane.b32.xlu0 %v411, 120
    %v535 = vpop.permute.xlu0 %534
    %v537 = vsel %vm414, %v535, 0
    %v540 = vsel %vm418, %v532, 0
    %542 = vmatprep.subr.bf16.mxu0 0
    %543 = vmatpush1.bf16.msra.mxu0 %v540
    %544 = vmatprep.subr.bf16.mxu0 0
    %545 = vmatpush1.bf16.msra.mxu0 0
    %546 = vmatprep.subr.bf16.mxu0 0
    %547 = vmatpush1.bf16.msra.mxu0 0
    %548 = vmatprep.subr.bf16.mxu0 0
    %549 = vmatpush1.bf16.msra.mxu0 0
    %550 = vmatprep.subr.bf16.mxu0 0
    %551 = vmatpush1.bf16.msra.mxu0 0
    %552 = vmatprep.subr.bf16.mxu0 0
    %553 = vmatpush1.bf16.msra.mxu0 0
    %554 = vmatprep.subr.bf16.mxu0 0
    %555 = vmatpush1.bf16.msra.mxu0 0
    %556 = vmatprep.subr.bf16.mxu0 0
    %557 = vmatpush1.bf16.msra.mxu0 0
    %558 = vmatprep.subr.bf16.mxu0 0
    %559 = vmatpush1.bf16.msra.mxu0 0
    %560 = vmatprep.subr.bf16.mxu0 0
    %561 = vmatpush1.bf16.msra.mxu0 0
    %562 = vmatprep.subr.bf16.mxu0 0
    %563 = vmatpush1.bf16.msra.mxu0 0
    %564 = vmatprep.subr.bf16.mxu0 0
    %565 = vmatpush1.bf16.msra.mxu0 0
    %566 = vmatprep.subr.bf16.mxu0 0
    %567 = vmatpush1.bf16.msra.mxu0 0
    %568 = vmatprep.subr.bf16.mxu0 0
    %569 = vmatpush1.bf16.msra.mxu0 0
    %570 = vmatprep.subr.bf16.mxu0 0
    %571 = vmatpush1.bf16.msra.mxu0 0
    %572 = vmatprep.subr.bf16.mxu0 0
    %573 = vmatpush1.bf16.msra.mxu0 0
    %574 = vmatprep.mubr.bf16.mxu0 0
    %575 = vmatmul.mubr.bf16.gmra.mrb[0].mxu0 %v537
    %v576 = vpop.f32.mrb[0].mxu0
    %v577 = vadd.f32 %v161, %v576
    %v578 = vpop.f32.mrb[0].mxu0
    %v579 = vpop.f32.mrb[0].mxu0
    %v580 = vadd.f32 %v162, %v579
    %v581 = vpop.f32.mrb[0].mxu0
    %582 = vdwg.mxu0
    %v583 = vsel %vm463, %v577, -inf
    %584 = vmax.xlane.f32.xlu0 %v583
    %v585 = vpop.xlane.xlu0 %584
    %v586 = vsel %vm463, %v580, -inf
    %587 = vmax.xlane.f32.xlu0 %v586
    %v588 = vpop.xlane.xlu0 %587
    %v589 = vsub.f32 %v577, %v585
    %v590 = vsub.f32 %v580, %v588
    %v591 = vmul.f32 %v589, 1.442695
    %v592 = vpow.pop %v591
    %v593 = vmul.f32 %v590, 1.442695
    %v594 = vpow.pop %v593
    %v595 = vsel %vm463, %v592, 0.0
    %596 = vadd.xlane.f32.xlu0 %v595
    %v597 = vpop.xlane.xlu0 %596
    %v598 = vsel %vm463, %v594, 0.0
    %599 = vadd.xlane.f32.xlu0 %v598
    %v600 = vpop.xlane.xlu0 %599
    %v601 = vrcp.pop %v597
    %v602 = vmul.f32 %v592, %v601
    %v603 = vrcp.pop %v600
    %v604 = vmul.f32 %v594, %v603
    %v605 = vpack.c.bf16 %v604, %v602
    %607 = vrot.lane.b32.xlu0 %v413, 120
    %v608 = vpop.permute.xlu0 %607
    %v611 = vsel %vm463, %v605, 0
    %613 = vmatprep.subr.bf16.mxu0 0
    %614 = vmatpush1.bf16.msra.mxu0 %v608
    %615 = vmatprep.subr.bf16.mxu0 0
    %616 = vmatpush1.bf16.msra.mxu0 0
    %617 = vmatprep.subr.bf16.mxu0 0
    %618 = vmatpush1.bf16.msra.mxu0 0
    %619 = vmatprep.subr.bf16.mxu0 0
    %620 = vmatpush1.bf16.msra.mxu0 0
    %621 = vmatprep.subr.bf16.mxu0 0
    %622 = vmatpush1.bf16.msra.mxu0 0
    %623 = vmatprep.subr.bf16.mxu0 0
    %624 = vmatpush1.bf16.msra.mxu0 0
    %625 = vmatprep.subr.bf16.mxu0 0
    %626 = vmatpush1.bf16.msra.mxu0 0
    %627 = vmatprep.subr.bf16.mxu0 0
    %628 = vmatpush1.bf16.msra.mxu0 0
    %629 = vmatprep.subr.bf16.mxu0 0
    %630 = vmatpush1.bf16.msra.mxu0 0
    %631 = vmatprep.subr.bf16.mxu0 0
    %632 = vmatpush1.bf16.msra.mxu0 0
    %633 = vmatprep.subr.bf16.mxu0 0
    %634 = vmatpush1.bf16.msra.mxu0 0
    %635 = vmatprep.subr.bf16.mxu0 0
    %636 = vmatpush1.bf16.msra.mxu0 0
    %637 = vmatprep.subr.bf16.mxu0 0
    %638 = vmatpush1.bf16.msra.mxu0 0
    %639 = vmatprep.subr.bf16.mxu0 0
    %640 = vmatpush1.bf16.msra.mxu0 0
    %641 = vmatprep.subr.bf16.mxu0 0
    %642 = vmatpush1.bf16.msra.mxu0 0
    %643 = vmatprep.subr.bf16.mxu0 0
    %644 = vmatpush1.bf16.msra.mxu0 0
    %645 = vmatprep.mubr.bf16.mxu0 0
    %646 = vmatmul.mubr.bf16.gmra.mrb[0].mxu0 %v611
    %v647 = vpop.f32.mrb[0].mxu0
    %v648 = vadd.f32 0.0, %v647
    %v649 = vpop.f32.mrb[0].mxu0
    %v650 = vpop.f32.mrb[0].mxu0
    %v651 = vadd.f32 0.0, %v650
    %v652 = vpop.f32.mrb[0].mxu0
    %653 = vdwg.mxu0
    %v654 = vpack.c.bf16 %v651, %v648
    %v656 = vsel %vm414, %v654, 0
    %v659 = vsel %vm418, %v186, 0
    %661 = vmatprep.subr.bf16.mxu0 0
    %662 = vmatpush1.bf16.msra.mxu0 %v659
    %663 = vmatprep.subr.bf16.mxu0 0
    %664 = vmatpush1.bf16.msra.mxu0 0
    %665 = vmatprep.subr.bf16.mxu0 0
    %666 = vmatpush1.bf16.msra.mxu0 0
    %667 = vmatprep.subr.bf16.mxu0 0
    %668 = vmatpush1.bf16.msra.mxu0 0
    %669 = vmatprep.subr.bf16.mxu0 0
    %670 = vmatpush1.bf16.msra.mxu0 0
    %671 = vmatprep.subr.bf16.mxu0 0
    %672 = vmatpush1.bf16.msra.mxu0 0
    %673 = vmatprep.subr.bf16.mxu0 0
    %674 = vmatpush1.bf16.msra.mxu0 0
    %675 = vmatprep.subr.bf16.mxu0 0
    %676 = vmatpush1.bf16.msra.mxu0 0
    %677 = vmatprep.subr.bf16.mxu0 0
    %678 = vmatpush1.bf16.msra.mxu0 0
    %679 = vmatprep.subr.bf16.mxu0 0
    %680 = vmatpush1.bf16.msra.mxu0 0
    %681 = vmatprep.subr.bf16.mxu0 0
    %682 = vmatpush1.bf16.msra.mxu0 0
    %683 = vmatprep.subr.bf16.mxu0 0
    %684 = vmatpush1.bf16.msra.mxu0 0
    %685 = vmatprep.subr.bf16.mxu0 0
    %686 = vmatpush1.bf16.msra.mxu0 0
    %687 = vmatprep.subr.bf16.mxu0 0
    %688 = vmatpush1.bf16.msra.mxu0 0
    %689 = vmatprep.subr.bf16.mxu0 0
    %690 = vmatpush1.bf16.msra.mxu0 0
    %691 = vmatprep.subr.bf16.mxu0 0
    %692 = vmatpush1.bf16.msra.mxu0 0
    %693 = vmatprep.mubr.bf16.mxu0 0
    %694 = vmatmul.mubr.bf16.gmra.mrb[0].mxu0 %v656
    %v695 = vpop.f32.mrb[0].mxu0
    %v696 = vadd.f32 0.0, %v695
    %v697 = vpop.f32.mrb[0].mxu0
    %v698 = vpop.f32.mrb[0].mxu0
    %v699 = vadd.f32 0.0, %v698
    %v700 = vpop.f32.mrb[0].mxu0
    %701 = vdwg.mxu0
    %v703 = vsel %vm414, %v531, 0
    %v706 = vsel %vm418, %v185, 0
    %708 = vmatprep.subr.bf16.mxu0 0
    %709 = vmatpush1.bf16.msra.mxu0 %v706
    %710 = vmatprep.subr.bf16.mxu0 0
    %711 = vmatpush1.bf16.msra.mxu0 0
    %712 = vmatprep.subr.bf16.mxu0 0
    %713 = vmatpush1.bf16.msra.mxu0 0
    %714 = vmatprep.subr.bf16.mxu0 0
    %715 = vmatpush1.bf16.msra.mxu0 0
    %716 = vmatprep.subr.bf16.mxu0 0
    %717 = vmatpush1.bf16.msra.mxu0 0
    %718 = vmatprep.subr.bf16.mxu0 0
    %719 = vmatpush1.bf16.msra.mxu0 0
    %720 = vmatprep.subr.bf16.mxu0 0
    %721 = vmatpush1.bf16.msra.mxu0 0
    %722 = vmatprep.subr.bf16.mxu0 0
    %723 = vmatpush1.bf16.msra.mxu0 0
    %724 = vmatprep.subr.bf16.mxu0 0
    %725 = vmatpush1.bf16.msra.mxu0 0
    %726 = vmatprep.subr.bf16.mxu0 0
    %727 = vmatpush1.bf16.msra.mxu0 0
    %728 = vmatprep.subr.bf16.mxu0 0
    %729 = vmatpush1.bf16.msra.mxu0 0
    %730 = vmatprep.subr.bf16.mxu0 0
    %731 = vmatpush1.bf16.msra.mxu0 0
    %732 = vmatprep.subr.bf16.mxu0 0
    %733 = vmatpush1.bf16.msra.mxu0 0
    %734 = vmatprep.subr.bf16.mxu0 0
    %735 = vmatpush1.bf16.msra.mxu0 0
    %736 = vmatprep.subr.bf16.mxu0 0
    %737 = vmatpush1.bf16.msra.mxu0 0
    %738 = vmatprep.subr.bf16.mxu0 0
    %739 = vmatpush1.bf16.msra.mxu0 0
    %740 = vmatprep.mubr.bf16.mxu0 0
    %741 = vmatmul.mubr.bf16.gmra.mrb[0].mxu0 %v703
    %v742 = vpop.f32.mrb[0].mxu0
    %v743 = vadd.f32 %v696, %v742
    %v744 = vpop.f32.mrb[0].mxu0
    %v745 = vpop.f32.mrb[0].mxu0
    %v746 = vadd.f32 %v699, %v745
    %v747 = vpop.f32.mrb[0].mxu0
    %748 = vdwg.mxu0
    %v749 = vpack.c.bf16 %v397, %v397
    %750 = vrot.lane.b32.xlu0 %v411, 112
    %v751 = vpop.permute.xlu0 %750
    %v753 = vsel %vm414, %v751, 0
    %v756 = vsel %vm418, %v749, 0
    %758 = vmatprep.subr.bf16.mxu0 0
    %759 = vmatpush1.bf16.msra.mxu0 %v756
    %760 = vmatprep.subr.bf16.mxu0 0
    %761 = vmatpush1.bf16.msra.mxu0 0
    %762 = vmatprep.subr.bf16.mxu0 0
    %763 = vmatpush1.bf16.msra.mxu0 0
    %764 = vmatprep.subr.bf16.mxu0 0
    %765 = vmatpush1.bf16.msra.mxu0 0
    %766 = vmatprep.subr.bf16.mxu0 0
    %767 = vmatpush1.bf16.msra.mxu0 0
    %768 = vmatprep.subr.bf16.mxu0 0
    %769 = vmatpush1.bf16.msra.mxu0 0
    %770 = vmatprep.subr.bf16.mxu0 0
    %771 = vmatpush1.bf16.msra.mxu0 0
    %772 = vmatprep.subr.bf16.mxu0 0
    %773 = vmatpush1.bf16.msra.mxu0 0
    %774 = vmatprep.subr.bf16.mxu0 0
    %775 = vmatpush1.bf16.msra.mxu0 0
    %776 = vmatprep.subr.bf16.mxu0 0
    %777 = vmatpush1.bf16.msra.mxu0 0
    %778 = vmatprep.subr.bf16.mxu0 0
    %779 = vmatpush1.bf16.msra.mxu0 0
    %780 = vmatprep.subr.bf16.mxu0 0
    %781 = vmatpush1.bf16.msra.mxu0 0
    %782 = vmatprep.subr.bf16.mxu0 0
    %783 = vmatpush1.bf16.msra.mxu0 0
    %784 = vmatprep.subr.bf16.mxu0 0
    %785 = vmatpush1.bf16.msra.mxu0 0
    %786 = vmatprep.subr.bf16.mxu0 0
    %787 = vmatpush1.bf16.msra.mxu0 0
    %788 = vmatprep.subr.bf16.mxu0 0
    %789 = vmatpush1.bf16.msra.mxu0 0
    %790 = vmatprep.mubr.bf16.mxu0 0
    %791 = vmatmul.mubr.bf16.gmra.mrb[0].mxu0 %v753
    %v792 = vpop.f32.mrb[0].mxu0
    %v793 = vadd.f32 %v161, %v792
    %v794 = vpop.f32.mrb[0].mxu0
    %v795 = vpop.f32.mrb[0].mxu0
    %v796 = vadd.f32 %v162, %v795
    %v797 = vpop.f32.mrb[0].mxu0
    %798 = vdwg.mxu0
    %v799 = vsel %vm463, %v793, -inf
    %800 = vmax.xlane.f32.xlu0 %v799
    %v801 = vpop.xlane.xlu0 %800
    %v802 = vsel %vm463, %v796, -inf
    %803 = vmax.xlane.f32.xlu0 %v802
    %v804 = vpop.xlane.xlu0 %803
    %v805 = vsub.f32 %v793, %v801
    %v806 = vsub.f32 %v796, %v804
    %v807 = vmul.f32 %v805, 1.442695
    %v808 = vpow.pop %v807
    %v809 = vmul.f32 %v806, 1.442695
    %v810 = vpow.pop %v809
    %v811 = vsel %vm463, %v808, 0.0
    %812 = vadd.xlane.f32.xlu0 %v811
    %v813 = vpop.xlane.xlu0 %812
    %v814 = vsel %vm463, %v810, 0.0
    %815 = vadd.xlane.f32.xlu0 %v814
    %v816 = vpop.xlane.xlu0 %815
    %v817 = vrcp.pop %v813
    %v818 = vmul.f32 %v808, %v817
    %v819 = vrcp.pop %v816
    %v820 = vmul.f32 %v810, %v819
    %v821 = vpack.c.bf16 %v820, %v818
    %822 = vrot.lane.b32.xlu0 %v413, 112
    %v823 = vpop.permute.xlu0 %822
    %v826 = vsel %vm463, %v821, 0
    %828 = vmatprep.subr.bf16.mxu0 0
    %829 = vmatpush1.bf16.msra.mxu0 %v823
    %830 = vmatprep.subr.bf16.mxu0 0
    %831 = vmatpush1.bf16.msra.mxu0 0
    %832 = vmatprep.subr.bf16.mxu0 0
    %833 = vmatpush1.bf16.msra.mxu0 0
    %834 = vmatprep.subr.bf16.mxu0 0
    %835 = vmatpush1.bf16.msra.mxu0 0
    %836 = vmatprep.subr.bf16.mxu0 0
    %837 = vmatpush1.bf16.msra.mxu0 0
    %838 = vmatprep.subr.bf16.mxu0 0
    %839 = vmatpush1.bf16.msra.mxu0 0
    %840 = vmatprep.subr.bf16.mxu0 0
    %841 = vmatpush1.bf16.msra.mxu0 0
    %842 = vmatprep.subr.bf16.mxu0 0
    %843 = vmatpush1.bf16.msra.mxu0 0
    %844 = vmatprep.subr.bf16.mxu0 0
    %845 = vmatpush1.bf16.msra.mxu0 0
    %846 = vmatprep.subr.bf16.mxu0 0
    %847 = vmatpush1.bf16.msra.mxu0 0
    %848 = vmatprep.subr.bf16.mxu0 0
    %849 = vmatpush1.bf16.msra.mxu0 0
    %850 = vmatprep.subr.bf16.mxu0 0
    %851 = vmatpush1.bf16.msra.mxu0 0
    %852 = vmatprep.subr.bf16.mxu0 0
    %853 = vmatpush1.bf16.msra.mxu0 0
    %854 = vmatprep.subr.bf16.mxu0 0
    %855 = vmatpush1.bf16.msra.mxu0 0
    %856 = vmatprep.subr.bf16.mxu0 0
    %857 = vmatpush1.bf16.msra.mxu0 0
    %858 = vmatprep.subr.bf16.mxu0 0
    %859 = vmatpush1.bf16.msra.mxu0 0
    %860 = vmatprep.mubr.bf16.mxu0 0
    %861 = vmatmul.mubr.bf16.gmra.mrb[0].mxu0 %v826
    %v862 = vpop.f32.mrb[0].mxu0
    %v863 = vadd.f32 0.0, %v862
    %v864 = vpop.f32.mrb[0].mxu0
    %v865 = vpop.f32.mrb[0].mxu0
    %v866 = vadd.f32 0.0, %v865
    %v867 = vpop.f32.mrb[0].mxu0
    %868 = vdwg.mxu0
    %v869 = vpack.c.bf16 %v866, %v863
    %v871 = vsel %vm414, %v869, 0
    %v874 = vsel %vm418, %v187, 0
    %876 = vmatprep.subr.bf16.mxu0 0
    %877 = vmatpush1.bf16.msra.mxu0 %v874
    %878 = vmatprep.subr.bf16.mxu0 0
    %879 = vmatpush1.bf16.msra.mxu0 0
    %880 = vmatprep.subr.bf16.mxu0 0
    %881 = vmatpush1.bf16.msra.mxu0 0
    %882 = vmatprep.subr.bf16.mxu0 0
    %883 = vmatpush1.bf16.msra.mxu0 0
    %884 = vmatprep.subr.bf16.mxu0 0
    %885 = vmatpush1.bf16.msra.mxu0 0
    %886 = vmatprep.subr.bf16.mxu0 0
    %887 = vmatpush1.bf16.msra.mxu0 0
    %888 = vmatprep.subr.bf16.mxu0 0
    %889 = vmatpush1.bf16.msra.mxu0 0
    %890 = vmatprep.subr.bf16.mxu0 0
    %891 = vmatpush1.bf16.msra.mxu0 0
    %892 = vmatprep.subr.bf16.mxu0 0
    %893 = vmatpush1.bf16.msra.mxu0 0
    %894 = vmatprep.subr.bf16.mxu0 0
    %895 = vmatpush1.bf16.msra.mxu0 0
    %896 = vmatprep.subr.bf16.mxu0 0
    %897 = vmatpush1.bf16.msra.mxu0 0
    %898 = vmatprep.subr.bf16.mxu0 0
    %899 = vmatpush1.bf16.msra.mxu0 0
    %900 = vmatprep.subr.bf16.mxu0 0
    %901 = vmatpush1.bf16.msra.mxu0 0
    %902 = vmatprep.subr.bf16.mxu0 0
    %903 = vmatpush1.bf16.msra.mxu0 0
    %904 = vmatprep.subr.bf16.mxu0 0
    %905 = vmatpush1.bf16.msra.mxu0 0
    %906 = vmatprep.subr.bf16.mxu0 0
    %907 = vmatpush1.bf16.msra.mxu0 0
    %908 = vmatprep.mubr.bf16.mxu0 0
    %909 = vmatmul.mubr.bf16.gmra.mrb[0].mxu0 %v871
    %v910 = vpop.f32.mrb[0].mxu0
    %v911 = vadd.f32 0.0, %v910
    %v912 = vpop.f32.mrb[0].mxu0
    %v913 = vpop.f32.mrb[0].mxu0
    %v914 = vadd.f32 0.0, %v913
    %v915 = vpop.f32.mrb[0].mxu0
    %916 = vdwg.mxu0
    %v917 = vadd.f32 %v743, %v911
    %v918 = vadd.f32 %v746, %v914
    %v919 = vpack.c.bf16 %v398, %v398
    %920 = vrot.lane.b32.xlu0 %v411, 104
    %v921 = vpop.permute.xlu0 %920
    %v923 = vsel %vm414, %v921, 0
    %v926 = vsel %vm418, %v919, 0
    %928 = vmatprep.subr.bf16.mxu0 0
    %929 = vmatpush1.bf16.msra.mxu0 %v926
    %930 = vmatprep.subr.bf16.mxu0 0
    %931 = vmatpush1.bf16.msra.mxu0 0
    %932 = vmatprep.subr.bf16.mxu0 0
    %933 = vmatpush1.bf16.msra.mxu0 0
    %934 = vmatprep.subr.bf16.mxu0 0
    %935 = vmatpush1.bf16.msra.mxu0 0
    %936 = vmatprep.subr.bf16.mxu0 0
    %937 = vmatpush1.bf16.msra.mxu0 0
    %938 = vmatprep.subr.bf16.mxu0 0
    %939 = vmatpush1.bf16.msra.mxu0 0
    %940 = vmatprep.subr.bf16.mxu0 0
    %941 = vmatpush1.bf16.msra.mxu0 0
    %942 = vmatprep.subr.bf16.mxu0 0
    %943 = vmatpush1.bf16.msra.mxu0 0
    %944 = vmatprep.subr.bf16.mxu0 0
    %945 = vmatpush1.bf16.msra.mxu0 0
    %946 = vmatprep.subr.bf16.mxu0 0
    %947 = vmatpush1.bf16.msra.mxu0 0
    %948 = vmatprep.subr.bf16.mxu0 0
    %949 = vmatpush1.bf16.msra.mxu0 0
    %950 = vmatprep.subr.bf16.mxu0 0
    %951 = vmatpush1.bf16.msra.mxu0 0
    %952 = vmatprep.subr.bf16.mxu0 0
    %953 = vmatpush1.bf16.msra.mxu0 0
    %954 = vmatprep.subr.bf16.mxu0 0
    %955 = vmatpush1.bf16.msra.mxu0 0
    %956 = vmatprep.subr.bf16.mxu0 0
    %957 = vmatpush1.bf16.msra.mxu0 0
    %958 = vmatprep.subr.bf16.mxu0 0
    %959 = vmatpush1.bf16.msra.mxu0 0
    %960 = vmatprep.mubr.bf16.mxu0 0
    %961 = vmatmul.mubr.bf16.gmra.mrb[0].mxu0 %v923
    %v962 = vpop.f32.mrb[0].mxu0
    %v963 = vadd.f32 %v161, %v962
    %v964 = vpop.f32.mrb[0].mxu0
    %v965 = vpop.f32.mrb[0].mxu0
    %v966 = vadd.f32 %v162, %v965
    %v967 = vpop.f32.mrb[0].mxu0
    %968 = vdwg.mxu0
    %v969 = vsel %vm463, %v963, -inf
    %970 = vmax.xlane.f32.xlu0 %v969
    %v971 = vpop.xlane.xlu0 %970
    %v972 = vsel %vm463, %v966, -inf
    %973 = vmax.xlane.f32.xlu0 %v972
    %v974 = vpop.xlane.xlu0 %973
    %v975 = vsub.f32 %v963, %v971
    %v976 = vsub.f32 %v966, %v974
    %v977 = vmul.f32 %v975, 1.442695
    %v978 = vpow.pop %v977
    %v979 = vmul.f32 %v976, 1.442695
    %v980 = vpow.pop %v979
    %v981 = vsel %vm463, %v978, 0.0
    %982 = vadd.xlane.f32.xlu0 %v981
    %v983 = vpop.xlane.xlu0 %982
    %v984 = vsel %vm463, %v980, 0.0
    %985 = vadd.xlane.f32.xlu0 %v984
    %v986 = vpop.xlane.xlu0 %985
    %v987 = vrcp.pop %v983
    %v988 = vmul.f32 %v978, %v987
    %v989 = vrcp.pop %v986
    %v990 = vmul.f32 %v980, %v989
    %v991 = vpack.c.bf16 %v990, %v988
    %992 = vrot.lane.b32.xlu0 %v413, 104
    %v993 = vpop.permute.xlu0 %992
    %v996 = vsel %vm463, %v991, 0
    %998 = vmatprep.subr.bf16.mxu0 0
    %999 = vmatpush1.bf16.msra.mxu0 %v993
    %1000 = vmatprep.subr.bf16.mxu0 0
    %1001 = vmatpush1.bf16.msra.mxu0 0
    %1002 = vmatprep.subr.bf16.mxu0 0
    %1003 = vmatpush1.bf16.msra.mxu0 0
    %1004 = vmatprep.subr.bf16.mxu0 0
    %1005 = vmatpush1.bf16.msra.mxu0 0
    %1006 = vmatprep.subr.bf16.mxu0 0
    %1007 = vmatpush1.bf16.msra.mxu0 0
    %1008 = vmatprep.subr.bf16.mxu0 0
    %1009 = vmatpush1.bf16.msra.mxu0 0
    %1010 = vmatprep.subr.bf16.mxu0 0
    %1011 = vmatpush1.bf16.msra.mxu0 0
    %1012 = vmatprep.subr.bf16.mxu0 0
    %1013 = vmatpush1.bf16.msra.mxu0 0
    %1014 = vmatprep.subr.bf16.mxu0 0
    %1015 = vmatpush1.bf16.msra.mxu0 0
    %1016 = vmatprep.subr.bf16.mxu0 0
    %1017 = vmatpush1.bf16.msra.mxu0 0
    %1018 = vmatprep.subr.bf16.mxu0 0
    %1019 = vmatpush1.bf16.msra.mxu0 0
    %1020 = vmatprep.subr.bf16.mxu0 0
    %1021 = vmatpush1.bf16.msra.mxu0 0
    %1022 = vmatprep.subr.bf16.mxu0 0
    %1023 = vmatpush1.bf16.msra.mxu0 0
    %1024 = vmatprep.subr.bf16.mxu0 0
    %1025 = vmatpush1.bf16.msra.mxu0 0
    %1026 = vmatprep.subr.bf16.mxu0 0
    %1027 = vmatpush1.bf16.msra.mxu0 0
    %1028 = vmatprep.subr.bf16.mxu0 0
    %1029 = vmatpush1.bf16.msra.mxu0 0
    %1030 = vmatprep.mubr.bf16.mxu0 0
    %1031 = vmatmul.mubr.bf16.gmra.mrb[0].mxu0 %v996
    %v1032 = vpop.f32.mrb[0].mxu0
    %v1033 = vadd.f32 0.0, %v1032
    %v1034 = vpop.f32.mrb[0].mxu0
    %v1035 = vpop.f32.mrb[0].mxu0
    %v1036 = vadd.f32 0.0, %v1035
    %v1037 = vpop.f32.mrb[0].mxu0
    %1038 = vdwg.mxu0
    %v1039 = vpack.c.bf16 %v1036, %v1033
    %v1041 = vsel %vm414, %v1039, 0
    %v1044 = vsel %vm418, %v188, 0
    %1046 = vmatprep.subr.bf16.mxu0 0
    %1047 = vmatpush1.bf16.msra.mxu0 %v1044
    %1048 = vmatprep.subr.bf16.mxu0 0
    %1049 = vmatpush1.bf16.msra.mxu0 0
    %1050 = vmatprep.subr.bf16.mxu0 0
    %1051 = vmatpush1.bf16.msra.mxu0 0
    %1052 = vmatprep.subr.bf16.mxu0 0
    %1053 = vmatpush1.bf16.msra.mxu0 0
    %1054 = vmatprep.subr.bf16.mxu0 0
    %1055 = vmatpush1.bf16.msra.mxu0 0
    %1056 = vmatprep.subr.bf16.mxu0 0
    %1057 = vmatpush1.bf16.msra.mxu0 0
    %1058 = vmatprep.subr.bf16.mxu0 0
    %1059 = vmatpush1.bf16.msra.mxu0 0
    %1060 = vmatprep.subr.bf16.mxu0 0
    %1061 = vmatpush1.bf16.msra.mxu0 0
    %1062 = vmatprep.subr.bf16.mxu0 0
    %1063 = vmatpush1.bf16.msra.mxu0 0
    %1064 = vmatprep.subr.bf16.mxu0 0
    %1065 = vmatpush1.bf16.msra.mxu0 0
    %1066 = vmatprep.subr.bf16.mxu0 0
    %1067 = vmatpush1.bf16.msra.mxu0 0
    %1068 = vmatprep.subr.bf16.mxu0 0
    %1069 = vmatpush1.bf16.msra.mxu0 0
    %1070 = vmatprep.subr.bf16.mxu0 0
    %1071 = vmatpush1.bf16.msra.mxu0 0
    %1072 = vmatprep.subr.bf16.mxu0 0
    %1073 = vmatpush1.bf16.msra.mxu0 0
    %1074 = vmatprep.subr.bf16.mxu0 0
    %1075 = vmatpush1.bf16.msra.mxu0 0
    %1076 = vmatprep.subr.bf16.mxu0 0
    %1077 = vmatpush1.bf16.msra.mxu0 0
    %1078 = vmatprep.mubr.bf16.mxu0 0
    %1079 = vmatmul.mubr.bf16.gmra.mrb[0].mxu0 %v1041
    %v1080 = vpop.f32.mrb[0].mxu0
    %v1081 = vadd.f32 0.0, %v1080
    %v1082 = vpop.f32.mrb[0].mxu0
    %v1083 = vpop.f32.mrb[0].mxu0
    %v1084 = vadd.f32 0.0, %v1083
    %v1085 = vpop.f32.mrb[0].mxu0
    %1086 = vdwg.mxu0
    %v1087 = vadd.f32 %v917, %v1081
    %v1088 = vadd.f32 %v918, %v1084
    %v1089 = vlaneseq
    %v1090 = vshrl.u32 %v1089, 7
    %v1091 = vsub.s32 0, %v1090
    %v1092 = vrot.slane %v166, %v1091
    %v1093 = vadd.f32 %v1087, %v1092
    %v1094 = vadd.f32 %v1088, %v1092
    %v1095 = vadd.f32 %v159, %v1093
    %v1096 = vadd.f32 %v160, %v1094
    %v1097 = vsel %vm218, %v1095, 0.0
    %1098 = vadd.xlane.f32.xlu0 %v1097
    %v1099 = vpop.xlane.xlu0 %1098
    %v1100 = vsel %vm218, %v1096, 0.0
    %1101 = vadd.xlane.f32.xlu0 %v1100
    %v1102 = vpop.xlane.xlu0 %1101
    %v1103 = vrcp.pop 32.0
    %v1104 = vmul.f32 %v1099, %v1103
    %v1105 = vmul.f32 %v1102, %v1103
    %v1106 = vsub.f32 %v1095, %v1104
    %v1107 = vsub.f32 %v1096, %v1105
    %v1108 = vmul.f32 %v1106, %v1106
    %v1109 = vmul.f32 %v1107, %v1107
    %v1110 = vsel %vm218, %v1108, 0.0
    %1111 = vadd.xlane.f32.xlu0 %v1110
    %v1112 = vpop.xlane.xlu0 %1111
    %v1113 = vsel %vm218, %v1109, 0.0
    %1114 = vadd.xlane.f32.xlu0 %v1113
    %v1115 = vpop.xlane.xlu0 %1114
    %v1116 = vmul.f32 %v1112, %v1103
    %v1117 = vmul.f32 %v1115, %v1103
    %v1118 = vadd.f32 %v1116, 1e-12
    %v1119 = vadd.f32 %v1117, 1e-12
    %v1120 = vrsqrt.pop %v1118
    %v1121 = vrsqrt.pop %v1119
    %v1122 = vmul.f32 %v1106, %v1120
    %v1123 = vmul.f32 %v1107, %v1121
    %v1124 = vlaneseq
    %v1125 = vshrl.u32 %v1124, 7
    %v1126 = vsub.s32 0, %v1125
    %v1127 = vrot.slane %v167, %v1126
    %v1128 = vmul.f32 %v1122, %v1127
    %v1129 = vmul.f32 %v1123, %v1127
    %v1130 = vlaneseq
    %v1131 = vshrl.u32 %v1130, 7
    %v1132 = vsub.s32 0, %v1131
    %v1133 = vrot.slane %v168, %v1132
    %v1134 = vadd.f32 %v1128, %v1133
    %v1135 = vadd.f32 %v1129, %v1133
    %v1136 = vpack.c.bf16 %v1135, %v1134
    %v1137 = vlaneseq
    %v1138 = vshrl.u32 %v1137, 7
    %v1139 = vsub.s32 0, %v1138
    %v1140 = vrot.slane %v171, %v1139
    %v1145 = vunpack.c.l.b16 %v189
    %v1146 = vunpack.c.l.b16 %v190
    %v1147 = vunpack.c.l.b16 %v191
    %v1148 = vunpack.c.l.b16 %v192
    %v1149 = vpack.c.b16 %v1146, %v1145
    %v1150 = vpack.c.b16 %v1148, %v1147
    %v1154 = vsel %vm218, %v1136, 0
    %1156 = vmatprep.subr.bf16.mxu0 0
    %1157 = vmatpush1.bf16.msra.mxu0 %v1149
    %1158 = vmatprep.subr.bf16.mxu0 0
    %1159 = vmatpush1.bf16.msra.mxu0 %v1150
    %1160 = vmatprep.subr.bf16.mxu0 0
    %1161 = vmatpush1.bf16.msra.mxu0 0
    %1162 = vmatprep.subr.bf16.mxu0 0
    %1163 = vmatpush1.bf16.msra.mxu0 0
    %1164 = vmatprep.subr.bf16.mxu0 0
    %1165 = vmatpush1.bf16.msra.mxu0 0
    %1166 = vmatprep.subr.bf16.mxu0 0
    %1167 = vmatpush1.bf16.msra.mxu0 0
    %1168 = vmatprep.subr.bf16.mxu0 0
    %1169 = vmatpush1.bf16.msra.mxu0 0
    %1170 = vmatprep.subr.bf16.mxu0 0
    %1171 = vmatpush1.bf16.msra.mxu0 0
    %1172 = vmatprep.subr.bf16.mxu0 0
    %1173 = vmatpush1.bf16.msra.mxu0 0
    %1174 = vmatprep.subr.bf16.mxu0 0
    %1175 = vmatpush1.bf16.msra.mxu0 0
    %1176 = vmatprep.subr.bf16.mxu0 0
    %1177 = vmatpush1.bf16.msra.mxu0 0
    %1178 = vmatprep.subr.bf16.mxu0 0
    %1179 = vmatpush1.bf16.msra.mxu0 0
    %1180 = vmatprep.subr.bf16.mxu0 0
    %1181 = vmatpush1.bf16.msra.mxu0 0
    %1182 = vmatprep.subr.bf16.mxu0 0
    %1183 = vmatpush1.bf16.msra.mxu0 0
    %1184 = vmatprep.subr.bf16.mxu0 0
    %1185 = vmatpush1.bf16.msra.mxu0 0
    %1186 = vmatprep.subr.bf16.mxu0 0
    %1187 = vmatpush1.bf16.msra.mxu0 0
    %1188 = vmatprep.mubr.bf16.mxu0 0
    %1189 = vmatmul.mubr.bf16.gmra.mrb[0].mxu0 %v1154
    %v1190 = vpop.f32.mrb[0].mxu0
    %v1191 = vadd.f32 %v1140, %v1190
    %v1192 = vpop.f32.mrb[0].mxu0
    %v1193 = vpop.f32.mrb[0].mxu0
    %v1194 = vadd.f32 %v1140, %v1193
    %v1195 = vpop.f32.mrb[0].mxu0
    %1196 = vdwg.mxu0
    %v1197 = vmul.f32 %v1191, %v1191
    %v1198 = vmul.f32 %v1194, %v1194
    %v1199 = vmul.f32 %v1191, %v1197
    %v1200 = vmul.f32 %v1194, %v1198
    %v1201 = vmul.f32 %v1199, 0.044715
    %v1202 = vmul.f32 %v1200, 0.044715
    %v1203 = vadd.f32 %v1191, %v1201
    %v1204 = vadd.f32 %v1194, %v1202
    %v1205 = vmul.f32 %v1203, 0.7978846
    %v1206 = vmul.f32 %v1204, 0.7978846
    %v1207 = vtanh.pop %v1205
    %v1208 = vtanh.pop %v1206
    %v1209 = vadd.f32 %v1207, 1.0
    %v1210 = vadd.f32 %v1208, 1.0
    %v1211 = vmul.f32 %v1209, 0.5
    %v1212 = vmul.f32 %v1210, 0.5
    %v1213 = vmul.f32 %v1191, %v1211
    %v1214 = vmul.f32 %v1194, %v1212
    %v1215 = vpack.c.bf16 %v1214, %v1213
    %v1216 = vlaneseq
    %v1217 = vshrl.u32 %v1216, 7
    %v1218 = vsub.s32 0, %v1217
    %v1219 = vrot.slane %v172, %v1218
    %v1228 = vunpack.c.l.b16 %v193
    %v1229 = vunpack.c.l.b16 %v194
    %v1230 = vunpack.c.l.b16 %v195
    %v1231 = vunpack.c.l.b16 %v196
    %v1232 = vunpack.c.l.b16 %v197
    %v1233 = vunpack.c.l.b16 %v198
    %v1234 = vunpack.c.l.b16 %v199
    %v1235 = vunpack.c.l.b16 %v200
    %v1236 = vpack.c.b16 %v1229, %v1228
    %v1237 = vpack.c.b16 %v1231, %v1230
    %v1238 = vpack.c.b16 %v1233, %v1232
    %v1239 = vpack.c.b16 %v1235, %v1234
    %vm1244 = vcmask 523264
    %v1246 = vsel %vm1244, %v1215, 0
    %1248 = vmatprep.subr.bf16.mxu0 0
    %1249 = vmatpush1.bf16.msra.mxu0 %v1236
    %1250 = vmatprep.subr.bf16.mxu0 0
    %1251 = vmatpush1.bf16.msra.mxu0 %v1237
    %1252 = vmatprep.subr.bf16.mxu0 0
    %1253 = vmatpush1.bf16.msra.mxu0 %v1238
    %1254 = vmatprep.subr.bf16.mxu0 0
    %1255 = vmatpush1.bf16.msra.mxu0 %v1239
    %1256 = vmatprep.subr.bf16.mxu0 0
    %1257 = vmatpush1.bf16.msra.mxu0 0
    %1258 = vmatprep.subr.bf16.mxu0 0
    %1259 = vmatpush1.bf16.msra.mxu0 0
    %1260 = vmatprep.subr.bf16.mxu0 0
    %1261 = vmatpush1.bf16.msra.mxu0 0
    %1262 = vmatprep.subr.bf16.mxu0 0
    %1263 = vmatpush1.bf16.msra.mxu0 0
    %1264 = vmatprep.subr.bf16.mxu0 0
    %1265 = vmatpush1.bf16.msra.mxu0 0
    %1266 = vmatprep.subr.bf16.mxu0 0
    %1267 = vmatpush1.bf16.msra.mxu0 0
    %1268 = vmatprep.subr.bf16.mxu0 0
    %1269 = vmatpush1.bf16.msra.mxu0 0
    %1270 = vmatprep.subr.bf16.mxu0 0
    %1271 = vmatpush1.bf16.msra.mxu0 0
    %1272 = vmatprep.subr.bf16.mxu0 0
    %1273 = vmatpush1.bf16.msra.mxu0 0
    %1274 = vmatprep.subr.bf16.mxu0 0
    %1275 = vmatpush1.bf16.msra.mxu0 0
    %1276 = vmatprep.subr.bf16.mxu0 0
    %1277 = vmatpush1.bf16.msra.mxu0 0
    %1278 = vmatprep.subr.bf16.mxu0 0
    %1279 = vmatpush1.bf16.msra.mxu0 0
    %1280 = vmatprep.mubr.bf16.mxu0 0
    %1281 = vmatmul.mubr.bf16.gmra.mrb[0].mxu0 %v1246
    %v1282 = vpop.f32.mrb[0].mxu0
    %v1283 = vadd.f32 %v1219, %v1282
    %v1284 = vpop.f32.mrb[0].mxu0
    %v1285 = vpop.f32.mrb[0].mxu0
    %v1286 = vadd.f32 %v1219, %v1285
    %v1287 = vpop.f32.mrb[0].mxu0
    %1288 = vdwg.mxu0
    %v1289 = vadd.f32 %v1134, %v1283
    %v1290 = vadd.f32 %v1135, %v1286
    %v1291 = vsel %vm218, %v1289, 0.0
    %1292 = vadd.xlane.f32.xlu0 %v1291
    %v1293 = vpop.xlane.xlu0 %1292
    %v1294 = vsel %vm218, %v1290, 0.0
    %1295 = vadd.xlane.f32.xlu0 %v1294
    %v1296 = vpop.xlane.xlu0 %1295
    %v1297 = vmul.f32 %v1293, %v1103
    %v1298 = vmul.f32 %v1296, %v1103
    %v1299 = vsub.f32 %v1289, %v1297
    %v1300 = vsub.f32 %v1290, %v1298
    %v1301 = vmul.f32 %v1299, %v1299
    %v1302 = vmul.f32 %v1300, %v1300
    %v1303 = vsel %vm218, %v1301, 0.0
    %1304 = vadd.xlane.f32.xlu0 %v1303
    %v1305 = vpop.xlane.xlu0 %1304
    %v1306 = vsel %vm218, %v1302, 0.0
    %1307 = vadd.xlane.f32.xlu0 %v1306
    %v1308 = vpop.xlane.xlu0 %1307
    %v1309 = vmul.f32 %v1305, %v1103
    %v1310 = vmul.f32 %v1308, %v1103
    %v1311 = vadd.f32 %v1309, 1e-12
    %v1312 = vadd.f32 %v1310, 1e-12
    %v1313 = vrsqrt.pop %v1311
    %v1314 = vrsqrt.pop %v1312
    %v1315 = vmul.f32 %v1299, %v1313
    %v1316 = vmul.f32 %v1300, %v1314
    %v1317 = vlaneseq
    %v1318 = vshrl.u32 %v1317, 7
    %v1319 = vsub.s32 0, %v1318
    %v1320 = vrot.slane %v169, %v1319
    %v1321 = vmul.f32 %v1315, %v1320
    %v1322 = vmul.f32 %v1316, %v1320
    %v1323 = vlaneseq
    %v1324 = vshrl.u32 %v1323, 7
    %v1325 = vsub.s32 0, %v1324
    %v1326 = vrot.slane %v170, %v1325
    %v1327 = vadd.f32 %v1321, %v1326
    %v1328 = vadd.f32 %v1322, %v1326
    %s1329 = scalar_lea.vmem %s7, 16
    %v1330 = vld [vmem:[%s1329] sm:$0xf]
    %v1331 = vld [vmem:[%s1329 + $0x4] sm:$0xf]
    %v1332 = vld [vmem:[%s1329 + $0x8] sm:$0xf]
    %v1333 = vld [vmem:[%s1329 + $0xc] sm:$0xf]
    %s1334 = scalar_lea.vmem %s9, 16
    %v1335 = vld [vmem:[%s1334] sm:$0xf]
    %v1336 = vld [vmem:[%s1334 + $0x4] sm:$0xf]
    %v1337 = vld [vmem:[%s1334 + $0x8] sm:$0xf]
    %v1338 = vld [vmem:[%s1334 + $0xc] sm:$0xf]
    %s1339 = scalar_lea.vmem %s11, 16
    %v1340 = vld [vmem:[%s1339] sm:$0xf]
    %v1341 = vld [vmem:[%s1339 + $0x4] sm:$0xf]
    %v1342 = vld [vmem:[%s1339 + $0x8] sm:$0xf]
    %v1343 = vld [vmem:[%s1339 + $0xc] sm:$0xf]
    %s1344 = scalar_lea.vmem %s13, 16
    %v1345 = vld [vmem:[%s1344] sm:$0xf]
    %v1346 = vld [vmem:[%s1344 + $0x4] sm:$0xf]
    %v1347 = vld [vmem:[%s1344 + $0x8] sm:$0xf]
    %v1348 = vld [vmem:[%s1344 + $0xc] sm:$0xf]
    %s1349 = scalar_lea.vmem %s17, 16
    %v1350 = vld [vmem:[%s1349] sm:$0xf]
    %v1351 = vld [vmem:[%s1349 + $0x4] sm:$0xf]
    %v1352 = vld [vmem:[%s1349 + $0x8] sm:$0xf]
    %v1353 = vld [vmem:[%s1349 + $0xc] sm:$0xf]
    %s1354 = scalar_lea.vmem %s19, 32
    %v1355 = vld [vmem:[%s1354] sm:$0xf]
    %v1356 = vld [vmem:[%s1354 + $0x4] sm:$0xf]
    %v1357 = vld [vmem:[%s1354 + $0x8] sm:$0xf]
    %v1358 = vld [vmem:[%s1354 + $0xc] sm:$0xf]
    %v1359 = vld [vmem:[%s1354 + $0x10] sm:$0xf]
    %v1360 = vld [vmem:[%s1354 + $0x14] sm:$0xf]
    %v1361 = vld [vmem:[%s1354 + $0x18] sm:$0xf]
    %v1362 = vld [vmem:[%s1354 + $0x1c] sm:$0xf]
    %v1363 = vpack.c.bf16 %v1328, %v1327
    %v1364 = vlaneseq
    %v1365 = vshrl.u32 %v1364, 7
    %v1366 = vsub.s32 1, %v1365
    %v1367 = vrot.slane %v163, %v1366
    %v1372 = vunpack.c.l.b16 %v1330
    %v1373 = vunpack.c.l.b16 %v1331
    %v1374 = vunpack.c.l.b16 %v1332
    %v1375 = vunpack.c.l.b16 %v1333
    %v1376 = vpack.c.b16 %v1373, %v1372
    %v1377 = vpack.c.b16 %v1375, %v1374
    %v1381 = vsel %vm218, %v1363, 0
    %1383 = vmatprep.subr.bf16.mxu0 0
    %1384 = vmatpush1.bf16.msra.mxu0 %v1376
    %1385 = vmatprep.subr.bf16.mxu0 0
    %1386 = vmatpush1.bf16.msra.mxu0 %v1377
    %1387 = vmatprep.subr.bf16.mxu0 0
    %1388 = vmatpush1.bf16.msra.mxu0 0
    %1389 = vmatprep.subr.bf16.mxu0 0
    %1390 = vmatpush1.bf16.msra.mxu0 0
    %1391 = vmatprep.subr.bf16.mxu0 0
    %1392 = vmatpush1.bf16.msra.mxu0 0
    %1393 = vmatprep.subr.bf16.mxu0 0
    %1394 = vmatpush1.bf16.msra.mxu0 0
    %1395 = vmatprep.subr.bf16.mxu0 0
    %1396 = vmatpush1.bf16.msra.mxu0 0
    %1397 = vmatprep.subr.bf16.mxu0 0
    %1398 = vmatpush1.bf16.msra.mxu0 0
    %1399 = vmatprep.subr.bf16.mxu0 0
    %1400 = vmatpush1.bf16.msra.mxu0 0
    %1401 = vmatprep.subr.bf16.mxu0 0
    %1402 = vmatpush1.bf16.msra.mxu0 0
    %1403 = vmatprep.subr.bf16.mxu0 0
    %1404 = vmatpush1.bf16.msra.mxu0 0
    %1405 = vmatprep.subr.bf16.mxu0 0
    %1406 = vmatpush1.bf16.msra.mxu0 0
    %1407 = vmatprep.subr.bf16.mxu0 0
    %1408 = vmatpush1.bf16.msra.mxu0 0
    %1409 = vmatprep.subr.bf16.mxu0 0
    %1410 = vmatpush1.bf16.msra.mxu0 0
    %1411 = vmatprep.subr.bf16.mxu0 0
    %1412 = vmatpush1.bf16.msra.mxu0 0
    %1413 = vmatprep.subr.bf16.mxu0 0
    %1414 = vmatpush1.bf16.msra.mxu0 0
    %1415 = vmatprep.mubr.bf16.mxu0 0
    %1416 = vmatmul.mubr.bf16.gmra.mrb[0].mxu0 %v1381
    %v1417 = vpop.f32.mrb[0].mxu0
    %v1418 = vadd.f32 %v1367, %v1417
    %v1419 = vpop.f32.mrb[0].mxu0
    %v1420 = vpop.f32.mrb[0].mxu0
    %v1421 = vadd.f32 %v1367, %v1420
    %v1422 = vpop.f32.mrb[0].mxu0
    %1423 = vdwg.mxu0
    %v1424 = vlaneseq
    %v1425 = vshrl.u32 %v1424, 7
    %v1426 = vsub.s32 1, %v1425
    %v1427 = vrot.slane %v164, %v1426
    %v1432 = vunpack.c.l.b16 %v1335
    %v1433 = vunpack.c.l.b16 %v1336
    %v1434 = vunpack.c.l.b16 %v1337
    %v1435 = vunpack.c.l.b16 %v1338
    %v1436 = vpack.c.b16 %v1433, %v1432
    %v1437 = vpack.c.b16 %v1435, %v1434
    %1440 = vmatprep.subr.bf16.mxu0 0
    %1441 = vmatpush1.bf16.msra.mxu0 %v1436
    %1442 = vmatprep.subr.bf16.mxu0 0
    %1443 = vmatpush1.bf16.msra.mxu0 %v1437
    %1444 = vmatprep.subr.bf16.mxu0 0
    %1445 = vmatpush1.bf16.msra.mxu0 0
    %1446 = vmatprep.subr.bf16.mxu0 0
    %1447 = vmatpush1.bf16.msra.mxu0 0
    %1448 = vmatprep.subr.bf16.mxu0 0
    %1449 = vmatpush1.bf16.msra.mxu0 0
    %1450 = vmatprep.subr.bf16.mxu0 0
    %1451 = vmatpush1.bf16.msra.mxu0 0
    %1452 = vmatprep.subr.bf16.mxu0 0
    %1453 = vmatpush1.bf16.msra.mxu0 0
    %1454 = vmatprep.subr.bf16.mxu0 0
    %1455 = vmatpush1.bf16.msra.mxu0 0
    %1456 = vmatprep.subr.bf16.mxu0 0
    %1457 = vmatpush1.bf16.msra.mxu0 0
    %1458 = vmatprep.subr.bf16.mxu0 0
    %1459 = vmatpush1.bf16.msra.mxu0 0
    %1460 = vmatprep.subr.bf16.mxu0 0
    %1461 = vmatpush1.bf16.msra.mxu0 0
    %1462 = vmatprep.subr.bf16.mxu0 0
    %1463 = vmatpush1.bf16.msra.mxu0 0
    %1464 = vmatprep.subr.bf16.mxu0 0
    %1465 = vmatpush1.bf16.msra.mxu0 0
    %1466 = vmatprep.subr.bf16.mxu0 0
    %1467 = vmatpush1.bf16.msra.mxu0 0
    %1468 = vmatprep.subr.bf16.mxu0 0
    %1469 = vmatpush1.bf16.msra.mxu0 0
    %1470 = vmatprep.subr.bf16.mxu0 0
    %1471 = vmatpush1.bf16.msra.mxu0 0
    %1472 = vmatprep.mubr.bf16.mxu0 0
    %1473 = vmatmul.mubr.bf16.gmra.mrb[0].mxu0 %v1381
    %v1474 = vpop.f32.mrb[0].mxu0
    %v1475 = vadd.f32 %v1427, %v1474
    %v1476 = vpop.f32.mrb[0].mxu0
    %v1477 = vpop.f32.mrb[0].mxu0
    %v1478 = vadd.f32 %v1427, %v1477
    %v1479 = vpop.f32.mrb[0].mxu0
    %1480 = vdwg.mxu0
    %v1481 = vlaneseq
    %v1482 = vshrl.u32 %v1481, 7
    %v1483 = vsub.s32 1, %v1482
    %v1484 = vrot.slane %v165, %v1483
    %v1489 = vunpack.c.l.b16 %v1340
    %v1490 = vunpack.c.l.b16 %v1341
    %v1491 = vunpack.c.l.b16 %v1342
    %v1492 = vunpack.c.l.b16 %v1343
    %v1493 = vpack.c.b16 %v1490, %v1489
    %v1494 = vpack.c.b16 %v1492, %v1491
    %1497 = vmatprep.subr.bf16.mxu0 0
    %1498 = vmatpush1.bf16.msra.mxu0 %v1493
    %1499 = vmatprep.subr.bf16.mxu0 0
    %1500 = vmatpush1.bf16.msra.mxu0 %v1494
    %1501 = vmatprep.subr.bf16.mxu0 0
    %1502 = vmatpush1.bf16.msra.mxu0 0
    %1503 = vmatprep.subr.bf16.mxu0 0
    %1504 = vmatpush1.bf16.msra.mxu0 0
    %1505 = vmatprep.subr.bf16.mxu0 0
    %1506 = vmatpush1.bf16.msra.mxu0 0
    %1507 = vmatprep.subr.bf16.mxu0 0
    %1508 = vmatpush1.bf16.msra.mxu0 0
    %1509 = vmatprep.subr.bf16.mxu0 0
    %1510 = vmatpush1.bf16.msra.mxu0 0
    %1511 = vmatprep.subr.bf16.mxu0 0
    %1512 = vmatpush1.bf16.msra.mxu0 0
    %1513 = vmatprep.subr.bf16.mxu0 0
    %1514 = vmatpush1.bf16.msra.mxu0 0
    %1515 = vmatprep.subr.bf16.mxu0 0
    %1516 = vmatpush1.bf16.msra.mxu0 0
    %1517 = vmatprep.subr.bf16.mxu0 0
    %1518 = vmatpush1.bf16.msra.mxu0 0
    %1519 = vmatprep.subr.bf16.mxu0 0
    %1520 = vmatpush1.bf16.msra.mxu0 0
    %1521 = vmatprep.subr.bf16.mxu0 0
    %1522 = vmatpush1.bf16.msra.mxu0 0
    %1523 = vmatprep.subr.bf16.mxu0 0
    %1524 = vmatpush1.bf16.msra.mxu0 0
    %1525 = vmatprep.subr.bf16.mxu0 0
    %1526 = vmatpush1.bf16.msra.mxu0 0
    %1527 = vmatprep.subr.bf16.mxu0 0
    %1528 = vmatpush1.bf16.msra.mxu0 0
    %1529 = vmatprep.mubr.bf16.mxu0 0
    %1530 = vmatmul.mubr.bf16.gmra.mrb[0].mxu0 %v1381
    %v1531 = vpop.f32.mrb[0].mxu0
    %v1532 = vadd.f32 %v1484, %v1531
    %v1533 = vpop.f32.mrb[0].mxu0
    %v1534 = vpop.f32.mrb[0].mxu0
    %v1535 = vadd.f32 %v1484, %v1534
    %v1536 = vpop.f32.mrb[0].mxu0
    %1537 = vdwg.mxu0
    %v1538 = vmul.f32 %v1418, 0.35355338
    %v1539 = vmul.f32 %v1421, 0.35355338
    %1540 = vxpose.xlu0.b32.start [1/16] %v1475, 128
    %1541 = vxpose.xlu0.b32.cont [2/16] %v1478, 128
    %1542 = vxpose.xlu0.b32.cont [3/16] 0.0, 128
    %1543 = vxpose.xlu0.b32.cont [4/16] 0.0, 128
    %1544 = vxpose.xlu0.b32.cont [5/16] 0.0, 128
    %1545 = vxpose.xlu0.b32.cont [6/16] 0.0, 128
    %1546 = vxpose.xlu0.b32.cont [7/16] 0.0, 128
    %1547 = vxpose.xlu0.b32.cont [8/16] 0.0, 128
    %1548 = vxpose.xlu0.b32.cont [9/16] 0.0, 128
    %1549 = vxpose.xlu0.b32.cont [10/16] 0.0, 128
    %1550 = vxpose.xlu0.b32.cont [11/16] 0.0, 128
    %1551 = vxpose.xlu0.b32.cont [12/16] 0.0, 128
    %1552 = vxpose.xlu0.b32.cont [13/16] 0.0, 128
    %1553 = vxpose.xlu0.b32.cont [14/16] 0.0, 128
    %1554 = vxpose.xlu0.b32.cont [15/16] 0.0, 128
    %1555 = vxpose.xlu0.b32.end [16/16] 0.0, 128
    %v1556 = vpop.trf.xlu0
    %v1557 = vpop.trf.xlu0
    %v1558 = vpop.trf.xlu0
    %v1559 = vpop.trf.xlu0
    %v1560 = vpop.trf.xlu0
    %v1561 = vpop.trf.xlu0
    %v1562 = vpop.trf.xlu0
    %v1563 = vpop.trf.xlu0
    %v1564 = vpop.trf.xlu0
    %v1565 = vpop.trf.xlu0
    %v1566 = vpop.trf.xlu0
    %v1567 = vpop.trf.xlu0
    %v1568 = vpop.trf.xlu0
    %v1569 = vpop.trf.xlu0
    %v1570 = vpop.trf.xlu0
    %v1571 = vpop.trf.xlu0
    %v1572 = vpack.c.bf16 %v1539, %v1538
    %v1573 = vpack.c.bf16 %v1556, %v1556
    %v1574 = vpack.c.bf16 %v1535, %v1532
    %v1576 = vsel %vm414, %v1572, 0
    %v1579 = vsel %vm418, %v1573, 0
    %1581 = vmatprep.subr.bf16.mxu0 0
    %1582 = vmatpush1.bf16.msra.mxu0 %v1579
    %1583 = vmatprep.subr.bf16.mxu0 0
    %1584 = vmatpush1.bf16.msra.mxu0 0
    %1585 = vmatprep.subr.bf16.mxu0 0
    %1586 = vmatpush1.bf16.msra.mxu0 0
    %1587 = vmatprep.subr.bf16.mxu0 0
    %1588 = vmatpush1.bf16.msra.mxu0 0
    %1589 = vmatprep.subr.bf16.mxu0 0
    %1590 = vmatpush1.bf16.msra.mxu0 0
    %1591 = vmatprep.subr.bf16.mxu0 0
    %1592 = vmatpush1.bf16.msra.mxu0 0
    %1593 = vmatprep.subr.bf16.mxu0 0
    %1594 = vmatpush1.bf16.msra.mxu0 0
    %1595 = vmatprep.subr.bf16.mxu0 0
    %1596 = vmatpush1.bf16.msra.mxu0 0
    %1597 = vmatprep.subr.bf16.mxu0 0
    %1598 = vmatpush1.bf16.msra.mxu0 0
    %1599 = vmatprep.subr.bf16.mxu0 0
    %1600 = vmatpush1.bf16.msra.mxu0 0
    %1601 = vmatprep.subr.bf16.mxu0 0
    %1602 = vmatpush1.bf16.msra.mxu0 0
    %1603 = vmatprep.subr.bf16.mxu0 0
    %1604 = vmatpush1.bf16.msra.mxu0 0
    %1605 = vmatprep.subr.bf16.mxu0 0
    %1606 = vmatpush1.bf16.msra.mxu0 0
    %1607 = vmatprep.subr.bf16.mxu0 0
    %1608 = vmatpush1.bf16.msra.mxu0 0
    %1609 = vmatprep.subr.bf16.mxu0 0
    %1610 = vmatpush1.bf16.msra.mxu0 0
    %1611 = vmatprep.subr.bf16.mxu0 0
    %1612 = vmatpush1.bf16.msra.mxu0 0
    %1613 = vmatprep.mubr.bf16.mxu0 0
    %1614 = vmatmul.mubr.bf16.gmra.mrb[0].mxu0 %v1576
    %v1615 = vpop.f32.mrb[0].mxu0
    %v1616 = vadd.f32 %v161, %v1615
    %v1617 = vpop.f32.mrb[0].mxu0
    %v1618 = vpop.f32.mrb[0].mxu0
    %v1619 = vadd.f32 %v162, %v1618
    %v1620 = vpop.f32.mrb[0].mxu0
    %1621 = vdwg.mxu0
    %v1622 = vsel %vm463, %v1616, -inf
    %1623 = vmax.xlane.f32.xlu0 %v1622
    %v1624 = vpop.xlane.xlu0 %1623
    %v1625 = vsel %vm463, %v1619, -inf
    %1626 = vmax.xlane.f32.xlu0 %v1625
    %v1627 = vpop.xlane.xlu0 %1626
    %v1628 = vsub.f32 %v1616, %v1624
    %v1629 = vsub.f32 %v1619, %v1627
    %v1630 = vmul.f32 %v1628, 1.442695
    %v1631 = vpow.pop %v1630
    %v1632 = vmul.f32 %v1629, 1.442695
    %v1633 = vpow.pop %v1632
    %v1634 = vsel %vm463, %v1631, 0.0
    %1635 = vadd.xlane.f32.xlu0 %v1634
    %v1636 = vpop.xlane.xlu0 %1635
    %v1637 = vsel %vm463, %v1633, 0.0
    %1638 = vadd.xlane.f32.xlu0 %v1637
    %v1639 = vpop.xlane.xlu0 %1638
    %v1640 = vrcp.pop %v1636
    %v1641 = vmul.f32 %v1631, %v1640
    %v1642 = vrcp.pop %v1639
    %v1643 = vmul.f32 %v1633, %v1642
    %v1644 = vpack.c.bf16 %v1643, %v1641
    %v1646 = vsel %vm463, %v1644, 0
    %1648 = vmatprep.subr.bf16.mxu0 0
    %1649 = vmatpush1.bf16.msra.mxu0 %v1574
    %1650 = vmatprep.subr.bf16.mxu0 0
    %1651 = vmatpush1.bf16.msra.mxu0 0
    %1652 = vmatprep.subr.bf16.mxu0 0
    %1653 = vmatpush1.bf16.msra.mxu0 0
    %1654 = vmatprep.subr.bf16.mxu0 0
    %1655 = vmatpush1.bf16.msra.mxu0 0
    %1656 = vmatprep.subr.bf16.mxu0 0
    %1657 = vmatpush1.bf16.msra.mxu0 0
    %1658 = vmatprep.subr.bf16.mxu0 0
    %1659 = vmatpush1.bf16.msra.mxu0 0
    %1660 = vmatprep.subr.bf16.mxu0 0
    %1661 = vmatpush1.bf16.msra.mxu0 0
    %1662 = vmatprep.subr.bf16.mxu0 0
    %1663 = vmatpush1.bf16.msra.mxu0 0
    %1664 = vmatprep.subr.bf16.mxu0 0
    %1665 = vmatpush1.bf16.msra.mxu0 0
    %1666 = vmatprep.subr.bf16.mxu0 0
    %1667 = vmatpush1.bf16.msra.mxu0 0
    %1668 = vmatprep.subr.bf16.mxu0 0
    %1669 = vmatpush1.bf16.msra.mxu0 0
    %1670 = vmatprep.subr.bf16.mxu0 0
    %1671 = vmatpush1.bf16.msra.mxu0 0
    %1672 = vmatprep.subr.bf16.mxu0 0
    %1673 = vmatpush1.bf16.msra.mxu0 0
    %1674 = vmatprep.subr.bf16.mxu0 0
    %1675 = vmatpush1.bf16.msra.mxu0 0
    %1676 = vmatprep.subr.bf16.mxu0 0
    %1677 = vmatpush1.bf16.msra.mxu0 0
    %1678 = vmatprep.subr.bf16.mxu0 0
    %1679 = vmatpush1.bf16.msra.mxu0 0
    %1680 = vmatprep.mubr.bf16.mxu0 0
    %1681 = vmatmul.mubr.bf16.gmra.mrb[0].mxu0 %v1646
    %v1682 = vpop.f32.mrb[0].mxu0
    %v1683 = vadd.f32 0.0, %v1682
    %v1684 = vpop.f32.mrb[0].mxu0
    %v1685 = vpop.f32.mrb[0].mxu0
    %v1686 = vadd.f32 0.0, %v1685
    %v1687 = vpop.f32.mrb[0].mxu0
    %1688 = vdwg.mxu0
    %v1689 = vpack.c.bf16 %v1686, %v1683
    %v1690 = vpack.c.bf16 %v1557, %v1557
    %1692 = vrot.lane.b32.xlu0 %v1572, 120
    %v1693 = vpop.permute.xlu0 %1692
    %v1695 = vsel %vm414, %v1693, 0
    %v1698 = vsel %vm418, %v1690, 0
    %1700 = vmatprep.subr.bf16.mxu0 0
    %1701 = vmatpush1.bf16.msra.mxu0 %v1698
    %1702 = vmatprep.subr.bf16.mxu0 0
    %1703 = vmatpush1.bf16.msra.mxu0 0
    %1704 = vmatprep.subr.bf16.mxu0 0
    %1705 = vmatpush1.bf16.msra.mxu0 0
    %1706 = vmatprep.subr.bf16.mxu0 0
    %1707 = vmatpush1.bf16.msra.mxu0 0
    %1708 = vmatprep.subr.bf16.mxu0 0
    %1709 = vmatpush1.bf16.msra.mxu0 0
    %1710 = vmatprep.subr.bf16.mxu0 0
    %1711 = vmatpush1.bf16.msra.mxu0 0
    %1712 = vmatprep.subr.bf16.mxu0 0
    %1713 = vmatpush1.bf16.msra.mxu0 0
    %1714 = vmatprep.subr.bf16.mxu0 0
    %1715 = vmatpush1.bf16.msra.mxu0 0
    %1716 = vmatprep.subr.bf16.mxu0 0
    %1717 = vmatpush1.bf16.msra.mxu0 0
    %1718 = vmatprep.subr.bf16.mxu0 0
    %1719 = vmatpush1.bf16.msra.mxu0 0
    %1720 = vmatprep.subr.bf16.mxu0 0
    %1721 = vmatpush1.bf16.msra.mxu0 0
    %1722 = vmatprep.subr.bf16.mxu0 0
    %1723 = vmatpush1.bf16.msra.mxu0 0
    %1724 = vmatprep.subr.bf16.mxu0 0
    %1725 = vmatpush1.bf16.msra.mxu0 0
    %1726 = vmatprep.subr.bf16.mxu0 0
    %1727 = vmatpush1.bf16.msra.mxu0 0
    %1728 = vmatprep.subr.bf16.mxu0 0
    %1729 = vmatpush1.bf16.msra.mxu0 0
    %1730 = vmatprep.subr.bf16.mxu0 0
    %1731 = vmatpush1.bf16.msra.mxu0 0
    %1732 = vmatprep.mubr.bf16.mxu0 0
    %1733 = vmatmul.mubr.bf16.gmra.mrb[0].mxu0 %v1695
    %v1734 = vpop.f32.mrb[0].mxu0
    %v1735 = vadd.f32 %v161, %v1734
    %v1736 = vpop.f32.mrb[0].mxu0
    %v1737 = vpop.f32.mrb[0].mxu0
    %v1738 = vadd.f32 %v162, %v1737
    %v1739 = vpop.f32.mrb[0].mxu0
    %1740 = vdwg.mxu0
    %v1741 = vsel %vm463, %v1735, -inf
    %1742 = vmax.xlane.f32.xlu0 %v1741
    %v1743 = vpop.xlane.xlu0 %1742
    %v1744 = vsel %vm463, %v1738, -inf
    %1745 = vmax.xlane.f32.xlu0 %v1744
    %v1746 = vpop.xlane.xlu0 %1745
    %v1747 = vsub.f32 %v1735, %v1743
    %v1748 = vsub.f32 %v1738, %v1746
    %v1749 = vmul.f32 %v1747, 1.442695
    %v1750 = vpow.pop %v1749
    %v1751 = vmul.f32 %v1748, 1.442695
    %v1752 = vpow.pop %v1751
    %v1753 = vsel %vm463, %v1750, 0.0
    %1754 = vadd.xlane.f32.xlu0 %v1753
    %v1755 = vpop.xlane.xlu0 %1754
    %v1756 = vsel %vm463, %v1752, 0.0
    %1757 = vadd.xlane.f32.xlu0 %v1756
    %v1758 = vpop.xlane.xlu0 %1757
    %v1759 = vrcp.pop %v1755
    %v1760 = vmul.f32 %v1750, %v1759
    %v1761 = vrcp.pop %v1758
    %v1762 = vmul.f32 %v1752, %v1761
    %v1763 = vpack.c.bf16 %v1762, %v1760
    %1765 = vrot.lane.b32.xlu0 %v1574, 120
    %v1766 = vpop.permute.xlu0 %1765
    %v1769 = vsel %vm463, %v1763, 0
    %1771 = vmatprep.subr.bf16.mxu0 0
    %1772 = vmatpush1.bf16.msra.mxu0 %v1766
    %1773 = vmatprep.subr.bf16.mxu0 0
    %1774 = vmatpush1.bf16.msra.mxu0 0
    %1775 = vmatprep.subr.bf16.mxu0 0
    %1776 = vmatpush1.bf16.msra.mxu0 0
    %1777 = vmatprep.subr.bf16.mxu0 0
    %1778 = vmatpush1.bf16.msra.mxu0 0
    %1779 = vmatprep.subr.bf16.mxu0 0
    %1780 = vmatpush1.bf16.msra.mxu0 0
    %1781 = vmatprep.subr.bf16.mxu0 0
    %1782 = vmatpush1.bf16.msra.mxu0 0
    %1783 = vmatprep.subr.bf16.mxu0 0
    %1784 = vmatpush1.bf16.msra.mxu0 0
    %1785 = vmatprep.subr.bf16.mxu0 0
    %1786 = vmatpush1.bf16.msra.mxu0 0
    %1787 = vmatprep.subr.bf16.mxu0 0
    %1788 = vmatpush1.bf16.msra.mxu0 0
    %1789 = vmatprep.subr.bf16.mxu0 0
    %1790 = vmatpush1.bf16.msra.mxu0 0
    %1791 = vmatprep.subr.bf16.mxu0 0
    %1792 = vmatpush1.bf16.msra.mxu0 0
    %1793 = vmatprep.subr.bf16.mxu0 0
    %1794 = vmatpush1.bf16.msra.mxu0 0
    %1795 = vmatprep.subr.bf16.mxu0 0
    %1796 = vmatpush1.bf16.msra.mxu0 0
    %1797 = vmatprep.subr.bf16.mxu0 0
    %1798 = vmatpush1.bf16.msra.mxu0 0
    %1799 = vmatprep.subr.bf16.mxu0 0
    %1800 = vmatpush1.bf16.msra.mxu0 0
    %1801 = vmatprep.subr.bf16.mxu0 0
    %1802 = vmatpush1.bf16.msra.mxu0 0
    %1803 = vmatprep.mubr.bf16.mxu0 0
    %1804 = vmatmul.mubr.bf16.gmra.mrb[0].mxu0 %v1769
    %v1805 = vpop.f32.mrb[0].mxu0
    %v1806 = vadd.f32 0.0, %v1805
    %v1807 = vpop.f32.mrb[0].mxu0
    %v1808 = vpop.f32.mrb[0].mxu0
    %v1809 = vadd.f32 0.0, %v1808
    %v1810 = vpop.f32.mrb[0].mxu0
    %1811 = vdwg.mxu0
    %v1812 = vpack.c.bf16 %v1809, %v1806
    %v1814 = vsel %vm414, %v1812, 0
    %v1817 = vsel %vm418, %v1346, 0
    %1819 = vmatprep.subr.bf16.mxu0 0
    %1820 = vmatpush1.bf16.msra.mxu0 %v1817
    %1821 = vmatprep.subr.bf16.mxu0 0
    %1822 = vmatpush1.bf16.msra.mxu0 0
    %1823 = vmatprep.subr.bf16.mxu0 0
    %1824 = vmatpush1.bf16.msra.mxu0 0
    %1825 = vmatprep.subr.bf16.mxu0 0
    %1826 = vmatpush1.bf16.msra.mxu0 0
    %1827 = vmatprep.subr.bf16.mxu0 0
    %1828 = vmatpush1.bf16.msra.mxu0 0
    %1829 = vmatprep.subr.bf16.mxu0 0
    %1830 = vmatpush1.bf16.msra.mxu0 0
    %1831 = vmatprep.subr.bf16.mxu0 0
    %1832 = vmatpush1.bf16.msra.mxu0 0
    %1833 = vmatprep.subr.bf16.mxu0 0
    %1834 = vmatpush1.bf16.msra.mxu0 0
    %1835 = vmatprep.subr.bf16.mxu0 0
    %1836 = vmatpush1.bf16.msra.mxu0 0
    %1837 = vmatprep.subr.bf16.mxu0 0
    %1838 = vmatpush1.bf16.msra.mxu0 0
    %1839 = vmatprep.subr.bf16.mxu0 0
    %1840 = vmatpush1.bf16.msra.mxu0 0
    %1841 = vmatprep.subr.bf16.mxu0 0
    %1842 = vmatpush1.bf16.msra.mxu0 0
    %1843 = vmatprep.subr.bf16.mxu0 0
    %1844 = vmatpush1.bf16.msra.mxu0 0
    %1845 = vmatprep.subr.bf16.mxu0 0
    %1846 = vmatpush1.bf16.msra.mxu0 0
    %1847 = vmatprep.subr.bf16.mxu0 0
    %1848 = vmatpush1.bf16.msra.mxu0 0
    %1849 = vmatprep.subr.bf16.mxu0 0
    %1850 = vmatpush1.bf16.msra.mxu0 0
    %1851 = vmatprep.mubr.bf16.mxu0 0
    %1852 = vmatmul.mubr.bf16.gmra.mrb[0].mxu0 %v1814
    %v1853 = vpop.f32.mrb[0].mxu0
    %v1854 = vadd.f32 0.0, %v1853
    %v1855 = vpop.f32.mrb[0].mxu0
    %v1856 = vpop.f32.mrb[0].mxu0
    %v1857 = vadd.f32 0.0, %v1856
    %v1858 = vpop.f32.mrb[0].mxu0
    %1859 = vdwg.mxu0
    %v1861 = vsel %vm414, %v1689, 0
    %v1864 = vsel %vm418, %v1345, 0
    %1866 = vmatprep.subr.bf16.mxu0 0
    %1867 = vmatpush1.bf16.msra.mxu0 %v1864
    %1868 = vmatprep.subr.bf16.mxu0 0
    %1869 = vmatpush1.bf16.msra.mxu0 0
    %1870 = vmatprep.subr.bf16.mxu0 0
    %1871 = vmatpush1.bf16.msra.mxu0 0
    %1872 = vmatprep.subr.bf16.mxu0 0
    %1873 = vmatpush1.bf16.msra.mxu0 0
    %1874 = vmatprep.subr.bf16.mxu0 0
    %1875 = vmatpush1.bf16.msra.mxu0 0
    %1876 = vmatprep.subr.bf16.mxu0 0
    %1877 = vmatpush1.bf16.msra.mxu0 0
    %1878 = vmatprep.subr.bf16.mxu0 0
    %1879 = vmatpush1.bf16.msra.mxu0 0
    %1880 = vmatprep.subr.bf16.mxu0 0
    %1881 = vmatpush1.bf16.msra.mxu0 0
    %1882 = vmatprep.subr.bf16.mxu0 0
    %1883 = vmatpush1.bf16.msra.mxu0 0
    %1884 = vmatprep.subr.bf16.mxu0 0
    %1885 = vmatpush1.bf16.msra.mxu0 0
    %1886 = vmatprep.subr.bf16.mxu0 0
    %1887 = vmatpush1.bf16.msra.mxu0 0
    %1888 = vmatprep.subr.bf16.mxu0 0
    %1889 = vmatpush1.bf16.msra.mxu0 0
    %1890 = vmatprep.subr.bf16.mxu0 0
    %1891 = vmatpush1.bf16.msra.mxu0 0
    %1892 = vmatprep.subr.bf16.mxu0 0
    %1893 = vmatpush1.bf16.msra.mxu0 0
    %1894 = vmatprep.subr.bf16.mxu0 0
    %1895 = vmatpush1.bf16.msra.mxu0 0
    %1896 = vmatprep.subr.bf16.mxu0 0
    %1897 = vmatpush1.bf16.msra.mxu0 0
    %1898 = vmatprep.mubr.bf16.mxu0 0
    %1899 = vmatmul.mubr.bf16.gmra.mrb[0].mxu0 %v1861
    %v1900 = vpop.f32.mrb[0].mxu0
    %v1901 = vadd.f32 %v1854, %v1900
    %v1902 = vpop.f32.mrb[0].mxu0
    %v1903 = vpop.f32.mrb[0].mxu0
    %v1904 = vadd.f32 %v1857, %v1903
    %v1905 = vpop.f32.mrb[0].mxu0
    %1906 = vdwg.mxu0
    %v1907 = vpack.c.bf16 %v1558, %v1558
    %1908 = vrot.lane.b32.xlu0 %v1572, 112
    %v1909 = vpop.permute.xlu0 %1908
    %v1911 = vsel %vm414, %v1909, 0
    %v1914 = vsel %vm418, %v1907, 0
    %1916 = vmatprep.subr.bf16.mxu0 0
    %1917 = vmatpush1.bf16.msra.mxu0 %v1914
    %1918 = vmatprep.subr.bf16.mxu0 0
    %1919 = vmatpush1.bf16.msra.mxu0 0
    %1920 = vmatprep.subr.bf16.mxu0 0
    %1921 = vmatpush1.bf16.msra.mxu0 0
    %1922 = vmatprep.subr.bf16.mxu0 0
    %1923 = vmatpush1.bf16.msra.mxu0 0
    %1924 = vmatprep.subr.bf16.mxu0 0
    %1925 = vmatpush1.bf16.msra.mxu0 0
    %1926 = vmatprep.subr.bf16.mxu0 0
    %1927 = vmatpush1.bf16.msra.mxu0 0
    %1928 = vmatprep.subr.bf16.mxu0 0
    %1929 = vmatpush1.bf16.msra.mxu0 0
    %1930 = vmatprep.subr.bf16.mxu0 0
    %1931 = vmatpush1.bf16.msra.mxu0 0
    %1932 = vmatprep.subr.bf16.mxu0 0
    %1933 = vmatpush1.bf16.msra.mxu0 0
    %1934 = vmatprep.subr.bf16.mxu0 0
    %1935 = vmatpush1.bf16.msra.mxu0 0
    %1936 = vmatprep.subr.bf16.mxu0 0
    %1937 = vmatpush1.bf16.msra.mxu0 0
    %1938 = vmatprep.subr.bf16.mxu0 0
    %1939 = vmatpush1.bf16.msra.mxu0 0
    %1940 = vmatprep.subr.bf16.mxu0 0
    %1941 = vmatpush1.bf16.msra.mxu0 0
    %1942 = vmatprep.subr.bf16.mxu0 0
    %1943 = vmatpush1.bf16.msra.mxu0 0
    %1944 = vmatprep.subr.bf16.mxu0 0
    %1945 = vmatpush1.bf16.msra.mxu0 0
    %1946 = vmatprep.subr.bf16.mxu0 0
    %1947 = vmatpush1.bf16.msra.mxu0 0
    %1948 = vmatprep.mubr.bf16.mxu0 0
    %1949 = vmatmul.mubr.bf16.gmra.mrb[0].mxu0 %v1911
    %v1950 = vpop.f32.mrb[0].mxu0
    %v1951 = vadd.f32 %v161, %v1950
    %v1952 = vpop.f32.mrb[0].mxu0
    %v1953 = vpop.f32.mrb[0].mxu0
    %v1954 = vadd.f32 %v162, %v1953
    %v1955 = vpop.f32.mrb[0].mxu0
    %1956 = vdwg.mxu0
    %v1957 = vsel %vm463, %v1951, -inf
    %1958 = vmax.xlane.f32.xlu0 %v1957
    %v1959 = vpop.xlane.xlu0 %1958
    %v1960 = vsel %vm463, %v1954, -inf
    %1961 = vmax.xlane.f32.xlu0 %v1960
    %v1962 = vpop.xlane.xlu0 %1961
    %v1963 = vsub.f32 %v1951, %v1959
    %v1964 = vsub.f32 %v1954, %v1962
    %v1965 = vmul.f32 %v1963, 1.442695
    %v1966 = vpow.pop %v1965
    %v1967 = vmul.f32 %v1964, 1.442695
    %v1968 = vpow.pop %v1967
    %v1969 = vsel %vm463, %v1966, 0.0
    %1970 = vadd.xlane.f32.xlu0 %v1969
    %v1971 = vpop.xlane.xlu0 %1970
    %v1972 = vsel %vm463, %v1968, 0.0
    %1973 = vadd.xlane.f32.xlu0 %v1972
    %v1974 = vpop.xlane.xlu0 %1973
    %v1975 = vrcp.pop %v1971
    %v1976 = vmul.f32 %v1966, %v1975
    %v1977 = vrcp.pop %v1974
    %v1978 = vmul.f32 %v1968, %v1977
    %v1979 = vpack.c.bf16 %v1978, %v1976
    %1980 = vrot.lane.b32.xlu0 %v1574, 112
    %v1981 = vpop.permute.xlu0 %1980
    %v1984 = vsel %vm463, %v1979, 0
    %1986 = vmatprep.subr.bf16.mxu0 0
    %1987 = vmatpush1.bf16.msra.mxu0 %v1981
    %1988 = vmatprep.subr.bf16.mxu0 0
    %1989 = vmatpush1.bf16.msra.mxu0 0
    %1990 = vmatprep.subr.bf16.mxu0 0
    %1991 = vmatpush1.bf16.msra.mxu0 0
    %1992 = vmatprep.subr.bf16.mxu0 0
    %1993 = vmatpush1.bf16.msra.mxu0 0
    %1994 = vmatprep.subr.bf16.mxu0 0
    %1995 = vmatpush1.bf16.msra.mxu0 0
    %1996 = vmatprep.subr.bf16.mxu0 0
    %1997 = vmatpush1.bf16.msra.mxu0 0
    %1998 = vmatprep.subr.bf16.mxu0 0
    %1999 = vmatpush1.bf16.msra.mxu0 0
    %2000 = vmatprep.subr.bf16.mxu0 0
    %2001 = vmatpush1.bf16.msra.mxu0 0
    %2002 = vmatprep.subr.bf16.mxu0 0
    %2003 = vmatpush1.bf16.msra.mxu0 0
    %2004 = vmatprep.subr.bf16.mxu0 0
    %2005 = vmatpush1.bf16.msra.mxu0 0
    %2006 = vmatprep.subr.bf16.mxu0 0
    %2007 = vmatpush1.bf16.msra.mxu0 0
    %2008 = vmatprep.subr.bf16.mxu0 0
    %2009 = vmatpush1.bf16.msra.mxu0 0
    %2010 = vmatprep.subr.bf16.mxu0 0
    %2011 = vmatpush1.bf16.msra.mxu0 0
    %2012 = vmatprep.subr.bf16.mxu0 0
    %2013 = vmatpush1.bf16.msra.mxu0 0
    %2014 = vmatprep.subr.bf16.mxu0 0
    %2015 = vmatpush1.bf16.msra.mxu0 0
    %2016 = vmatprep.subr.bf16.mxu0 0
    %2017 = vmatpush1.bf16.msra.mxu0 0
    %2018 = vmatprep.mubr.bf16.mxu0 0
    %2019 = vmatmul.mubr.bf16.gmra.mrb[0].mxu0 %v1984
    %v2020 = vpop.f32.mrb[0].mxu0
    %v2021 = vadd.f32 0.0, %v2020
    %v2022 = vpop.f32.mrb[0].mxu0
    %v2023 = vpop.f32.mrb[0].mxu0
    %v2024 = vadd.f32 0.0, %v2023
    %v2025 = vpop.f32.mrb[0].mxu0
    %2026 = vdwg.mxu0
    %v2027 = vpack.c.bf16 %v2024, %v2021
    %v2029 = vsel %vm414, %v2027, 0
    %v2032 = vsel %vm418, %v1347, 0
    %2034 = vmatprep.subr.bf16.mxu0 0
    %2035 = vmatpush1.bf16.msra.mxu0 %v2032
    %2036 = vmatprep.subr.bf16.mxu0 0
    %2037 = vmatpush1.bf16.msra.mxu0 0
    %2038 = vmatprep.subr.bf16.mxu0 0
    %2039 = vmatpush1.bf16.msra.mxu0 0
    %2040 = vmatprep.subr.bf16.mxu0 0
    %2041 = vmatpush1.bf16.msra.mxu0 0
    %2042 = vmatprep.subr.bf16.mxu0 0
    %2043 = vmatpush1.bf16.msra.mxu0 0
    %2044 = vmatprep.subr.bf16.mxu0 0
    %2045 = vmatpush1.bf16.msra.mxu0 0
    %2046 = vmatprep.subr.bf16.mxu0 0
    %2047 = vmatpush1.bf16.msra.mxu0 0
    %2048 = vmatprep.subr.bf16.mxu0 0
    %2049 = vmatpush1.bf16.msra.mxu0 0
    %2050 = vmatprep.subr.bf16.mxu0 0
    %2051 = vmatpush1.bf16.msra.mxu0 0
    %2052 = vmatprep.subr.bf16.mxu0 0
    %2053 = vmatpush1.bf16.msra.mxu0 0
    %2054 = vmatprep.subr.bf16.mxu0 0
    %2055 = vmatpush1.bf16.msra.mxu0 0
    %2056 = vmatprep.subr.bf16.mxu0 0
    %2057 = vmatpush1.bf16.msra.mxu0 0
    %2058 = vmatprep.subr.bf16.mxu0 0
    %2059 = vmatpush1.bf16.msra.mxu0 0
    %2060 = vmatprep.subr.bf16.mxu0 0
    %2061 = vmatpush1.bf16.msra.mxu0 0
    %2062 = vmatprep.subr.bf16.mxu0 0
    %2063 = vmatpush1.bf16.msra.mxu0 0
    %2064 = vmatprep.subr.bf16.mxu0 0
    %2065 = vmatpush1.bf16.msra.mxu0 0
    %2066 = vmatprep.mubr.bf16.mxu0 0
    %2067 = vmatmul.mubr.bf16.gmra.mrb[0].mxu0 %v2029
    %v2068 = vpop.f32.mrb[0].mxu0
    %v2069 = vadd.f32 0.0, %v2068
    %v2070 = vpop.f32.mrb[0].mxu0
    %v2071 = vpop.f32.mrb[0].mxu0
    %v2072 = vadd.f32 0.0, %v2071
    %v2073 = vpop.f32.mrb[0].mxu0
    %2074 = vdwg.mxu0
    %v2075 = vadd.f32 %v1901, %v2069
    %v2076 = vadd.f32 %v1904, %v2072
    %v2077 = vpack.c.bf16 %v1559, %v1559
    %2078 = vrot.lane.b32.xlu0 %v1572, 104
    %v2079 = vpop.permute.xlu0 %2078
    %v2081 = vsel %vm414, %v2079, 0
    %v2084 = vsel %vm418, %v2077, 0
    %2086 = vmatprep.subr.bf16.mxu0 0
    %2087 = vmatpush1.bf16.msra.mxu0 %v2084
    %2088 = vmatprep.subr.bf16.mxu0 0
    %2089 = vmatpush1.bf16.msra.mxu0 0
    %2090 = vmatprep.subr.bf16.mxu0 0
    %2091 = vmatpush1.bf16.msra.mxu0 0
    %2092 = vmatprep.subr.bf16.mxu0 0
    %2093 = vmatpush1.bf16.msra.mxu0 0
    %2094 = vmatprep.subr.bf16.mxu0 0
    %2095 = vmatpush1.bf16.msra.mxu0 0
    %2096 = vmatprep.subr.bf16.mxu0 0
    %2097 = vmatpush1.bf16.msra.mxu0 0
    %2098 = vmatprep.subr.bf16.mxu0 0
    %2099 = vmatpush1.bf16.msra.mxu0 0
    %2100 = vmatprep.subr.bf16.mxu0 0
    %2101 = vmatpush1.bf16.msra.mxu0 0
    %2102 = vmatprep.subr.bf16.mxu0 0
    %2103 = vmatpush1.bf16.msra.mxu0 0
    %2104 = vmatprep.subr.bf16.mxu0 0
    %2105 = vmatpush1.bf16.msra.mxu0 0
    %2106 = vmatprep.subr.bf16.mxu0 0
    %2107 = vmatpush1.bf16.msra.mxu0 0
    %2108 = vmatprep.subr.bf16.mxu0 0
    %2109 = vmatpush1.bf16.msra.mxu0 0
    %2110 = vmatprep.subr.bf16.mxu0 0
    %2111 = vmatpush1.bf16.msra.mxu0 0
    %2112 = vmatprep.subr.bf16.mxu0 0
    %2113 = vmatpush1.bf16.msra.mxu0 0
    %2114 = vmatprep.subr.bf16.mxu0 0
    %2115 = vmatpush1.bf16.msra.mxu0 0
    %2116 = vmatprep.subr.bf16.mxu0 0
    %2117 = vmatpush1.bf16.msra.mxu0 0
    %2118 = vmatprep.mubr.bf16.mxu0 0
    %2119 = vmatmul.mubr.bf16.gmra.mrb[0].mxu0 %v2081
    %v2120 = vpop.f32.mrb[0].mxu0
    %v2121 = vadd.f32 %v161, %v2120
    %v2122 = vpop.f32.mrb[0].mxu0
    %v2123 = vpop.f32.mrb[0].mxu0
    %v2124 = vadd.f32 %v162, %v2123
    %v2125 = vpop.f32.mrb[0].mxu0
    %2126 = vdwg.mxu0
    %v2127 = vsel %vm463, %v2121, -inf
    %2128 = vmax.xlane.f32.xlu0 %v2127
    %v2129 = vpop.xlane.xlu0 %2128
    %v2130 = vsel %vm463, %v2124, -inf
    %2131 = vmax.xlane.f32.xlu0 %v2130
    %v2132 = vpop.xlane.xlu0 %2131
    %v2133 = vsub.f32 %v2121, %v2129
    %v2134 = vsub.f32 %v2124, %v2132
    %v2135 = vmul.f32 %v2133, 1.442695
    %v2136 = vpow.pop %v2135
    %v2137 = vmul.f32 %v2134, 1.442695
    %v2138 = vpow.pop %v2137
    %v2139 = vsel %vm463, %v2136, 0.0
    %2140 = vadd.xlane.f32.xlu0 %v2139
    %v2141 = vpop.xlane.xlu0 %2140
    %v2142 = vsel %vm463, %v2138, 0.0
    %2143 = vadd.xlane.f32.xlu0 %v2142
    %v2144 = vpop.xlane.xlu0 %2143
    %v2145 = vrcp.pop %v2141
    %v2146 = vmul.f32 %v2136, %v2145
    %v2147 = vrcp.pop %v2144
    %v2148 = vmul.f32 %v2138, %v2147
    %v2149 = vpack.c.bf16 %v2148, %v2146
    %2150 = vrot.lane.b32.xlu0 %v1574, 104
    %v2151 = vpop.permute.xlu0 %2150
    %v2154 = vsel %vm463, %v2149, 0
    %2156 = vmatprep.subr.bf16.mxu0 0
    %2157 = vmatpush1.bf16.msra.mxu0 %v2151
    %2158 = vmatprep.subr.bf16.mxu0 0
    %2159 = vmatpush1.bf16.msra.mxu0 0
    %2160 = vmatprep.subr.bf16.mxu0 0
    %2161 = vmatpush1.bf16.msra.mxu0 0
    %2162 = vmatprep.subr.bf16.mxu0 0
    %2163 = vmatpush1.bf16.msra.mxu0 0
    %2164 = vmatprep.subr.bf16.mxu0 0
    %2165 = vmatpush1.bf16.msra.mxu0 0
    %2166 = vmatprep.subr.bf16.mxu0 0
    %2167 = vmatpush1.bf16.msra.mxu0 0
    %2168 = vmatprep.subr.bf16.mxu0 0
    %2169 = vmatpush1.bf16.msra.mxu0 0
    %2170 = vmatprep.subr.bf16.mxu0 0
    %2171 = vmatpush1.bf16.msra.mxu0 0
    %2172 = vmatprep.subr.bf16.mxu0 0
    %2173 = vmatpush1.bf16.msra.mxu0 0
    %2174 = vmatprep.subr.bf16.mxu0 0
    %2175 = vmatpush1.bf16.msra.mxu0 0
    %2176 = vmatprep.subr.bf16.mxu0 0
    %2177 = vmatpush1.bf16.msra.mxu0 0
    %2178 = vmatprep.subr.bf16.mxu0 0
    %2179 = vmatpush1.bf16.msra.mxu0 0
    %2180 = vmatprep.subr.bf16.mxu0 0
    %2181 = vmatpush1.bf16.msra.mxu0 0
    %2182 = vmatprep.subr.bf16.mxu0 0
    %2183 = vmatpush1.bf16.msra.mxu0 0
    %2184 = vmatprep.subr.bf16.mxu0 0
    %2185 = vmatpush1.bf16.msra.mxu0 0
    %2186 = vmatprep.subr.bf16.mxu0 0
    %2187 = vmatpush1.bf16.msra.mxu0 0
    %2188 = vmatprep.mubr.bf16.mxu0 0
    %2189 = vmatmul.mubr.bf16.gmra.mrb[0].mxu0 %v2154
    %v2190 = vpop.f32.mrb[0].mxu0
    %v2191 = vadd.f32 0.0, %v2190
    %v2192 = vpop.f32.mrb[0].mxu0
    %v2193 = vpop.f32.mrb[0].mxu0
    %v2194 = vadd.f32 0.0, %v2193
    %v2195 = vpop.f32.mrb[0].mxu0
    %2196 = vdwg.mxu0
    %v2197 = vpack.c.bf16 %v2194, %v2191
    %v2199 = vsel %vm414, %v2197, 0
    %v2202 = vsel %vm418, %v1348, 0
    %2204 = vmatprep.subr.bf16.mxu0 0
    %2205 = vmatpush1.bf16.msra.mxu0 %v2202
    %2206 = vmatprep.subr.bf16.mxu0 0
    %2207 = vmatpush1.bf16.msra.mxu0 0
    %2208 = vmatprep.subr.bf16.mxu0 0
    %2209 = vmatpush1.bf16.msra.mxu0 0
    %2210 = vmatprep.subr.bf16.mxu0 0
    %2211 = vmatpush1.bf16.msra.mxu0 0
    %2212 = vmatprep.subr.bf16.mxu0 0
    %2213 = vmatpush1.bf16.msra.mxu0 0
    %2214 = vmatprep.subr.bf16.mxu0 0
    %2215 = vmatpush1.bf16.msra.mxu0 0
    %2216 = vmatprep.subr.bf16.mxu0 0
    %2217 = vmatpush1.bf16.msra.mxu0 0
    %2218 = vmatprep.subr.bf16.mxu0 0
    %2219 = vmatpush1.bf16.msra.mxu0 0
    %2220 = vmatprep.subr.bf16.mxu0 0
    %2221 = vmatpush1.bf16.msra.mxu0 0
    %2222 = vmatprep.subr.bf16.mxu0 0
    %2223 = vmatpush1.bf16.msra.mxu0 0
    %2224 = vmatprep.subr.bf16.mxu0 0
    %2225 = vmatpush1.bf16.msra.mxu0 0
    %2226 = vmatprep.subr.bf16.mxu0 0
    %2227 = vmatpush1.bf16.msra.mxu0 0
    %2228 = vmatprep.subr.bf16.mxu0 0
    %2229 = vmatpush1.bf16.msra.mxu0 0
    %2230 = vmatprep.subr.bf16.mxu0 0
    %2231 = vmatpush1.bf16.msra.mxu0 0
    %2232 = vmatprep.subr.bf16.mxu0 0
    %2233 = vmatpush1.bf16.msra.mxu0 0
    %2234 = vmatprep.subr.bf16.mxu0 0
    %2235 = vmatpush1.bf16.msra.mxu0 0
    %2236 = vmatprep.mubr.bf16.mxu0 0
    %2237 = vmatmul.mubr.bf16.gmra.mrb[0].mxu0 %v2199
    %v2238 = vpop.f32.mrb[0].mxu0
    %v2239 = vadd.f32 0.0, %v2238
    %v2240 = vpop.f32.mrb[0].mxu0
    %v2241 = vpop.f32.mrb[0].mxu0
    %v2242 = vadd.f32 0.0, %v2241
    %v2243 = vpop.f32.mrb[0].mxu0
    %2244 = vdwg.mxu0
    %v2245 = vadd.f32 %v2075, %v2239
    %v2246 = vadd.f32 %v2076, %v2242
    %v2247 = vlaneseq
    %v2248 = vshrl.u32 %v2247, 7
    %v2249 = vsub.s32 1, %v2248
    %v2250 = vrot.slane %v166, %v2249
    %v2251 = vadd.f32 %v2245, %v2250
    %v2252 = vadd.f32 %v2246, %v2250
    %v2253 = vadd.f32 %v1327, %v2251
    %v2254 = vadd.f32 %v1328, %v2252
    %v2255 = vsel %vm218, %v2253, 0.0
    %2256 = vadd.xlane.f32.xlu0 %v2255
    %v2257 = vpop.xlane.xlu0 %2256
    %v2258 = vsel %vm218, %v2254, 0.0
    %2259 = vadd.xlane.f32.xlu0 %v2258
    %v2260 = vpop.xlane.xlu0 %2259
    %v2261 = vmul.f32 %v2257, %v1103
    %v2262 = vmul.f32 %v2260, %v1103
    %v2263 = vsub.f32 %v2253, %v2261
    %v2264 = vsub.f32 %v2254, %v2262
    %v2265 = vmul.f32 %v2263, %v2263
    %v2266 = vmul.f32 %v2264, %v2264
    %v2267 = vsel %vm218, %v2265, 0.0
    %2268 = vadd.xlane.f32.xlu0 %v2267
    %v2269 = vpop.xlane.xlu0 %2268
    %v2270 = vsel %vm218, %v2266, 0.0
    %2271 = vadd.xlane.f32.xlu0 %v2270
    %v2272 = vpop.xlane.xlu0 %2271
    %v2273 = vmul.f32 %v2269, %v1103
    %v2274 = vmul.f32 %v2272, %v1103
    %v2275 = vadd.f32 %v2273, 1e-12
    %v2276 = vadd.f32 %v2274, 1e-12
    %v2277 = vrsqrt.pop %v2275
    %v2278 = vrsqrt.pop %v2276
    %v2279 = vmul.f32 %v2263, %v2277
    %v2280 = vmul.f32 %v2264, %v2278
    %v2281 = vlaneseq
    %v2282 = vshrl.u32 %v2281, 7
    %v2283 = vsub.s32 1, %v2282
    %v2284 = vrot.slane %v167, %v2283
    %v2285 = vmul.f32 %v2279, %v2284
    %v2286 = vmul.f32 %v2280, %v2284
    %v2287 = vlaneseq
    %v2288 = vshrl.u32 %v2287, 7
    %v2289 = vsub.s32 1, %v2288
    %v2290 = vrot.slane %v168, %v2289
    %v2291 = vadd.f32 %v2285, %v2290
    %v2292 = vadd.f32 %v2286, %v2290
    %v2293 = vpack.c.bf16 %v2292, %v2291
    %v2294 = vlaneseq
    %v2295 = vshrl.u32 %v2294, 7
    %v2296 = vsub.s32 1, %v2295
    %v2297 = vrot.slane %v171, %v2296
    %v2302 = vunpack.c.l.b16 %v1350
    %v2303 = vunpack.c.l.b16 %v1351
    %v2304 = vunpack.c.l.b16 %v1352
    %v2305 = vunpack.c.l.b16 %v1353
    %v2306 = vpack.c.b16 %v2303, %v2302
    %v2307 = vpack.c.b16 %v2305, %v2304
    %v2311 = vsel %vm218, %v2293, 0
    %2313 = vmatprep.subr.bf16.mxu0 0
    %2314 = vmatpush1.bf16.msra.mxu0 %v2306
    %2315 = vmatprep.subr.bf16.mxu0 0
    %2316 = vmatpush1.bf16.msra.mxu0 %v2307
    %2317 = vmatprep.subr.bf16.mxu0 0
    %2318 = vmatpush1.bf16.msra.mxu0 0
    %2319 = vmatprep.subr.bf16.mxu0 0
    %2320 = vmatpush1.bf16.msra.mxu0 0
    %2321 = vmatprep.subr.bf16.mxu0 0
    %2322 = vmatpush1.bf16.msra.mxu0 0
    %2323 = vmatprep.subr.bf16.mxu0 0
    %2324 = vmatpush1.bf16.msra.mxu0 0
    %2325 = vmatprep.subr.bf16.mxu0 0
    %2326 = vmatpush1.bf16.msra.mxu0 0
    %2327 = vmatprep.subr.bf16.mxu0 0
    %2328 = vmatpush1.bf16.msra.mxu0 0
    %2329 = vmatprep.subr.bf16.mxu0 0
    %2330 = vmatpush1.bf16.msra.mxu0 0
    %2331 = vmatprep.subr.bf16.mxu0 0
    %2332 = vmatpush1.bf16.msra.mxu0 0
    %2333 = vmatprep.subr.bf16.mxu0 0
    %2334 = vmatpush1.bf16.msra.mxu0 0
    %2335 = vmatprep.subr.bf16.mxu0 0
    %2336 = vmatpush1.bf16.msra.mxu0 0
    %2337 = vmatprep.subr.bf16.mxu0 0
    %2338 = vmatpush1.bf16.msra.mxu0 0
    %2339 = vmatprep.subr.bf16.mxu0 0
    %2340 = vmatpush1.bf16.msra.mxu0 0
    %2341 = vmatprep.subr.bf16.mxu0 0
    %2342 = vmatpush1.bf16.msra.mxu0 0
    %2343 = vmatprep.subr.bf16.mxu0 0
    %2344 = vmatpush1.bf16.msra.mxu0 0
    %2345 = vmatprep.mubr.bf16.mxu0 0
    %2346 = vmatmul.mubr.bf16.gmra.mrb[0].mxu0 %v2311
    %v2347 = vpop.f32.mrb[0].mxu0
    %v2348 = vadd.f32 %v2297, %v2347
    %v2349 = vpop.f32.mrb[0].mxu0
    %v2350 = vpop.f32.mrb[0].mxu0
    %v2351 = vadd.f32 %v2297, %v2350
    %v2352 = vpop.f32.mrb[0].mxu0
    %2353 = vdwg.mxu0
    %v2354 = vmul.f32 %v2348, %v2348
    %v2355 = vmul.f32 %v2351, %v2351
    %v2356 = vmul.f32 %v2348, %v2354
    %v2357 = vmul.f32 %v2351, %v2355
    %v2358 = vmul.f32 %v2356, 0.044715
    %v2359 = vmul.f32 %v2357, 0.044715
    %v2360 = vadd.f32 %v2348, %v2358
    %v2361 = vadd.f32 %v2351, %v2359
    %v2362 = vmul.f32 %v2360, 0.7978846
    %v2363 = vmul.f32 %v2361, 0.7978846
    %v2364 = vtanh.pop %v2362
    %v2365 = vtanh.pop %v2363
    %v2366 = vadd.f32 %v2364, 1.0
    %v2367 = vadd.f32 %v2365, 1.0
    %v2368 = vmul.f32 %v2366, 0.5
    %v2369 = vmul.f32 %v2367, 0.5
    %v2370 = vmul.f32 %v2348, %v2368
    %v2371 = vmul.f32 %v2351, %v2369
    %v2372 = vpack.c.bf16 %v2371, %v2370
    %v2373 = vlaneseq
    %v2374 = vshrl.u32 %v2373, 7
    %v2375 = vsub.s32 1, %v2374
    %v2376 = vrot.slane %v172, %v2375
    %v2385 = vunpack.c.l.b16 %v1355
    %v2386 = vunpack.c.l.b16 %v1356
    %v2387 = vunpack.c.l.b16 %v1357
    %v2388 = vunpack.c.l.b16 %v1358
    %v2389 = vunpack.c.l.b16 %v1359
    %v2390 = vunpack.c.l.b16 %v1360
    %v2391 = vunpack.c.l.b16 %v1361
    %v2392 = vunpack.c.l.b16 %v1362
    %v2393 = vpack.c.b16 %v2386, %v2385
    %v2394 = vpack.c.b16 %v2388, %v2387
    %v2395 = vpack.c.b16 %v2390, %v2389
    %v2396 = vpack.c.b16 %v2392, %v2391
    %v2402 = vsel %vm1244, %v2372, 0
    %2404 = vmatprep.subr.bf16.mxu0 0
    %2405 = vmatpush1.bf16.msra.mxu0 %v2393
    %2406 = vmatprep.subr.bf16.mxu0 0
    %2407 = vmatpush1.bf16.msra.mxu0 %v2394
    %2408 = vmatprep.subr.bf16.mxu0 0
    %2409 = vmatpush1.bf16.msra.mxu0 %v2395
    %2410 = vmatprep.subr.bf16.mxu0 0
    %2411 = vmatpush1.bf16.msra.mxu0 %v2396
    %2412 = vmatprep.subr.bf16.mxu0 0
    %2413 = vmatpush1.bf16.msra.mxu0 0
    %2414 = vmatprep.subr.bf16.mxu0 0
    %2415 = vmatpush1.bf16.msra.mxu0 0
    %2416 = vmatprep.subr.bf16.mxu0 0
    %2417 = vmatpush1.bf16.msra.mxu0 0
    %2418 = vmatprep.subr.bf16.mxu0 0
    %2419 = vmatpush1.bf16.msra.mxu0 0
    %2420 = vmatprep.subr.bf16.mxu0 0
    %2421 = vmatpush1.bf16.msra.mxu0 0
    %2422 = vmatprep.subr.bf16.mxu0 0
    %2423 = vmatpush1.bf16.msra.mxu0 0
    %2424 = vmatprep.subr.bf16.mxu0 0
    %2425 = vmatpush1.bf16.msra.mxu0 0
    %2426 = vmatprep.subr.bf16.mxu0 0
    %2427 = vmatpush1.bf16.msra.mxu0 0
    %2428 = vmatprep.subr.bf16.mxu0 0
    %2429 = vmatpush1.bf16.msra.mxu0 0
    %2430 = vmatprep.subr.bf16.mxu0 0
    %2431 = vmatpush1.bf16.msra.mxu0 0
    %2432 = vmatprep.subr.bf16.mxu0 0
    %2433 = vmatpush1.bf16.msra.mxu0 0
    %2434 = vmatprep.subr.bf16.mxu0 0
    %2435 = vmatpush1.bf16.msra.mxu0 0
    %2436 = vmatprep.mubr.bf16.mxu0 0
    %2437 = vmatmul.mubr.bf16.gmra.mrb[0].mxu0 %v2402
    %v2438 = vpop.f32.mrb[0].mxu0
    %v2439 = vadd.f32 %v2376, %v2438
    %v2440 = vpop.f32.mrb[0].mxu0
    %v2441 = vpop.f32.mrb[0].mxu0
    %v2442 = vadd.f32 %v2376, %v2441
    %v2443 = vpop.f32.mrb[0].mxu0
    %2444 = vdwg.mxu0
    %v2445 = vadd.f32 %v2291, %v2439
    %v2446 = vadd.f32 %v2292, %v2442
    %v2447 = vsel %vm218, %v2445, 0.0
    %2448 = vadd.xlane.f32.xlu0 %v2447
    %v2449 = vpop.xlane.xlu0 %2448
    %v2450 = vsel %vm218, %v2446, 0.0
    %2451 = vadd.xlane.f32.xlu0 %v2450
    %v2452 = vpop.xlane.xlu0 %2451
    %v2453 = vmul.f32 %v2449, %v1103
    %v2454 = vmul.f32 %v2452, %v1103
    %v2455 = vsub.f32 %v2445, %v2453
    %v2456 = vsub.f32 %v2446, %v2454
    %v2457 = vmul.f32 %v2455, %v2455
    %v2458 = vmul.f32 %v2456, %v2456
    %v2459 = vsel %vm218, %v2457, 0.0
    %2460 = vadd.xlane.f32.xlu0 %v2459
    %v2461 = vpop.xlane.xlu0 %2460
    %v2462 = vsel %vm218, %v2458, 0.0
    %2463 = vadd.xlane.f32.xlu0 %v2462
    %v2464 = vpop.xlane.xlu0 %2463
    %v2465 = vmul.f32 %v2461, %v1103
    %v2466 = vmul.f32 %v2464, %v1103
    %v2467 = vadd.f32 %v2465, 1e-12
    %v2468 = vadd.f32 %v2466, 1e-12
    %v2469 = vrsqrt.pop %v2467
    %v2470 = vrsqrt.pop %v2468
    %v2471 = vmul.f32 %v2455, %v2469
    %v2472 = vmul.f32 %v2456, %v2470
    %v2473 = vlaneseq
    %v2474 = vshrl.u32 %v2473, 7
    %v2475 = vsub.s32 1, %v2474
    %v2476 = vrot.slane %v169, %v2475
    %v2477 = vmul.f32 %v2471, %v2476
    %v2478 = vmul.f32 %v2472, %v2476
    %v2479 = vlaneseq
    %v2480 = vshrl.u32 %v2479, 7
    %v2481 = vsub.s32 1, %v2480
    %v2482 = vrot.slane %v170, %v2481
    %v2483 = vadd.f32 %v2477, %v2482
    %v2484 = vadd.f32 %v2478, %v2482
    %v2485 = vpack.c.bf16 %v2484, %v2483
    %v2486 = vld [vmem:[%s23] sm:$0xf]
    %v2487 = vld [vmem:[%s23 + $0x4] sm:$0xf]
    %v2488 = vld [vmem:[%s23 + $0x8] sm:$0xf]
    %v2489 = vld [vmem:[%s23 + $0xc] sm:$0xf]
    %v2490 = vld [vmem:[%s24] sm:$0x1]
    %v2492 = vlaneseq
    %v2493 = vshrl.u32 %v2492, 7
    %v2494 = vsub.s32 0, %v2493
    %v2495 = vrot.slane %v2490, %v2494
    %v2501 = vunpack.c.l.b16 %v2486
    %v2502 = vunpack.c.l.b16 %v2487
    %v2503 = vunpack.c.l.b16 %v2488
    %v2504 = vunpack.c.l.b16 %v2489
    %v2505 = vpack.c.b16 %v2502, %v2501
    %v2506 = vpack.c.b16 %v2504, %v2503
    %v2510 = vsel %vm218, %v2485, 0
    %2512 = vmatprep.subr.bf16.mxu0 0
    %2513 = vmatpush1.bf16.msra.mxu0 %v2505
    %2514 = vmatprep.subr.bf16.mxu0 0
    %2515 = vmatpush1.bf16.msra.mxu0 %v2506
    %2516 = vmatprep.subr.bf16.mxu0 0
    %2517 = vmatpush1.bf16.msra.mxu0 0
    %2518 = vmatprep.subr.bf16.mxu0 0
    %2519 = vmatpush1.bf16.msra.mxu0 0
    %2520 = vmatprep.subr.bf16.mxu0 0
    %2521 = vmatpush1.bf16.msra.mxu0 0
    %2522 = vmatprep.subr.bf16.mxu0 0
    %2523 = vmatpush1.bf16.msra.mxu0 0
    %2524 = vmatprep.subr.bf16.mxu0 0
    %2525 = vmatpush1.bf16.msra.mxu0 0
    %2526 = vmatprep.subr.bf16.mxu0 0
    %2527 = vmatpush1.bf16.msra.mxu0 0
    %2528 = vmatprep.subr.bf16.mxu0 0
    %2529 = vmatpush1.bf16.msra.mxu0 0
    %2530 = vmatprep.subr.bf16.mxu0 0
    %2531 = vmatpush1.bf16.msra.mxu0 0
    %2532 = vmatprep.subr.bf16.mxu0 0
    %2533 = vmatpush1.bf16.msra.mxu0 0
    %2534 = vmatprep.subr.bf16.mxu0 0
    %2535 = vmatpush1.bf16.msra.mxu0 0
    %2536 = vmatprep.subr.bf16.mxu0 0
    %2537 = vmatpush1.bf16.msra.mxu0 0
    %2538 = vmatprep.subr.bf16.mxu0 0
    %2539 = vmatpush1.bf16.msra.mxu0 0
    %2540 = vmatprep.subr.bf16.mxu0 0
    %2541 = vmatpush1.bf16.msra.mxu0 0
    %2542 = vmatprep.subr.bf16.mxu0 0
    %2543 = vmatpush1.bf16.msra.mxu0 0
    %2544 = vmatprep.mubr.bf16.mxu0 0
    %2545 = vmatmul.mubr.bf16.gmra.mrb[0].mxu0 %v2510
    %v2546 = vpop.f32.mrb[0].mxu0
    %v2547 = vadd.f32 %v2495, %v2546
    %v2548 = vpop.f32.mrb[0].mxu0
    %v2549 = vpop.f32.mrb[0].mxu0
    %v2550 = vadd.f32 %v2495, %v2549
    %v2551 = vpop.f32.mrb[0].mxu0
    %2552 = vdwg.mxu0
    %2553 = vst [vmem:[#allocation13] sm:$0xff] %v2547
    %2554 = vst [vmem:[#allocation13 + $0x8] sm:$0xff] %v2550
    %v2555 = vld [vmem:[#allocation7] sm:$0x1]
    %v2556 = vlaneseq
    %v2557 = vand.u32 %v2556, 127
    %vm2558 = vcmp.lt.s32.totalorder %v2557, 5
    %v2559 = vsel %vm2558, %v2547, -1e+30
    %v2560 = vsel %vm2558, %v2550, -1e+30
    %2561 = vmax.xlane.f32.xlu0 %v2559
    %v2562 = vpop.xlane.xlu0 %2561
    %2563 = vmax.xlane.f32.xlu0 %v2560
    %v2564 = vpop.xlane.xlu0 %2563
    %v2565 = vsub.f32 %v2559, %v2562
    %v2566 = vsub.f32 %v2560, %v2564
    %v2567 = vmul.f32 %v2565, 1.442695
    %v2568 = vpow.pop %v2567
    %v2569 = vmul.f32 %v2566, 1.442695
    %v2570 = vpow.pop %v2569
    %2571 = vadd.xlane.f32.xlu0 %v2568
    %v2572 = vpop.xlane.xlu0 %2571
    %2573 = vadd.xlane.f32.xlu0 %v2570
    %v2574 = vpop.xlane.xlu0 %2573
    %v2575 = vlog2.pop %v2572
    %v2576 = vmul.f32 %v2575, 0.6931472
    %v2577 = vlog2.pop %v2574
    %v2578 = vmul.f32 %v2577, 0.6931472
    %v2579 = vadd.f32 %v2562, %v2576
    %v2580 = vadd.f32 %v2564, %v2578
    %v2581 = vsub.f32 %v2559, %v2579
    %v2582 = vsub.f32 %v2560, %v2580
    %v2583 = vld [vmem:[%s2] sm:$0xff]
    %v2584 = vld [vmem:[%s2 + $0x8] sm:$0xff]
    %v2585 = vld [vmem:[%s3] sm:$0xff]
    %v2586 = vld [vmem:[%s3 + $0x8] sm:$0xff]
    %2587 = vset.pattern.permute.xlu0 0
    %2588 = vperm.xlu0 %2587, %v2583
    %v2589 = vpop.permute.xlu0 %2588
    %2590 = vset.pattern.permute.xlu0 0
    %2591 = vperm.xlu0 %2590, %v2584
    %v2592 = vpop.permute.xlu0 %2591
    %vm2593 = vcmp.eq.s32.totalorder %v2557, %v2589
    %vm2594 = vcmp.eq.s32.totalorder %v2557, %v2592
    %v2595 = vsel %vm2593, 1, 0
    %v2596 = vsel %vm2594, 1, 0
    %v2597 = vcvt.s32.f32 %v2595
    %v2598 = vcvt.s32.f32 %v2596
    %v2599 = vmul.f32 %v2597, %v2581
    %v2600 = vmul.f32 %v2598, %v2582
    %2601 = vadd.xlane.f32.xlu0 %v2599
    %v2602 = vpop.xlane.xlu0 %2601
    %2603 = vadd.xlane.f32.xlu0 %v2600
    %v2604 = vpop.xlane.xlu0 %2603
    %v2605 = vsub.f32 0.0, %v2602
    %v2606 = vsub.f32 0.0, %v2604
    %v2608 = vlaneseq
    %v2609 = vshrl.u32 %v2608, 7
    %v2610 = vsub.s32 0, %v2609
    %v2611 = vrot.slane %v2555, %v2610
    %v2613 = vmul.f32 %v2597, %v2611
    %v2614 = vmul.f32 %v2598, %v2611
    %2615 = vadd.xlane.f32.xlu0 %v2613
    %v2616 = vpop.xlane.xlu0 %2615
    %2617 = vadd.xlane.f32.xlu0 %v2614
    %v2618 = vpop.xlane.xlu0 %2617
    %vm2619 = vcmp.eq.s32.totalorder %v2585, 1
    %vm2620 = vcmp.eq.s32.totalorder %v2586, 1
    %vm2621 = vcmp.ne.s32.totalorder %v2583, 4294967196
    %vm2622 = vcmp.ne.s32.totalorder %v2584, 4294967196
    %vm2623 = vmand %vm2619, %vm2621
    %vm2624 = vmand %vm2620, %vm2622
    %v2625 = vsel %vm2623, 1, 0
    %v2626 = vsel %vm2624, 1, 0
    %v2627 = vcvt.s32.f32 %v2625
    %v2628 = vcvt.s32.f32 %v2626
    %v2629 = vld [vmem:[%s5] sm:$0xff]
    %v2630 = vld [vmem:[%s5 + $0x8] sm:$0xff]
    %vm2631 = vcmp.eq.s32.totalorder %v2629, 0
    %vm2632 = vcmp.eq.s32.totalorder %v2630, 0
    %v2633 = vsel %vm2631, 1, 0
    %v2634 = vsel %vm2632, 1, 0
    %v2635 = vcvt.s32.f32 %v2633
    %v2636 = vcvt.s32.f32 %v2634
    %v2637 = vmul.f32 %v2635, %v2627
    %v2638 = vmul.f32 %v2636, %v2628
    %v2639 = vmul.f32 %v2637, %v2616
    %v2640 = vmul.f32 %v2638, %v2618
    %v2641 = vmul.f32 %v2639, %v2605
    %v2642 = vmul.f32 %v2640, %v2606
    %vm2643 = vcmask 7168
    %v2644 = vsel %vm2643, %v2641, 0.0
    %v2645 = vsel %vm2643, %v2642, 0.0
    %v2646 = vadd.f32 %v2644, %v2645
    %v2647 = vrot.slane %v2646, 4
    %v2648 = vadd.f32 %v2646, %v2647
    %v2649 = vrot.slane %v2648, 2
    %v2650 = vadd.f32 %v2648, %v2649
    %v2651 = vrot.slane %v2650, 1
    %v2652 = vadd.f32 %v2650, %v2651
    %v2653 = vsel %vm2643, %v2639, 0.0
    %v2654 = vsel %vm2643, %v2640, 0.0
    %v2655 = vadd.f32 %v2653, %v2654
    %v2656 = vrot.slane %v2655, 4
    %v2657 = vadd.f32 %v2655, %v2656
    %v2658 = vrot.slane %v2657, 2
    %v2659 = vadd.f32 %v2657, %v2658
    %v2660 = vrot.slane %v2659, 1
    %v2661 = vadd.f32 %v2659, %v2660
    %vm2662 = vcmp.gt.f32.partialorder %v2661, 0.0
    %v2663 = vrcp.pop %v2661
    %v2664 = vmul.f32 %v2652, %v2663
    %v2665 = vsel %vm2662, %v2664, 0.0
    %v2666 = vadd.f32 %v2665, 0.0
    %vm2667 = vcmp.eq.s32.totalorder %v2629, 1
    %vm2668 = vcmp.eq.s32.totalorder %v2630, 1
    %v2669 = vsel %vm2667, 1, 0
    %v2670 = vsel %vm2668, 1, 0
    %v2671 = vcvt.s32.f32 %v2669
    %v2672 = vcvt.s32.f32 %v2670
    %v2673 = vmul.f32 %v2671, %v2627
    %v2674 = vmul.f32 %v2672, %v2628
    %v2675 = vmul.f32 %v2673, %v2616
    %v2676 = vmul.f32 %v2674, %v2618
    %v2677 = vmul.f32 %v2675, %v2605
    %v2678 = vmul.f32 %v2676, %v2606
    %v2679 = vsel %vm2643, %v2677, 0.0
    %v2680 = vsel %vm2643, %v2678, 0.0
    %v2681 = vadd.f32 %v2679, %v2680
    %v2682 = vrot.slane %v2681, 4
    %v2683 = vadd.f32 %v2681, %v2682
    %v2684 = vrot.slane %v2683, 2
    %v2685 = vadd.f32 %v2683, %v2684
    %v2686 = vrot.slane %v2685, 1
    %v2687 = vadd.f32 %v2685, %v2686
    %v2688 = vsel %vm2643, %v2675, 0.0
    %v2689 = vsel %vm2643, %v2676, 0.0
    %v2690 = vadd.f32 %v2688, %v2689
    %v2691 = vrot.slane %v2690, 4
    %v2692 = vadd.f32 %v2690, %v2691
    %v2693 = vrot.slane %v2692, 2
    %v2694 = vadd.f32 %v2692, %v2693
    %v2695 = vrot.slane %v2694, 1
    %v2696 = vadd.f32 %v2694, %v2695
    %vm2697 = vcmp.gt.f32.partialorder %v2696, 0.0
    %v2698 = vrcp.pop %v2696
    %v2699 = vmul.f32 %v2687, %v2698
    %v2700 = vsel %vm2697, %v2699, 0.0
    %v2701 = vadd.f32 %v2666, %v2700
    %v2702 = vld [vmem:[%s4] sm:$0xff]
    %v2703 = vld [vmem:[%s4 + $0x8] sm:$0xff]
    %2704 = vset.pattern.permute.xlu0 0
    %2705 = vperm.xlu0 %2704, %v2702
    %v2706 = vpop.permute.xlu0 %2705
    %2707 = vset.pattern.permute.xlu0 0
    %2708 = vperm.xlu0 %2707, %v2703
    %v2709 = vpop.permute.xlu0 %2708
    %vm2710 = vcmp.eq.s32.totalorder %v2557, %v2706
    %vm2711 = vcmp.eq.s32.totalorder %v2557, %v2709
    %v2712 = vsel %vm2710, 1, 0
    %v2713 = vsel %vm2711, 1, 0
    %v2714 = vcvt.s32.f32 %v2712
    %v2715 = vcvt.s32.f32 %v2713
    %v2716 = vmul.f32 %v2714, %v2581
    %v2717 = vmul.f32 %v2715, %v2582
    %2718 = vadd.xlane.f32.xlu0 %v2716
    %v2719 = vpop.xlane.xlu0 %2718
    %2720 = vadd.xlane.f32.xlu0 %v2717
    %v2721 = vpop.xlane.xlu0 %2720
    %v2722 = vsub.f32 0.0, %v2719
    %v2723 = vsub.f32 0.0, %v2721
    %v2724 = vmul.f32 %v2714, %v2611
    %v2725 = vmul.f32 %v2715, %v2611
    %2726 = vadd.xlane.f32.xlu0 %v2724
    %v2727 = vpop.xlane.xlu0 %2726
    %2728 = vadd.xlane.f32.xlu0 %v2725
    %v2729 = vpop.xlane.xlu0 %2728
    %vm2730 = vcmp.ne.s32.totalorder %v2702, 4294967196
    %vm2731 = vcmp.ne.s32.totalorder %v2703, 4294967196
    %v2732 = vsel %vm2730, 1, 0
    %v2733 = vsel %vm2731, 1, 0
    %v2734 = vcvt.s32.f32 %v2732
    %v2735 = vcvt.s32.f32 %v2733
    %v2736 = vmul.f32 %v2734, %v2727
    %v2737 = vmul.f32 %v2735, %v2729
    %v2738 = vmul.f32 %v2736, %v2722
    %v2739 = vmul.f32 %v2737, %v2723
    %v2740 = vsel %vm2643, %v2738, 0.0
    %v2741 = vsel %vm2643, %v2739, 0.0
    %v2742 = vadd.f32 %v2740, %v2741
    %v2743 = vrot.slane %v2742, 4
    %v2744 = vadd.f32 %v2742, %v2743
    %v2745 = vrot.slane %v2744, 2
    %v2746 = vadd.f32 %v2744, %v2745
    %v2747 = vrot.slane %v2746, 1
    %v2748 = vadd.f32 %v2746, %v2747
    %v2749 = vsel %vm2643, %v2736, 0.0
    %v2750 = vsel %vm2643, %v2737, 0.0
    %v2751 = vadd.f32 %v2749, %v2750
    %v2752 = vrot.slane %v2751, 4
    %v2753 = vadd.f32 %v2751, %v2752
    %v2754 = vrot.slane %v2753, 2
    %v2755 = vadd.f32 %v2753, %v2754
    %v2756 = vrot.slane %v2755, 1
    %v2757 = vadd.f32 %v2755, %v2756
    %vm2758 = vcmp.gt.f32.partialorder %v2757, 0.0
    %v2759 = vrcp.pop %v2757
    %v2760 = vmul.f32 %v2748, %v2759
    %v2761 = vsel %vm2758, %v2760, 0.0
    %v2762 = vlaneseq
    %v2763 = vshrl.u32 %v2762, 7
    %vm2764 = vcmp.eq.s32.totalorder %v2763, 0
    %vm2765 = vcmp.eq.s32.totalorder %v2763, 1
    %2767 = vset.pattern.permute.xlu0 0
    %2768 = vperm.xlu0 %2767, %v2761
    %v2769 = vpop.permute.xlu0 %2768
    %v2771 = vsel %vm2765, %v2769, 0.0
    %2773 = vset.pattern.permute.xlu0 0
    %2774 = vperm.xlu0 %2773, %v2701
    %v2775 = vpop.permute.xlu0 %2774
    %v2777 = vsel %vm2764, %v2775, %v2771
    %2778 = vst [vmem:[#allocation14] sm:$0xff] %v2777
    // Predicated region
    $region126: #{tpu_custom_call.1} parent=1 // pred_check
      _
    $region127: #{tpu_custom_call.1} parent=1 // pred_check_branch
      %2780 = sbr.rel (0) target = $region129
    $region128: #{tpu_custom_call.1} parent=1 // pred_region
      %s2782 = ssub.s32 256, 256
      %2783 = vsyncadd [#allocation4], %s2782
      %s2784 = sshll.u32 [#allocation13], 4
      %s2785 = int_to_ptr.vmem [resolvable:$true] %s2784
      %2790 = dma.vmem_to_hbm [thread:$0]  %s2785, 256, %s25, [#allocation4], 128, 128, 8
    $region129: #{tpu_custom_call.1} parent=1 // pred_fallthru
      _
    // Predicated region
    $region130: #{tpu_custom_call.1} parent=1 // pred_check
      _
    $region131: #{tpu_custom_call.1} parent=1 // pred_check_branch
      %2792 = sbr.rel (0) target = $region133
    $region132: #{tpu_custom_call.1} parent=1 // pred_region
      %s2794 = ssub.s32 128, 128
      %2795 = vsyncadd [#allocation15], %s2794
      %s2797 = sshll.u32 [#allocation14], 4
      %s2798 = int_to_ptr.vmem [resolvable:$true] %s2797
      %2800 = dma.vmem_to_hbm [thread:$0]  %s2798, 128, %s26, [#allocation15]
    $region133: #{tpu_custom_call.1} parent=1 // pred_fallthru
      _
    // Predicated region
    $region134: #{tpu_custom_call.1} parent=1 // pred_check
      _
    $region135: #{tpu_custom_call.1} parent=1 // pred_check_branch
      %2802 = sbr.rel (0) target = $region137
    $region136: #{tpu_custom_call.1} parent=1 // pred_region
      %2803 = dma.done [#allocation4], 256
    $region137: #{tpu_custom_call.1} parent=1 // pred_fallthru
      _
    // Predicated region
    $region138: #{tpu_custom_call.1} parent=1 // pred_check
      _
    $region139: #{tpu_custom_call.1} parent=1 // pred_check_branch
      %2805 = sbr.rel (0) target = $region141
    $region140: #{tpu_custom_call.1} parent=1 // pred_region
      %2806 = dma.done [#allocation15], 128
    $region141: #{tpu_custom_call.1} parent=1 // pred_fallthru
      _
    %2807 = vsyncpa [#allocation3], 1
    %2808 = vsyncpa [#allocation6], 1
    %2809 = vsyncpa [#allocation9], 1
    %2810 = vsyncpa [#allocation12], 1
    %2811 = vsyncpa [#allocation4], 1
    %2812 = vsyncpa [#allocation15], 1

</llo_original>
